<compile_context>
chip_gen: v7x
topology: tpu7x:2x2x1
jax: 0.10.0
libtpu: 0.0.40
codegen_flags: <defaults>
</compile_context>

<pallas_src>
import functools

import jax
import jax.numpy as jnp
from jax.experimental import pallas as pl
from jax.experimental.pallas import tpu as pltpu


# ----------------------------------------------------------------------------
# helpers
# ----------------------------------------------------------------------------
def _layernorm(x, g, b, eps=1e-5):
    mu = jnp.mean(x, axis=-1, keepdims=True)
    var = jnp.mean((x - mu) ** 2, axis=-1, keepdims=True)
    return (x - mu) * jax.lax.rsqrt(var + eps) * g + b


# ----------------------------------------------------------------------------
# the fused kernel: one grid step == one batch element (full forward)
# ----------------------------------------------------------------------------
def simmim_fused_kernel(patch_ref, mask_ref, posb_ref, mtok_ref, wemb_ref,
                        wqkv_ref, wo_ref, w1_ref, w2_ref, gb_ref, b1m_ref,
                        wt_ref, bt_ref, o_ref,
                        q_scr, k_scr, v_scr,
                        *, heads, dim_head, depth):
    inner = heads * dim_head

    patches = patch_ref[...]                        # (N, P)
    mask = mask_ref[...]                            # (N, 1), 1.0 == masked

    # --- patch embedding + pos + mask-token substitution ------------------
    tok = jnp.dot(patches, wemb_ref[...],
                  preferred_element_type=jnp.float32) + posb_ref[...]
    x = jnp.where(mask > 0.0, mtok_ref[...], tok)   # (N, D)

    # --- transformer: depth pre-norm blocks, statically unrolled ----------
    for l in range(depth):
        gb = gb_ref[l]                              # (8, D): g1,b1,g2,b2,bo,b2m,0,0

        # attention -------------------------------------------------------
        xn = _layernorm(x, gb[0:1], gb[1:2])
        # fused qkv projection (softmax scale folded into the q columns)
        qkv = jnp.dot(xn, wqkv_ref[l],
                      preferred_element_type=jnp.float32)        # (N, 3*inner)
        # scatter per-head columns into head-batched scratch at static offsets
        for h in range(heads):
            c0 = h * dim_head
            q_scr[h] = qkv[:, c0:c0 + dim_head]
            k_scr[h] = qkv[:, inner + c0:inner + c0 + dim_head]
            v_scr[h] = qkv[:, 2 * inner + c0:2 * inner + c0 + dim_head]
        q = q_scr[...]                               # (heads, N, dh)
        k = k_scr[...]
        v = v_scr[...]

        s = jnp.einsum('hqd,hkd->hqk', q, k,
                       preferred_element_type=jnp.float32)       # (heads, N, N)
        m = jnp.max(s, axis=-1, keepdims=True)
        p = jnp.exp(s - m)
        a = p * pl.reciprocal(jnp.sum(p, axis=-1, keepdims=True), approx=True)
        o = jnp.einsum('hqk,hkd->hqd', a, v,
                       preferred_element_type=jnp.float32)       # (heads, N, dh)

        # head-merge + output projection: concat(heads)@Wo == sum_h o_h@Wo_h
        proj = jnp.einsum('hqd,hde->hqe', o, wo_ref[l],
                          preferred_element_type=jnp.float32)    # (heads, N, D)
        x = x + jnp.sum(proj, axis=0) + gb[4:5]

        # MLP ---------------------------------------------------------------
        xn2 = _layernorm(x, gb[2:3], gb[3:4])
        h1 = jnp.dot(xn2, w1_ref[l],
                     preferred_element_type=jnp.float32) + b1m_ref[l]
        # TODO(synk): the reference encoder's GELU flavor is not given in the
        # spec; tanh-approx is used here (exact-erf via approximate=False if a
        # checkpoint requires it).
        h1 = jax.nn.gelu(h1, approximate=True)
        x = x + jnp.dot(h1, w2_ref[l],
                        preferred_element_type=jnp.float32) + gb[5:6]

    # --- prediction head + masked L1 partial sum for this batch -----------
    pred = jnp.dot(x, wt_ref[...],
                   preferred_element_type=jnp.float32) + bt_ref[...]
    err = jnp.abs(pred - patches) * mask             # (N, P)
    # per-batch partial sum, splat into the (1,8,128) output block
    o_ref[...] = jnp.broadcast_to(jnp.sum(err), o_ref.shape)


# ----------------------------------------------------------------------------
# pallas_call wrapper: grid over the batch (parallel -> both v7x TensorCores)
# ----------------------------------------------------------------------------
def simmim_pallas(patches, mask, posb, mtokp, params, *, B, N, heads, dim_head):
    BN, P = patches.shape
    D = params["w_emb_t"].shape[1]
    depth = params["wqkv_t"].shape[0]
    inner = heads * dim_head
    mlp_dim = params["w1_t"].shape[-1]

    kernel = functools.partial(simmim_fused_kernel, heads=heads,
                               dim_head=dim_head, depth=depth)

    def full_spec(shape):
        nd = len(shape)
        return pl.BlockSpec(shape, lambda b, _nd=nd: (0,) * _nd)

    out = pl.pallas_call(
        kernel,
        out_shape=jax.ShapeDtypeStruct((B, 8, 128), jnp.float32),
        grid=(B,),
        in_specs=[
            pl.BlockSpec((N, P), lambda b: (b, 0)),      # patches (per batch)
            pl.BlockSpec((N, 1), lambda b: (b, 0)),      # mask    (per batch)
            full_spec((N, D)),                           # pos + b_emb
            full_spec((N, D)),                           # mask_token + pos
            full_spec((P, D)),                           # patch_to_emb weight^T
            full_spec((depth, D, 3 * inner)),            # fused qkv weights
            full_spec((depth, heads, dim_head, D)),      # per-head out proj
            full_spec((depth, D, mlp_dim)),              # mlp w1
            full_spec((depth, mlp_dim, D)),              # mlp w2
            full_spec((depth, 8, D)),                    # packed gains/biases
            full_spec((depth, 1, mlp_dim)),              # mlp b1
            full_spec((D, P)),                           # to_times weight^T
            full_spec((1, P)),                           # to_times bias
        ],
        out_specs=pl.BlockSpec((1, 8, 128), lambda b: (b, 0, 0)),
        scratch_shapes=[
            pltpu.VMEM((heads, N, dim_head), jnp.float32),   # q (head-batched)
            pltpu.VMEM((heads, N, dim_head), jnp.float32),   # k
            pltpu.VMEM((heads, N, dim_head), jnp.float32),   # v
        ],
        compiler_params=pltpu.CompilerParams(
            dimension_semantics=("parallel",)),
    )(patches, mask, posb, mtokp,
      params["w_emb_t"], params["wqkv_t"], params["wo_h"],
      params["w1_t"], params["w2_t"], params["gb"], params["b1m"],
      params["w_time_t"], params["b_time"].reshape(1, P))

    return out[:, 0, 0]                                  # (B,) partial sums


# ----------------------------------------------------------------------------
# Full SimMIM_cmib forward
# ----------------------------------------------------------------------------
def simmim_forward(img, params, mask_key, *, masking_ratio, heads, dim_head):
    B, C, T, V = img.shape
    # to_patch: 'b c t v -> b v (c t)'
    patches = jnp.transpose(img, (0, 3, 1, 2)).reshape(B, V, C * T)
    N, P = V, C * T
    num_masked = int(masking_ratio * N)

    # random masking: torch.rand(...).topk(...).indices + scatter_ (JAX glue)
    rand = jax.random.uniform(mask_key, (B, N))
    _, masked_indices = jax.lax.top_k(rand, num_masked)            # (B, M)
    batch_range = jnp.arange(B)[:, None]
    bool_mask = jnp.zeros((B, N), jnp.float32).at[
        batch_range, masked_indices].set(1.0)

    pos = params["pos_embedding"][0, 1:N + 1]                      # (N, D)
    posb = pos + params["b_emb"][None, :]                          # (N, D)
    mtokp = params["mask_token"][None, :] + pos                    # (N, D)

    partials = simmim_pallas(patches.reshape(B * N, P),
                             bool_mask.reshape(B * N, 1),
                             posb, mtokp, params,
                             B=B, N=N, heads=heads, dim_head=dim_head)

    # F.l1_loss (mean over B*num_masked*P elements), then the module divides
    # by num_masked again -> sum / (B * num_masked^2 * P).
    inv_denom = 1.0 / float(B * num_masked * P * num_masked)
    return jnp.sum(partials) * inv_denom


# ----------------------------------------------------------------------------
# synthetic (deterministic) parameter init — weights stored matmul-ready
# ----------------------------------------------------------------------------
def init_params(key, *, N, P, D, heads, dim_head, mlp_dim, depth):
    inner = heads * dim_head
    scale = dim_head ** -0.5
    ks = iter(jax.random.split(key, 4 + depth * 6))

    def nrm(shape):
        return 0.02 * jax.random.normal(next(ks), shape, jnp.float32)

    params = {
        "w_emb_t": nrm((P, D)),                    # patch_to_emb.weight^T
        "b_emb": jnp.zeros((D,), jnp.float32),
        "pos_embedding": nrm((1, N + 1, D)),       # encoder.pos_embedding
        "mask_token": nrm((D,)),
        "w_time_t": nrm((D, P)),                   # to_times.weight^T
        "b_time": jnp.zeros((P,), jnp.float32),
    }
    wqkv, wo, w1, w2 = [], [], [], []
    for _ in range(depth):
        # NOTE: softmax scale dim_head**-0.5 folded into q-columns here; a
        # checkpoint converter must apply the same fold.
        wq = nrm((D, inner)) * scale
        wk = nrm((D, inner))
        wv = nrm((D, inner))
        wqkv.append(jnp.concatenate([wq, wk, wv], axis=-1))      # (D, 3*inner)
        wo.append(nrm((inner, D)).reshape(heads, dim_head, D))   # per-head
        w1.append(nrm((D, mlp_dim)))
        w2.append(nrm((mlp_dim, D)))

    onesD = jnp.ones((depth, 1, D), jnp.float32)
    zerosD = jnp.zeros((depth, 1, D), jnp.float32)
    # packed per-layer (8, D) table: [ln1_g, ln1_b, ln2_g, ln2_b, attn_out_b,
    #                                 mlp_out_b, pad, pad]
    gb = jnp.concatenate([onesD, zerosD, onesD, zerosD,
                          zerosD, zerosD, zerosD, zerosD], axis=1)

    params.update({
        "wqkv_t": jnp.stack(wqkv),                 # (depth, D, 3*inner)
        "wo_h": jnp.stack(wo),                     # (depth, heads, dh, D)
        "w1_t": jnp.stack(w1),                     # (depth, D, mlp_dim)
        "b1m": jnp.zeros((depth, 1, mlp_dim), jnp.float32),
        "w2_t": jnp.stack(w2),                     # (depth, mlp_dim, D)
        "gb": gb,                                  # (depth, 8, D)
    })
    return params


if __name__ == "__main__":
    key = jax.random.PRNGKey(0)
    k_img, k_param, k_mask = jax.random.split(key, 3)

    # small shapes consistent with the module
    B, C, T, V = 2, 1, 16, 8            # img: (batch, channels, time, joints)
    D, heads, dim_head, mlp_dim, depth = 32, 4, 8, 64, 2
    masking_ratio = 0.5
    P = C * T                           # time values per joint
    N = V                               # num_joint / num_patches

    img = jax.random.normal(k_img, (B, C, T, V), jnp.float32)
    params = init_params(k_param, N=N, P=P, D=D, heads=heads,
                         dim_head=dim_head, mlp_dim=mlp_dim, depth=depth)

    fwd = jax.jit(functools.partial(simmim_forward,
                                    masking_ratio=masking_ratio,
                                    heads=heads, dim_head=dim_head))
    loss = fwd(img, params, k_mask)
    jax.block_until_ready(loss)
    print("KERNEL_OK")
</pallas_src>

<mosaic_0001>
module attributes {stable_mosaic.version = 11 : i64} {
  func.func @simmim_fused_kernel(%arg0: i32, %arg1: memref<8x16xf32, #tpu.memory_space<vmem>>, %arg2: memref<8x1xf32, #tpu.memory_space<vmem>>, %arg3: memref<8x32xf32, #tpu.memory_space<vmem>>, %arg4: memref<8x32xf32, #tpu.memory_space<vmem>>, %arg5: memref<16x32xf32, #tpu.memory_space<vmem>>, %arg6: memref<2x32x96xf32, #tpu.memory_space<vmem>>, %arg7: memref<2x4x8x32xf32, #tpu.memory_space<vmem>>, %arg8: memref<2x32x64xf32, #tpu.memory_space<vmem>>, %arg9: memref<2x64x32xf32, #tpu.memory_space<vmem>>, %arg10: memref<2x8x32xf32, #tpu.memory_space<vmem>>, %arg11: memref<2x1x64xf32, #tpu.memory_space<vmem>>, %arg12: memref<32x16xf32, #tpu.memory_space<vmem>>, %arg13: memref<1x16xf32, #tpu.memory_space<vmem>>, %arg14: memref<1x8x128xf32, #tpu.memory_space<vmem>>, %arg15: memref<4x8x8xf32, #tpu.memory_space<vmem>>, %arg16: memref<4x8x8xf32, #tpu.memory_space<vmem>>, %arg17: memref<4x8x8xf32, #tpu.memory_space<vmem>>) attributes {dimension_semantics = [#tpu.dimension_semantics<parallel>], iteration_bounds = array<i64: 2>, scalar_prefetch = 0 : i64, scratch_operands = 3 : i64, tpu.core_type = #tpu.core_type<tc>, window_params = [{transform_indices = @transform_0, window_bounds = array<i64: 8, 16>}, {transform_indices = @transform_1, window_bounds = array<i64: 8, 1>}, {pipeline_mode = #tpu.pipeline_mode<synchronous>, transform_indices = @transform_2, window_bounds = array<i64: 8, 32>}, {pipeline_mode = #tpu.pipeline_mode<synchronous>, transform_indices = @transform_3, window_bounds = array<i64: 8, 32>}, {pipeline_mode = #tpu.pipeline_mode<synchronous>, transform_indices = @transform_4, window_bounds = array<i64: 16, 32>}, {pipeline_mode = #tpu.pipeline_mode<synchronous>, transform_indices = @transform_5, window_bounds = array<i64: 2, 32, 96>}, {pipeline_mode = #tpu.pipeline_mode<synchronous>, transform_indices = @transform_6, window_bounds = array<i64: 2, 4, 8, 32>}, {pipeline_mode = #tpu.pipeline_mode<synchronous>, transform_indices = @transform_7, window_bounds = array<i64: 2, 32, 64>}, {pipeline_mode = #tpu.pipeline_mode<synchronous>, transform_indices = @transform_8, window_bounds = array<i64: 2, 64, 32>}, {pipeline_mode = #tpu.pipeline_mode<synchronous>, transform_indices = @transform_9, window_bounds = array<i64: 2, 8, 32>}, {pipeline_mode = #tpu.pipeline_mode<synchronous>, transform_indices = @transform_10, window_bounds = array<i64: 2, 1, 64>}, {pipeline_mode = #tpu.pipeline_mode<synchronous>, transform_indices = @transform_11, window_bounds = array<i64: 32, 16>}, {pipeline_mode = #tpu.pipeline_mode<synchronous>, transform_indices = @transform_12, window_bounds = array<i64: 1, 16>}, {transform_indices = @transform_13, window_bounds = array<i64: 1, 8, 128>}]} {
    %c0 = arith.constant 0 : index
    %c0_0 = arith.constant 0 : index
    %0 = vector.load %arg1[%c0, %c0_0] : memref<8x16xf32, #tpu.memory_space<vmem>>, vector<8x16xf32>
    %c0_1 = arith.constant 0 : index
    %c0_2 = arith.constant 0 : index
    %1 = vector.load %arg2[%c0_1, %c0_2] : memref<8x1xf32, #tpu.memory_space<vmem>>, vector<8x1xf32>
    %c0_3 = arith.constant 0 : index
    %c0_4 = arith.constant 0 : index
    %2 = vector.load %arg5[%c0_3, %c0_4] : memref<16x32xf32, #tpu.memory_space<vmem>>, vector<16x32xf32>
    %cst = arith.constant dense<0.000000e+00> : vector<8x32xf32>
    %3 = tpu.matmul %0, %2, %cst {dimension_numbers = #tpu.dot_dimension_numbers<[1], [0], [0], [1], [0, 0, 1, 1], [], []>} : vector<8x16xf32>, vector<16x32xf32>, vector<8x32xf32> -> vector<8x32xf32>
    %c0_5 = arith.constant 0 : index
    %c0_6 = arith.constant 0 : index
    %4 = vector.load %arg3[%c0_5, %c0_6] : memref<8x32xf32, #tpu.memory_space<vmem>>, vector<8x32xf32>
    %5 = arith.addf %3, %4 : vector<8x32xf32>
    %cst_7 = arith.constant 0.000000e+00 : f32
    %6 = vector.broadcast %cst_7 : f32 to vector<8x1xf32>
    %7 = arith.cmpf ogt, %1, %6 : vector<8x1xf32>
    %c0_8 = arith.constant 0 : index
    %c0_9 = arith.constant 0 : index
    %8 = vector.load %arg4[%c0_8, %c0_9] : memref<8x32xf32, #tpu.memory_space<vmem>>, vector<8x32xf32>
    %9 = vector.shape_cast %7 : vector<8x1xi1> to vector<8x1xi1>
    %10 = vector.broadcast %9 : vector<8x1xi1> to vector<8x32xi1>
    %11 = arith.select %10, %8, %5 : vector<8x32xi1>, vector<8x32xf32>
    %c0_10 = arith.constant 0 : index
    %c0_11 = arith.constant 0 : index
    %c0_12 = arith.constant 0 : index
    %12 = vector.load %arg10[%c0_10, %c0_11, %c0_12] : memref<2x8x32xf32, #tpu.memory_space<vmem>>, vector<1x8x32xf32>
    %13 = vector.shape_cast %12 : vector<1x8x32xf32> to vector<8x32xf32>
    %14 = vector.extract_strided_slice %13 {offsets = [0, 0], sizes = [1, 32], strides = [1, 1]} : vector<8x32xf32> to vector<1x32xf32>
    %15 = vector.extract_strided_slice %13 {offsets = [1, 0], sizes = [1, 32], strides = [1, 1]} : vector<8x32xf32> to vector<1x32xf32>
    %cst_13 = arith.constant dense<0.000000e+00> : vector<8xf32>
    %16 = vector.multi_reduction <add>, %11, %cst_13 [1] : vector<8x32xf32> to vector<8xf32>
    %17 = vector.shape_cast %16 : vector<8xf32> to vector<8x1xf32>
    %cst_14 = arith.constant 3.200000e+01 : f32
    %18 = vector.broadcast %cst_14 : f32 to vector<8x1xf32>
    %19 = arith.divf %17, %18 : vector<8x1xf32>
    %20 = vector.broadcast %19 : vector<8x1xf32> to vector<8x32xf32>
    %21 = arith.subf %11, %20 : vector<8x32xf32>
    %22 = arith.mulf %21, %21 : vector<8x32xf32>
    %cst_15 = arith.constant dense<0.000000e+00> : vector<8xf32>
    %23 = vector.multi_reduction <add>, %22, %cst_15 [1] : vector<8x32xf32> to vector<8xf32>
    %24 = vector.shape_cast %23 : vector<8xf32> to vector<8x1xf32>
    %cst_16 = arith.constant 3.200000e+01 : f32
    %25 = vector.broadcast %cst_16 : f32 to vector<8x1xf32>
    %26 = arith.divf %24, %25 : vector<8x1xf32>
    %27 = vector.broadcast %19 : vector<8x1xf32> to vector<8x32xf32>
    %28 = arith.subf %11, %27 : vector<8x32xf32>
    %cst_17 = arith.constant 9.99999974E-6 : f32
    %29 = vector.broadcast %cst_17 : f32 to vector<8x1xf32>
    %30 = arith.addf %26, %29 : vector<8x1xf32>
    %31 = math.rsqrt %30 : vector<8x1xf32>
    %32 = vector.broadcast %31 : vector<8x1xf32> to vector<8x32xf32>
    %33 = arith.mulf %28, %32 : vector<8x32xf32>
    %34 = vector.broadcast %14 : vector<1x32xf32> to vector<8x32xf32>
    %35 = arith.mulf %33, %34 : vector<8x32xf32>
    %36 = vector.broadcast %15 : vector<1x32xf32> to vector<8x32xf32>
    %37 = arith.addf %35, %36 : vector<8x32xf32>
    %c0_18 = arith.constant 0 : index
    %c0_19 = arith.constant 0 : index
    %c0_20 = arith.constant 0 : index
    %38 = vector.load %arg6[%c0_18, %c0_19, %c0_20] : memref<2x32x96xf32, #tpu.memory_space<vmem>>, vector<1x32x96xf32>
    %39 = vector.shape_cast %38 : vector<1x32x96xf32> to vector<32x96xf32>
    %cst_21 = arith.constant dense<0.000000e+00> : vector<8x96xf32>
    %40 = tpu.matmul %37, %39, %cst_21 {dimension_numbers = #tpu.dot_dimension_numbers<[1], [0], [0], [1], [0, 0, 1, 1], [], []>} : vector<8x32xf32>, vector<32x96xf32>, vector<8x96xf32> -> vector<8x96xf32>
    %41 = vector.extract_strided_slice %40 {offsets = [0, 0], sizes = [8, 8], strides = [1, 1]} : vector<8x96xf32> to vector<8x8xf32>
    %c0_22 = arith.constant 0 : index
    %c0_23 = arith.constant 0 : index
    %c0_24 = arith.constant 0 : index
    %42 = vector.load %arg15[%c0_22, %c0_23, %c0_24] : memref<4x8x8xf32, #tpu.memory_space<vmem>>, vector<1x8x8xf32>
    %43 = vector.shape_cast %42 : vector<1x8x8xf32> to vector<8x8xf32>
    %44 = vector.shape_cast %41 : vector<8x8xf32> to vector<1x8x8xf32>
    tpu.vector_store %arg15[%c0_22, %c0_23, %c0_24], %44 {strides = array<i32>} : memref<4x8x8xf32, #tpu.memory_space<vmem>>, vector<1x8x8xf32>,
    %45 = vector.extract_strided_slice %40 {offsets = [0, 32], sizes = [8, 8], strides = [1, 1]} : vector<8x96xf32> to vector<8x8xf32>
    %c0_25 = arith.constant 0 : index
    %c0_26 = arith.constant 0 : index
    %c0_27 = arith.constant 0 : index
    %46 = vector.load %arg16[%c0_25, %c0_26, %c0_27] : memref<4x8x8xf32, #tpu.memory_space<vmem>>, vector<1x8x8xf32>
    %47 = vector.shape_cast %46 : vector<1x8x8xf32> to vector<8x8xf32>
    %48 = vector.shape_cast %45 : vector<8x8xf32> to vector<1x8x8xf32>
    tpu.vector_store %arg16[%c0_25, %c0_26, %c0_27], %48 {strides = array<i32>} : memref<4x8x8xf32, #tpu.memory_space<vmem>>, vector<1x8x8xf32>,
    %49 = vector.extract_strided_slice %40 {offsets = [0, 64], sizes = [8, 8], strides = [1, 1]} : vector<8x96xf32> to vector<8x8xf32>
    %c0_28 = arith.constant 0 : index
    %c0_29 = arith.constant 0 : index
    %c0_30 = arith.constant 0 : index
    %50 = vector.load %arg17[%c0_28, %c0_29, %c0_30] : memref<4x8x8xf32, #tpu.memory_space<vmem>>, vector<1x8x8xf32>
    %51 = vector.shape_cast %50 : vector<1x8x8xf32> to vector<8x8xf32>
    %52 = vector.shape_cast %49 : vector<8x8xf32> to vector<1x8x8xf32>
    tpu.vector_store %arg17[%c0_28, %c0_29, %c0_30], %52 {strides = array<i32>} : memref<4x8x8xf32, #tpu.memory_space<vmem>>, vector<1x8x8xf32>,
    %53 = vector.extract_strided_slice %40 {offsets = [0, 8], sizes = [8, 8], strides = [1, 1]} : vector<8x96xf32> to vector<8x8xf32>
    %c1 = arith.constant 1 : index
    %c0_31 = arith.constant 0 : index
    %c0_32 = arith.constant 0 : index
    %54 = vector.load %arg15[%c1, %c0_31, %c0_32] : memref<4x8x8xf32, #tpu.memory_space<vmem>>, vector<1x8x8xf32>
    %55 = vector.shape_cast %54 : vector<1x8x8xf32> to vector<8x8xf32>
    %56 = vector.shape_cast %53 : vector<8x8xf32> to vector<1x8x8xf32>
    tpu.vector_store %arg15[%c1, %c0_31, %c0_32], %56 {strides = array<i32>} : memref<4x8x8xf32, #tpu.memory_space<vmem>>, vector<1x8x8xf32>,
    %57 = vector.extract_strided_slice %40 {offsets = [0, 40], sizes = [8, 8], strides = [1, 1]} : vector<8x96xf32> to vector<8x8xf32>
    %c1_33 = arith.constant 1 : index
    %c0_34 = arith.constant 0 : index
    %c0_35 = arith.constant 0 : index
    %58 = vector.load %arg16[%c1_33, %c0_34, %c0_35] : memref<4x8x8xf32, #tpu.memory_space<vmem>>, vector<1x8x8xf32>
    %59 = vector.shape_cast %58 : vector<1x8x8xf32> to vector<8x8xf32>
    %60 = vector.shape_cast %57 : vector<8x8xf32> to vector<1x8x8xf32>
    tpu.vector_store %arg16[%c1_33, %c0_34, %c0_35], %60 {strides = array<i32>} : memref<4x8x8xf32, #tpu.memory_space<vmem>>, vector<1x8x8xf32>,
    %61 = vector.extract_strided_slice %40 {offsets = [0, 72], sizes = [8, 8], strides = [1, 1]} : vector<8x96xf32> to vector<8x8xf32>
    %c1_36 = arith.constant 1 : index
    %c0_37 = arith.constant 0 : index
    %c0_38 = arith.constant 0 : index
    %62 = vector.load %arg17[%c1_36, %c0_37, %c0_38] : memref<4x8x8xf32, #tpu.memory_space<vmem>>, vector<1x8x8xf32>
    %63 = vector.shape_cast %62 : vector<1x8x8xf32> to vector<8x8xf32>
    %64 = vector.shape_cast %61 : vector<8x8xf32> to vector<1x8x8xf32>
    tpu.vector_store %arg17[%c1_36, %c0_37, %c0_38], %64 {strides = array<i32>} : memref<4x8x8xf32, #tpu.memory_space<vmem>>, vector<1x8x8xf32>,
    %65 = vector.extract_strided_slice %40 {offsets = [0, 16], sizes = [8, 8], strides = [1, 1]} : vector<8x96xf32> to vector<8x8xf32>
    %c2 = arith.constant 2 : index
    %c0_39 = arith.constant 0 : index
    %c0_40 = arith.constant 0 : index
    %66 = vector.load %arg15[%c2, %c0_39, %c0_40] : memref<4x8x8xf32, #tpu.memory_space<vmem>>, vector<1x8x8xf32>
    %67 = vector.shape_cast %66 : vector<1x8x8xf32> to vector<8x8xf32>
    %68 = vector.shape_cast %65 : vector<8x8xf32> to vector<1x8x8xf32>
    tpu.vector_store %arg15[%c2, %c0_39, %c0_40], %68 {strides = array<i32>} : memref<4x8x8xf32, #tpu.memory_space<vmem>>, vector<1x8x8xf32>,
    %69 = vector.extract_strided_slice %40 {offsets = [0, 48], sizes = [8, 8], strides = [1, 1]} : vector<8x96xf32> to vector<8x8xf32>
    %c2_41 = arith.constant 2 : index
    %c0_42 = arith.constant 0 : index
    %c0_43 = arith.constant 0 : index
    %70 = vector.load %arg16[%c2_41, %c0_42, %c0_43] : memref<4x8x8xf32, #tpu.memory_space<vmem>>, vector<1x8x8xf32>
    %71 = vector.shape_cast %70 : vector<1x8x8xf32> to vector<8x8xf32>
    %72 = vector.shape_cast %69 : vector<8x8xf32> to vector<1x8x8xf32>
    tpu.vector_store %arg16[%c2_41, %c0_42, %c0_43], %72 {strides = array<i32>} : memref<4x8x8xf32, #tpu.memory_space<vmem>>, vector<1x8x8xf32>,
    %73 = vector.extract_strided_slice %40 {offsets = [0, 80], sizes = [8, 8], strides = [1, 1]} : vector<8x96xf32> to vector<8x8xf32>
    %c2_44 = arith.constant 2 : index
    %c0_45 = arith.constant 0 : index
    %c0_46 = arith.constant 0 : index
    %74 = vector.load %arg17[%c2_44, %c0_45, %c0_46] : memref<4x8x8xf32, #tpu.memory_space<vmem>>, vector<1x8x8xf32>
    %75 = vector.shape_cast %74 : vector<1x8x8xf32> to vector<8x8xf32>
    %76 = vector.shape_cast %73 : vector<8x8xf32> to vector<1x8x8xf32>
    tpu.vector_store %arg17[%c2_44, %c0_45, %c0_46], %76 {strides = array<i32>} : memref<4x8x8xf32, #tpu.memory_space<vmem>>, vector<1x8x8xf32>,
    %77 = vector.extract_strided_slice %40 {offsets = [0, 24], sizes = [8, 8], strides = [1, 1]} : vector<8x96xf32> to vector<8x8xf32>
    %c3 = arith.constant 3 : index
    %c0_47 = arith.constant 0 : index
    %c0_48 = arith.constant 0 : index
    %78 = vector.load %arg15[%c3, %c0_47, %c0_48] : memref<4x8x8xf32, #tpu.memory_space<vmem>>, vector<1x8x8xf32>
    %79 = vector.shape_cast %78 : vector<1x8x8xf32> to vector<8x8xf32>
    %80 = vector.shape_cast %77 : vector<8x8xf32> to vector<1x8x8xf32>
    tpu.vector_store %arg15[%c3, %c0_47, %c0_48], %80 {strides = array<i32>} : memref<4x8x8xf32, #tpu.memory_space<vmem>>, vector<1x8x8xf32>,
    %81 = vector.extract_strided_slice %40 {offsets = [0, 56], sizes = [8, 8], strides = [1, 1]} : vector<8x96xf32> to vector<8x8xf32>
    %c3_49 = arith.constant 3 : index
    %c0_50 = arith.constant 0 : index
    %c0_51 = arith.constant 0 : index
    %82 = vector.load %arg16[%c3_49, %c0_50, %c0_51] : memref<4x8x8xf32, #tpu.memory_space<vmem>>, vector<1x8x8xf32>
    %83 = vector.shape_cast %82 : vector<1x8x8xf32> to vector<8x8xf32>
    %84 = vector.shape_cast %81 : vector<8x8xf32> to vector<1x8x8xf32>
    tpu.vector_store %arg16[%c3_49, %c0_50, %c0_51], %84 {strides = array<i32>} : memref<4x8x8xf32, #tpu.memory_space<vmem>>, vector<1x8x8xf32>,
    %85 = vector.extract_strided_slice %40 {offsets = [0, 88], sizes = [8, 8], strides = [1, 1]} : vector<8x96xf32> to vector<8x8xf32>
    %c3_52 = arith.constant 3 : index
    %c0_53 = arith.constant 0 : index
    %c0_54 = arith.constant 0 : index
    %86 = vector.load %arg17[%c3_52, %c0_53, %c0_54] : memref<4x8x8xf32, #tpu.memory_space<vmem>>, vector<1x8x8xf32>
    %87 = vector.shape_cast %86 : vector<1x8x8xf32> to vector<8x8xf32>
    %88 = vector.shape_cast %85 : vector<8x8xf32> to vector<1x8x8xf32>
    tpu.vector_store %arg17[%c3_52, %c0_53, %c0_54], %88 {strides = array<i32>} : memref<4x8x8xf32, #tpu.memory_space<vmem>>, vector<1x8x8xf32>,
    %c0_55 = arith.constant 0 : index
    %c0_56 = arith.constant 0 : index
    %c0_57 = arith.constant 0 : index
    %89 = vector.load %arg15[%c0_55, %c0_56, %c0_57] : memref<4x8x8xf32, #tpu.memory_space<vmem>>, vector<4x8x8xf32>
    %c0_58 = arith.constant 0 : index
    %c0_59 = arith.constant 0 : index
    %c0_60 = arith.constant 0 : index
    %90 = vector.load %arg16[%c0_58, %c0_59, %c0_60] : memref<4x8x8xf32, #tpu.memory_space<vmem>>, vector<4x8x8xf32>
    %c0_61 = arith.constant 0 : index
    %c0_62 = arith.constant 0 : index
    %c0_63 = arith.constant 0 : index
    %91 = vector.load %arg17[%c0_61, %c0_62, %c0_63] : memref<4x8x8xf32, #tpu.memory_space<vmem>>, vector<4x8x8xf32>
    "tpu.trace_start"() <{level = 10 : i32, message = "hqd,hkd->hqk"}> : () -> ()
    %cst_64 = arith.constant dense<0.000000e+00> : vector<4x8x8xf32>
    %92 = tpu.matmul %89, %90, %cst_64 {dimension_numbers = #tpu.dot_dimension_numbers<[2], [2], [1], [1], [0, 0, 0, 1, 1, 1], [0], [0]>} : vector<4x8x8xf32>, vector<4x8x8xf32>, vector<4x8x8xf32> -> vector<4x8x8xf32>
    "tpu.trace_stop"() : () -> ()
    %cst_65 = arith.constant dense<0xFF800000> : vector<4x8xf32>
    %93 = vector.multi_reduction <maximumf>, %92, %cst_65 [2] : vector<4x8x8xf32> to vector<4x8xf32>
    %94 = vector.shape_cast %93 : vector<4x8xf32> to vector<4x8x1xf32>
    %95 = vector.broadcast %94 : vector<4x8x1xf32> to vector<4x8x8xf32>
    %96 = arith.subf %92, %95 : vector<4x8x8xf32>
    %97 = math.exp %96 : vector<4x8x8xf32>
    %cst_66 = arith.constant dense<0.000000e+00> : vector<4x8xf32>
    %98 = vector.multi_reduction <add>, %97, %cst_66 [2] : vector<4x8x8xf32> to vector<4x8xf32>
    %99 = vector.shape_cast %98 : vector<4x8xf32> to vector<4x8x1xf32>
    %100 = tpu.reciprocal %99 {approx = true} : vector<4x8x1xf32> -> vector<4x8x1xf32>
    %101 = vector.broadcast %100 : vector<4x8x1xf32> to vector<4x8x8xf32>
    %102 = arith.mulf %97, %101 : vector<4x8x8xf32>
    "tpu.trace_start"() <{level = 10 : i32, message = "hqk,hkd->hqd"}> : () -> ()
    %cst_67 = arith.constant dense<0.000000e+00> : vector<4x8x8xf32>
    %103 = tpu.matmul %102, %91, %cst_67 {dimension_numbers = #tpu.dot_dimension_numbers<[2], [1], [1], [2], [0, 0, 0, 1, 1, 2], [0], [0]>} : vector<4x8x8xf32>, vector<4x8x8xf32>, vector<4x8x8xf32> -> vector<4x8x8xf32>
    "tpu.trace_stop"() : () -> ()
    %c0_68 = arith.constant 0 : index
    %c0_69 = arith.constant 0 : index
    %c0_70 = arith.constant 0 : index
    %c0_71 = arith.constant 0 : index
    %104 = vector.load %arg7[%c0_68, %c0_69, %c0_70, %c0_71] : memref<2x4x8x32xf32, #tpu.memory_space<vmem>>, vector<1x4x8x32xf32>
    %105 = vector.shape_cast %104 : vector<1x4x8x32xf32> to vector<4x8x32xf32>
    "tpu.trace_start"() <{level = 10 : i32, message = "hqd,hde->hqe"}> : () -> ()
    %cst_72 = arith.constant dense<0.000000e+00> : vector<4x8x32xf32>
    %106 = tpu.matmul %103, %105, %cst_72 {dimension_numbers = #tpu.dot_dimension_numbers<[2], [1], [1], [2], [0, 0, 0, 1, 1, 2], [0], [0]>} : vector<4x8x8xf32>, vector<4x8x32xf32>, vector<4x8x32xf32> -> vector<4x8x32xf32>
    "tpu.trace_stop"() : () -> ()
    %cst_73 = arith.constant dense<0.000000e+00> : vector<8x32xf32>
    %107 = vector.multi_reduction <add>, %106, %cst_73 [0] : vector<4x8x32xf32> to vector<8x32xf32>
    %108 = arith.addf %11, %107 : vector<8x32xf32>
    %109 = vector.extract_strided_slice %13 {offsets = [4, 0], sizes = [1, 32], strides = [1, 1]} : vector<8x32xf32> to vector<1x32xf32>
    %110 = vector.broadcast %109 : vector<1x32xf32> to vector<8x32xf32>
    %111 = arith.addf %108, %110 : vector<8x32xf32>
    %112 = vector.extract_strided_slice %13 {offsets = [2, 0], sizes = [1, 32], strides = [1, 1]} : vector<8x32xf32> to vector<1x32xf32>
    %113 = vector.extract_strided_slice %13 {offsets = [3, 0], sizes = [1, 32], strides = [1, 1]} : vector<8x32xf32> to vector<1x32xf32>
    %cst_74 = arith.constant dense<0.000000e+00> : vector<8xf32>
    %114 = vector.multi_reduction <add>, %111, %cst_74 [1] : vector<8x32xf32> to vector<8xf32>
    %115 = vector.shape_cast %114 : vector<8xf32> to vector<8x1xf32>
    %cst_75 = arith.constant 3.200000e+01 : f32
    %116 = vector.broadcast %cst_75 : f32 to vector<8x1xf32>
    %117 = arith.divf %115, %116 : vector<8x1xf32>
    %118 = vector.broadcast %117 : vector<8x1xf32> to vector<8x32xf32>
    %119 = arith.subf %111, %118 : vector<8x32xf32>
    %120 = arith.mulf %119, %119 : vector<8x32xf32>
    %cst_76 = arith.constant dense<0.000000e+00> : vector<8xf32>
    %121 = vector.multi_reduction <add>, %120, %cst_76 [1] : vector<8x32xf32> to vector<8xf32>
    %122 = vector.shape_cast %121 : vector<8xf32> to vector<8x1xf32>
    %cst_77 = arith.constant 3.200000e+01 : f32
    %123 = vector.broadcast %cst_77 : f32 to vector<8x1xf32>
    %124 = arith.divf %122, %123 : vector<8x1xf32>
    %125 = vector.broadcast %117 : vector<8x1xf32> to vector<8x32xf32>
    %126 = arith.subf %111, %125 : vector<8x32xf32>
    %cst_78 = arith.constant 9.99999974E-6 : f32
    %127 = vector.broadcast %cst_78 : f32 to vector<8x1xf32>
    %128 = arith.addf %124, %127 : vector<8x1xf32>
    %129 = math.rsqrt %128 : vector<8x1xf32>
    %130 = vector.broadcast %129 : vector<8x1xf32> to vector<8x32xf32>
    %131 = arith.mulf %126, %130 : vector<8x32xf32>
    %132 = vector.broadcast %112 : vector<1x32xf32> to vector<8x32xf32>
    %133 = arith.mulf %131, %132 : vector<8x32xf32>
    %134 = vector.broadcast %113 : vector<1x32xf32> to vector<8x32xf32>
    %135 = arith.addf %133, %134 : vector<8x32xf32>
    %c0_79 = arith.constant 0 : index
    %c0_80 = arith.constant 0 : index
    %c0_81 = arith.constant 0 : index
    %136 = vector.load %arg8[%c0_79, %c0_80, %c0_81] : memref<2x32x64xf32, #tpu.memory_space<vmem>>, vector<1x32x64xf32>
    %137 = vector.shape_cast %136 : vector<1x32x64xf32> to vector<32x64xf32>
    %cst_82 = arith.constant dense<0.000000e+00> : vector<8x64xf32>
    %138 = tpu.matmul %135, %137, %cst_82 {dimension_numbers = #tpu.dot_dimension_numbers<[1], [0], [0], [1], [0, 0, 1, 1], [], []>} : vector<8x32xf32>, vector<32x64xf32>, vector<8x64xf32> -> vector<8x64xf32>
    %c0_83 = arith.constant 0 : index
    %c0_84 = arith.constant 0 : index
    %c0_85 = arith.constant 0 : index
    %139 = vector.load %arg11[%c0_83, %c0_84, %c0_85] : memref<2x1x64xf32, #tpu.memory_space<vmem>>, vector<1x1x64xf32>
    %140 = vector.shape_cast %139 : vector<1x1x64xf32> to vector<1x64xf32>
    %141 = vector.broadcast %140 : vector<1x64xf32> to vector<8x64xf32>
    %142 = arith.addf %138, %141 : vector<8x64xf32>
    %143 = arith.mulf %142, %142 : vector<8x64xf32>
    %144 = arith.mulf %142, %143 : vector<8x64xf32>
    %cst_86 = arith.constant 4.471500e-02 : f32
    %145 = vector.broadcast %cst_86 : f32 to vector<8x64xf32>
    %146 = arith.mulf %145, %144 : vector<8x64xf32>
    %147 = arith.addf %142, %146 : vector<8x64xf32>
    %cst_87 = arith.constant 0.797884583 : f32
    %148 = vector.broadcast %cst_87 : f32 to vector<8x64xf32>
    %149 = arith.mulf %148, %147 : vector<8x64xf32>
    %150 = math.tanh %149 : vector<8x64xf32>
    %cst_88 = arith.constant 1.000000e+00 : f32
    %151 = vector.broadcast %cst_88 : f32 to vector<8x64xf32>
    %152 = arith.addf %151, %150 : vector<8x64xf32>
    %cst_89 = arith.constant 5.000000e-01 : f32
    %153 = vector.broadcast %cst_89 : f32 to vector<8x64xf32>
    %154 = arith.mulf %153, %152 : vector<8x64xf32>
    %155 = arith.mulf %142, %154 : vector<8x64xf32>
    %c0_90 = arith.constant 0 : index
    %c0_91 = arith.constant 0 : index
    %c0_92 = arith.constant 0 : index
    %156 = vector.load %arg9[%c0_90, %c0_91, %c0_92] : memref<2x64x32xf32, #tpu.memory_space<vmem>>, vector<1x64x32xf32>
    %157 = vector.shape_cast %156 : vector<1x64x32xf32> to vector<64x32xf32>
    %cst_93 = arith.constant dense<0.000000e+00> : vector<8x32xf32>
    %158 = tpu.matmul %155, %157, %cst_93 {dimension_numbers = #tpu.dot_dimension_numbers<[1], [0], [0], [1], [0, 0, 1, 1], [], []>} : vector<8x64xf32>, vector<64x32xf32>, vector<8x32xf32> -> vector<8x32xf32>
    %159 = arith.addf %111, %158 : vector<8x32xf32>
    %160 = vector.extract_strided_slice %13 {offsets = [5, 0], sizes = [1, 32], strides = [1, 1]} : vector<8x32xf32> to vector<1x32xf32>
    %161 = vector.broadcast %160 : vector<1x32xf32> to vector<8x32xf32>
    %162 = arith.addf %159, %161 : vector<8x32xf32>
    %c1_94 = arith.constant 1 : index
    %c0_95 = arith.constant 0 : index
    %c0_96 = arith.constant 0 : index
    %163 = vector.load %arg10[%c1_94, %c0_95, %c0_96] : memref<2x8x32xf32, #tpu.memory_space<vmem>>, vector<1x8x32xf32>
    %164 = vector.shape_cast %163 : vector<1x8x32xf32> to vector<8x32xf32>
    %165 = vector.extract_strided_slice %164 {offsets = [0, 0], sizes = [1, 32], strides = [1, 1]} : vector<8x32xf32> to vector<1x32xf32>
    %166 = vector.extract_strided_slice %164 {offsets = [1, 0], sizes = [1, 32], strides = [1, 1]} : vector<8x32xf32> to vector<1x32xf32>
    %cst_97 = arith.constant dense<0.000000e+00> : vector<8xf32>
    %167 = vector.multi_reduction <add>, %162, %cst_97 [1] : vector<8x32xf32> to vector<8xf32>
    %168 = vector.shape_cast %167 : vector<8xf32> to vector<8x1xf32>
    %cst_98 = arith.constant 3.200000e+01 : f32
    %169 = vector.broadcast %cst_98 : f32 to vector<8x1xf32>
    %170 = arith.divf %168, %169 : vector<8x1xf32>
    %171 = vector.broadcast %170 : vector<8x1xf32> to vector<8x32xf32>
    %172 = arith.subf %162, %171 : vector<8x32xf32>
    %173 = arith.mulf %172, %172 : vector<8x32xf32>
    %cst_99 = arith.constant dense<0.000000e+00> : vector<8xf32>
    %174 = vector.multi_reduction <add>, %173, %cst_99 [1] : vector<8x32xf32> to vector<8xf32>
    %175 = vector.shape_cast %174 : vector<8xf32> to vector<8x1xf32>
    %cst_100 = arith.constant 3.200000e+01 : f32
    %176 = vector.broadcast %cst_100 : f32 to vector<8x1xf32>
    %177 = arith.divf %175, %176 : vector<8x1xf32>
    %178 = vector.broadcast %170 : vector<8x1xf32> to vector<8x32xf32>
    %179 = arith.subf %162, %178 : vector<8x32xf32>
    %cst_101 = arith.constant 9.99999974E-6 : f32
    %180 = vector.broadcast %cst_101 : f32 to vector<8x1xf32>
    %181 = arith.addf %177, %180 : vector<8x1xf32>
    %182 = math.rsqrt %181 : vector<8x1xf32>
    %183 = vector.broadcast %182 : vector<8x1xf32> to vector<8x32xf32>
    %184 = arith.mulf %179, %183 : vector<8x32xf32>
    %185 = vector.broadcast %165 : vector<1x32xf32> to vector<8x32xf32>
    %186 = arith.mulf %184, %185 : vector<8x32xf32>
    %187 = vector.broadcast %166 : vector<1x32xf32> to vector<8x32xf32>
    %188 = arith.addf %186, %187 : vector<8x32xf32>
    %c1_102 = arith.constant 1 : index
    %c0_103 = arith.constant 0 : index
    %c0_104 = arith.constant 0 : index
    %189 = vector.load %arg6[%c1_102, %c0_103, %c0_104] : memref<2x32x96xf32, #tpu.memory_space<vmem>>, vector<1x32x96xf32>
    %190 = vector.shape_cast %189 : vector<1x32x96xf32> to vector<32x96xf32>
    %cst_105 = arith.constant dense<0.000000e+00> : vector<8x96xf32>
    %191 = tpu.matmul %188, %190, %cst_105 {dimension_numbers = #tpu.dot_dimension_numbers<[1], [0], [0], [1], [0, 0, 1, 1], [], []>} : vector<8x32xf32>, vector<32x96xf32>, vector<8x96xf32> -> vector<8x96xf32>
    %192 = vector.extract_strided_slice %191 {offsets = [0, 0], sizes = [8, 8], strides = [1, 1]} : vector<8x96xf32> to vector<8x8xf32>
    %c0_106 = arith.constant 0 : index
    %c0_107 = arith.constant 0 : index
    %c0_108 = arith.constant 0 : index
    %193 = vector.load %arg15[%c0_106, %c0_107, %c0_108] : memref<4x8x8xf32, #tpu.memory_space<vmem>>, vector<1x8x8xf32>
    %194 = vector.shape_cast %193 : vector<1x8x8xf32> to vector<8x8xf32>
    %195 = vector.shape_cast %192 : vector<8x8xf32> to vector<1x8x8xf32>
    tpu.vector_store %arg15[%c0_106, %c0_107, %c0_108], %195 {strides = array<i32>} : memref<4x8x8xf32, #tpu.memory_space<vmem>>, vector<1x8x8xf32>,
    %196 = vector.extract_strided_slice %191 {offsets = [0, 32], sizes = [8, 8], strides = [1, 1]} : vector<8x96xf32> to vector<8x8xf32>
    %c0_109 = arith.constant 0 : index
    %c0_110 = arith.constant 0 : index
    %c0_111 = arith.constant 0 : index
    %197 = vector.load %arg16[%c0_109, %c0_110, %c0_111] : memref<4x8x8xf32, #tpu.memory_space<vmem>>, vector<1x8x8xf32>
    %198 = vector.shape_cast %197 : vector<1x8x8xf32> to vector<8x8xf32>
    %199 = vector.shape_cast %196 : vector<8x8xf32> to vector<1x8x8xf32>
    tpu.vector_store %arg16[%c0_109, %c0_110, %c0_111], %199 {strides = array<i32>} : memref<4x8x8xf32, #tpu.memory_space<vmem>>, vector<1x8x8xf32>,
    %200 = vector.extract_strided_slice %191 {offsets = [0, 64], sizes = [8, 8], strides = [1, 1]} : vector<8x96xf32> to vector<8x8xf32>
    %c0_112 = arith.constant 0 : index
    %c0_113 = arith.constant 0 : index
    %c0_114 = arith.constant 0 : index
    %201 = vector.load %arg17[%c0_112, %c0_113, %c0_114] : memref<4x8x8xf32, #tpu.memory_space<vmem>>, vector<1x8x8xf32>
    %202 = vector.shape_cast %201 : vector<1x8x8xf32> to vector<8x8xf32>
    %203 = vector.shape_cast %200 : vector<8x8xf32> to vector<1x8x8xf32>
    tpu.vector_store %arg17[%c0_112, %c0_113, %c0_114], %203 {strides = array<i32>} : memref<4x8x8xf32, #tpu.memory_space<vmem>>, vector<1x8x8xf32>,
    %204 = vector.extract_strided_slice %191 {offsets = [0, 8], sizes = [8, 8], strides = [1, 1]} : vector<8x96xf32> to vector<8x8xf32>
    %c1_115 = arith.constant 1 : index
    %c0_116 = arith.constant 0 : index
    %c0_117 = arith.constant 0 : index
    %205 = vector.load %arg15[%c1_115, %c0_116, %c0_117] : memref<4x8x8xf32, #tpu.memory_space<vmem>>, vector<1x8x8xf32>
    %206 = vector.shape_cast %205 : vector<1x8x8xf32> to vector<8x8xf32>
    %207 = vector.shape_cast %204 : vector<8x8xf32> to vector<1x8x8xf32>
    tpu.vector_store %arg15[%c1_115, %c0_116, %c0_117], %207 {strides = array<i32>} : memref<4x8x8xf32, #tpu.memory_space<vmem>>, vector<1x8x8xf32>,
    %208 = vector.extract_strided_slice %191 {offsets = [0, 40], sizes = [8, 8], strides = [1, 1]} : vector<8x96xf32> to vector<8x8xf32>
    %c1_118 = arith.constant 1 : index
    %c0_119 = arith.constant 0 : index
    %c0_120 = arith.constant 0 : index
    %209 = vector.load %arg16[%c1_118, %c0_119, %c0_120] : memref<4x8x8xf32, #tpu.memory_space<vmem>>, vector<1x8x8xf32>
    %210 = vector.shape_cast %209 : vector<1x8x8xf32> to vector<8x8xf32>
    %211 = vector.shape_cast %208 : vector<8x8xf32> to vector<1x8x8xf32>
    tpu.vector_store %arg16[%c1_118, %c0_119, %c0_120], %211 {strides = array<i32>} : memref<4x8x8xf32, #tpu.memory_space<vmem>>, vector<1x8x8xf32>,
    %212 = vector.extract_strided_slice %191 {offsets = [0, 72], sizes = [8, 8], strides = [1, 1]} : vector<8x96xf32> to vector<8x8xf32>
    %c1_121 = arith.constant 1 : index
    %c0_122 = arith.constant 0 : index
    %c0_123 = arith.constant 0 : index
    %213 = vector.load %arg17[%c1_121, %c0_122, %c0_123] : memref<4x8x8xf32, #tpu.memory_space<vmem>>, vector<1x8x8xf32>
    %214 = vector.shape_cast %213 : vector<1x8x8xf32> to vector<8x8xf32>
    %215 = vector.shape_cast %212 : vector<8x8xf32> to vector<1x8x8xf32>
    tpu.vector_store %arg17[%c1_121, %c0_122, %c0_123], %215 {strides = array<i32>} : memref<4x8x8xf32, #tpu.memory_space<vmem>>, vector<1x8x8xf32>,
    %216 = vector.extract_strided_slice %191 {offsets = [0, 16], sizes = [8, 8], strides = [1, 1]} : vector<8x96xf32> to vector<8x8xf32>
    %c2_124 = arith.constant 2 : index
    %c0_125 = arith.constant 0 : index
    %c0_126 = arith.constant 0 : index
    %217 = vector.load %arg15[%c2_124, %c0_125, %c0_126] : memref<4x8x8xf32, #tpu.memory_space<vmem>>, vector<1x8x8xf32>
    %218 = vector.shape_cast %217 : vector<1x8x8xf32> to vector<8x8xf32>
    %219 = vector.shape_cast %216 : vector<8x8xf32> to vector<1x8x8xf32>
    tpu.vector_store %arg15[%c2_124, %c0_125, %c0_126], %219 {strides = array<i32>} : memref<4x8x8xf32, #tpu.memory_space<vmem>>, vector<1x8x8xf32>,
    %220 = vector.extract_strided_slice %191 {offsets = [0, 48], sizes = [8, 8], strides = [1, 1]} : vector<8x96xf32> to vector<8x8xf32>
    %c2_127 = arith.constant 2 : index
    %c0_128 = arith.constant 0 : index
    %c0_129 = arith.constant 0 : index
    %221 = vector.load %arg16[%c2_127, %c0_128, %c0_129] : memref<4x8x8xf32, #tpu.memory_space<vmem>>, vector<1x8x8xf32>
    %222 = vector.shape_cast %221 : vector<1x8x8xf32> to vector<8x8xf32>
    %223 = vector.shape_cast %220 : vector<8x8xf32> to vector<1x8x8xf32>
    tpu.vector_store %arg16[%c2_127, %c0_128, %c0_129], %223 {strides = array<i32>} : memref<4x8x8xf32, #tpu.memory_space<vmem>>, vector<1x8x8xf32>,
    %224 = vector.extract_strided_slice %191 {offsets = [0, 80], sizes = [8, 8], strides = [1, 1]} : vector<8x96xf32> to vector<8x8xf32>
    %c2_130 = arith.constant 2 : index
    %c0_131 = arith.constant 0 : index
    %c0_132 = arith.constant 0 : index
    %225 = vector.load %arg17[%c2_130, %c0_131, %c0_132] : memref<4x8x8xf32, #tpu.memory_space<vmem>>, vector<1x8x8xf32>
    %226 = vector.shape_cast %225 : vector<1x8x8xf32> to vector<8x8xf32>
    %227 = vector.shape_cast %224 : vector<8x8xf32> to vector<1x8x8xf32>
    tpu.vector_store %arg17[%c2_130, %c0_131, %c0_132], %227 {strides = array<i32>} : memref<4x8x8xf32, #tpu.memory_space<vmem>>, vector<1x8x8xf32>,
    %228 = vector.extract_strided_slice %191 {offsets = [0, 24], sizes = [8, 8], strides = [1, 1]} : vector<8x96xf32> to vector<8x8xf32>
    %c3_133 = arith.constant 3 : index
    %c0_134 = arith.constant 0 : index
    %c0_135 = arith.constant 0 : index
    %229 = vector.load %arg15[%c3_133, %c0_134, %c0_135] : memref<4x8x8xf32, #tpu.memory_space<vmem>>, vector<1x8x8xf32>
    %230 = vector.shape_cast %229 : vector<1x8x8xf32> to vector<8x8xf32>
    %231 = vector.shape_cast %228 : vector<8x8xf32> to vector<1x8x8xf32>
    tpu.vector_store %arg15[%c3_133, %c0_134, %c0_135], %231 {strides = array<i32>} : memref<4x8x8xf32, #tpu.memory_space<vmem>>, vector<1x8x8xf32>,
    %232 = vector.extract_strided_slice %191 {offsets = [0, 56], sizes = [8, 8], strides = [1, 1]} : vector<8x96xf32> to vector<8x8xf32>
    %c3_136 = arith.constant 3 : index
    %c0_137 = arith.constant 0 : index
    %c0_138 = arith.constant 0 : index
    %233 = vector.load %arg16[%c3_136, %c0_137, %c0_138] : memref<4x8x8xf32, #tpu.memory_space<vmem>>, vector<1x8x8xf32>
    %234 = vector.shape_cast %233 : vector<1x8x8xf32> to vector<8x8xf32>
    %235 = vector.shape_cast %232 : vector<8x8xf32> to vector<1x8x8xf32>
    tpu.vector_store %arg16[%c3_136, %c0_137, %c0_138], %235 {strides = array<i32>} : memref<4x8x8xf32, #tpu.memory_space<vmem>>, vector<1x8x8xf32>,
    %236 = vector.extract_strided_slice %191 {offsets = [0, 88], sizes = [8, 8], strides = [1, 1]} : vector<8x96xf32> to vector<8x8xf32>
    %c3_139 = arith.constant 3 : index
    %c0_140 = arith.constant 0 : index
    %c0_141 = arith.constant 0 : index
    %237 = vector.load %arg17[%c3_139, %c0_140, %c0_141] : memref<4x8x8xf32, #tpu.memory_space<vmem>>, vector<1x8x8xf32>
    %238 = vector.shape_cast %237 : vector<1x8x8xf32> to vector<8x8xf32>
    %239 = vector.shape_cast %236 : vector<8x8xf32> to vector<1x8x8xf32>
    tpu.vector_store %arg17[%c3_139, %c0_140, %c0_141], %239 {strides = array<i32>} : memref<4x8x8xf32, #tpu.memory_space<vmem>>, vector<1x8x8xf32>,
    %c0_142 = arith.constant 0 : index
    %c0_143 = arith.constant 0 : index
    %c0_144 = arith.constant 0 : index
    %240 = vector.load %arg15[%c0_142, %c0_143, %c0_144] : memref<4x8x8xf32, #tpu.memory_space<vmem>>, vector<4x8x8xf32>
    %c0_145 = arith.constant 0 : index
    %c0_146 = arith.constant 0 : index
    %c0_147 = arith.constant 0 : index
    %241 = vector.load %arg16[%c0_145, %c0_146, %c0_147] : memref<4x8x8xf32, #tpu.memory_space<vmem>>, vector<4x8x8xf32>
    %c0_148 = arith.constant 0 : index
    %c0_149 = arith.constant 0 : index
    %c0_150 = arith.constant 0 : index
    %242 = vector.load %arg17[%c0_148, %c0_149, %c0_150] : memref<4x8x8xf32, #tpu.memory_space<vmem>>, vector<4x8x8xf32>
    "tpu.trace_start"() <{level = 10 : i32, message = "hqd,hkd->hqk"}> : () -> ()
    %cst_151 = arith.constant dense<0.000000e+00> : vector<4x8x8xf32>
    %243 = tpu.matmul %240, %241, %cst_151 {dimension_numbers = #tpu.dot_dimension_numbers<[2], [2], [1], [1], [0, 0, 0, 1, 1, 1], [0], [0]>} : vector<4x8x8xf32>, vector<4x8x8xf32>, vector<4x8x8xf32> -> vector<4x8x8xf32>
    "tpu.trace_stop"() : () -> ()
    %cst_152 = arith.constant dense<0xFF800000> : vector<4x8xf32>
    %244 = vector.multi_reduction <maximumf>, %243, %cst_152 [2] : vector<4x8x8xf32> to vector<4x8xf32>
    %245 = vector.shape_cast %244 : vector<4x8xf32> to vector<4x8x1xf32>
    %246 = vector.broadcast %245 : vector<4x8x1xf32> to vector<4x8x8xf32>
    %247 = arith.subf %243, %246 : vector<4x8x8xf32>
    %248 = math.exp %247 : vector<4x8x8xf32>
    %cst_153 = arith.constant dense<0.000000e+00> : vector<4x8xf32>
    %249 = vector.multi_reduction <add>, %248, %cst_153 [2] : vector<4x8x8xf32> to vector<4x8xf32>
    %250 = vector.shape_cast %249 : vector<4x8xf32> to vector<4x8x1xf32>
    %251 = tpu.reciprocal %250 {approx = true} : vector<4x8x1xf32> -> vector<4x8x1xf32>
    %252 = vector.broadcast %251 : vector<4x8x1xf32> to vector<4x8x8xf32>
    %253 = arith.mulf %248, %252 : vector<4x8x8xf32>
    "tpu.trace_start"() <{level = 10 : i32, message = "hqk,hkd->hqd"}> : () -> ()
    %cst_154 = arith.constant dense<0.000000e+00> : vector<4x8x8xf32>
    %254 = tpu.matmul %253, %242, %cst_154 {dimension_numbers = #tpu.dot_dimension_numbers<[2], [1], [1], [2], [0, 0, 0, 1, 1, 2], [0], [0]>} : vector<4x8x8xf32>, vector<4x8x8xf32>, vector<4x8x8xf32> -> vector<4x8x8xf32>
    "tpu.trace_stop"() : () -> ()
    %c1_155 = arith.constant 1 : index
    %c0_156 = arith.constant 0 : index
    %c0_157 = arith.constant 0 : index
    %c0_158 = arith.constant 0 : index
    %255 = vector.load %arg7[%c1_155, %c0_156, %c0_157, %c0_158] : memref<2x4x8x32xf32, #tpu.memory_space<vmem>>, vector<1x4x8x32xf32>
    %256 = vector.shape_cast %255 : vector<1x4x8x32xf32> to vector<4x8x32xf32>
    "tpu.trace_start"() <{level = 10 : i32, message = "hqd,hde->hqe"}> : () -> ()
    %cst_159 = arith.constant dense<0.000000e+00> : vector<4x8x32xf32>
    %257 = tpu.matmul %254, %256, %cst_159 {dimension_numbers = #tpu.dot_dimension_numbers<[2], [1], [1], [2], [0, 0, 0, 1, 1, 2], [0], [0]>} : vector<4x8x8xf32>, vector<4x8x32xf32>, vector<4x8x32xf32> -> vector<4x8x32xf32>
    "tpu.trace_stop"() : () -> ()
    %cst_160 = arith.constant dense<0.000000e+00> : vector<8x32xf32>
    %258 = vector.multi_reduction <add>, %257, %cst_160 [0] : vector<4x8x32xf32> to vector<8x32xf32>
    %259 = arith.addf %162, %258 : vector<8x32xf32>
    %260 = vector.extract_strided_slice %164 {offsets = [4, 0], sizes = [1, 32], strides = [1, 1]} : vector<8x32xf32> to vector<1x32xf32>
    %261 = vector.broadcast %260 : vector<1x32xf32> to vector<8x32xf32>
    %262 = arith.addf %259, %261 : vector<8x32xf32>
    %263 = vector.extract_strided_slice %164 {offsets = [2, 0], sizes = [1, 32], strides = [1, 1]} : vector<8x32xf32> to vector<1x32xf32>
    %264 = vector.extract_strided_slice %164 {offsets = [3, 0], sizes = [1, 32], strides = [1, 1]} : vector<8x32xf32> to vector<1x32xf32>
    %cst_161 = arith.constant dense<0.000000e+00> : vector<8xf32>
    %265 = vector.multi_reduction <add>, %262, %cst_161 [1] : vector<8x32xf32> to vector<8xf32>
    %266 = vector.shape_cast %265 : vector<8xf32> to vector<8x1xf32>
    %cst_162 = arith.constant 3.200000e+01 : f32
    %267 = vector.broadcast %cst_162 : f32 to vector<8x1xf32>
    %268 = arith.divf %266, %267 : vector<8x1xf32>
    %269 = vector.broadcast %268 : vector<8x1xf32> to vector<8x32xf32>
    %270 = arith.subf %262, %269 : vector<8x32xf32>
    %271 = arith.mulf %270, %270 : vector<8x32xf32>
    %cst_163 = arith.constant dense<0.000000e+00> : vector<8xf32>
    %272 = vector.multi_reduction <add>, %271, %cst_163 [1] : vector<8x32xf32> to vector<8xf32>
    %273 = vector.shape_cast %272 : vector<8xf32> to vector<8x1xf32>
    %cst_164 = arith.constant 3.200000e+01 : f32
    %274 = vector.broadcast %cst_164 : f32 to vector<8x1xf32>
    %275 = arith.divf %273, %274 : vector<8x1xf32>
    %276 = vector.broadcast %268 : vector<8x1xf32> to vector<8x32xf32>
    %277 = arith.subf %262, %276 : vector<8x32xf32>
    %cst_165 = arith.constant 9.99999974E-6 : f32
    %278 = vector.broadcast %cst_165 : f32 to vector<8x1xf32>
    %279 = arith.addf %275, %278 : vector<8x1xf32>
    %280 = math.rsqrt %279 : vector<8x1xf32>
    %281 = vector.broadcast %280 : vector<8x1xf32> to vector<8x32xf32>
    %282 = arith.mulf %277, %281 : vector<8x32xf32>
    %283 = vector.broadcast %263 : vector<1x32xf32> to vector<8x32xf32>
    %284 = arith.mulf %282, %283 : vector<8x32xf32>
    %285 = vector.broadcast %264 : vector<1x32xf32> to vector<8x32xf32>
    %286 = arith.addf %284, %285 : vector<8x32xf32>
    %c1_166 = arith.constant 1 : index
    %c0_167 = arith.constant 0 : index
    %c0_168 = arith.constant 0 : index
    %287 = vector.load %arg8[%c1_166, %c0_167, %c0_168] : memref<2x32x64xf32, #tpu.memory_space<vmem>>, vector<1x32x64xf32>
    %288 = vector.shape_cast %287 : vector<1x32x64xf32> to vector<32x64xf32>
    %cst_169 = arith.constant dense<0.000000e+00> : vector<8x64xf32>
    %289 = tpu.matmul %286, %288, %cst_169 {dimension_numbers = #tpu.dot_dimension_numbers<[1], [0], [0], [1], [0, 0, 1, 1], [], []>} : vector<8x32xf32>, vector<32x64xf32>, vector<8x64xf32> -> vector<8x64xf32>
    %c1_170 = arith.constant 1 : index
    %c0_171 = arith.constant 0 : index
    %c0_172 = arith.constant 0 : index
    %290 = vector.load %arg11[%c1_170, %c0_171, %c0_172] : memref<2x1x64xf32, #tpu.memory_space<vmem>>, vector<1x1x64xf32>
    %291 = vector.shape_cast %290 : vector<1x1x64xf32> to vector<1x64xf32>
    %292 = vector.broadcast %291 : vector<1x64xf32> to vector<8x64xf32>
    %293 = arith.addf %289, %292 : vector<8x64xf32>
    %294 = arith.mulf %293, %293 : vector<8x64xf32>
    %295 = arith.mulf %293, %294 : vector<8x64xf32>
    %cst_173 = arith.constant 4.471500e-02 : f32
    %296 = vector.broadcast %cst_173 : f32 to vector<8x64xf32>
    %297 = arith.mulf %296, %295 : vector<8x64xf32>
    %298 = arith.addf %293, %297 : vector<8x64xf32>
    %cst_174 = arith.constant 0.797884583 : f32
    %299 = vector.broadcast %cst_174 : f32 to vector<8x64xf32>
    %300 = arith.mulf %299, %298 : vector<8x64xf32>
    %301 = math.tanh %300 : vector<8x64xf32>
    %cst_175 = arith.constant 1.000000e+00 : f32
    %302 = vector.broadcast %cst_175 : f32 to vector<8x64xf32>
    %303 = arith.addf %302, %301 : vector<8x64xf32>
    %cst_176 = arith.constant 5.000000e-01 : f32
    %304 = vector.broadcast %cst_176 : f32 to vector<8x64xf32>
    %305 = arith.mulf %304, %303 : vector<8x64xf32>
    %306 = arith.mulf %293, %305 : vector<8x64xf32>
    %c1_177 = arith.constant 1 : index
    %c0_178 = arith.constant 0 : index
    %c0_179 = arith.constant 0 : index
    %307 = vector.load %arg9[%c1_177, %c0_178, %c0_179] : memref<2x64x32xf32, #tpu.memory_space<vmem>>, vector<1x64x32xf32>
    %308 = vector.shape_cast %307 : vector<1x64x32xf32> to vector<64x32xf32>
    %cst_180 = arith.constant dense<0.000000e+00> : vector<8x32xf32>
    %309 = tpu.matmul %306, %308, %cst_180 {dimension_numbers = #tpu.dot_dimension_numbers<[1], [0], [0], [1], [0, 0, 1, 1], [], []>} : vector<8x64xf32>, vector<64x32xf32>, vector<8x32xf32> -> vector<8x32xf32>
    %310 = arith.addf %262, %309 : vector<8x32xf32>
    %311 = vector.extract_strided_slice %164 {offsets = [5, 0], sizes = [1, 32], strides = [1, 1]} : vector<8x32xf32> to vector<1x32xf32>
    %312 = vector.broadcast %311 : vector<1x32xf32> to vector<8x32xf32>
    %313 = arith.addf %310, %312 : vector<8x32xf32>
    %c0_181 = arith.constant 0 : index
    %c0_182 = arith.constant 0 : index
    %314 = vector.load %arg12[%c0_181, %c0_182] : memref<32x16xf32, #tpu.memory_space<vmem>>, vector<32x16xf32>
    %cst_183 = arith.constant dense<0.000000e+00> : vector<8x16xf32>
    %315 = tpu.matmul %313, %314, %cst_183 {dimension_numbers = #tpu.dot_dimension_numbers<[1], [0], [0], [1], [0, 0, 1, 1], [], []>} : vector<8x32xf32>, vector<32x16xf32>, vector<8x16xf32> -> vector<8x16xf32>
    %c0_184 = arith.constant 0 : index
    %c0_185 = arith.constant 0 : index
    %316 = vector.load %arg13[%c0_184, %c0_185] : memref<1x16xf32, #tpu.memory_space<vmem>>, vector<1x16xf32>
    %317 = vector.broadcast %316 : vector<1x16xf32> to vector<8x16xf32>
    %318 = arith.addf %315, %317 : vector<8x16xf32>
    %319 = arith.subf %318, %0 : vector<8x16xf32>
    %320 = math.absf %319 : vector<8x16xf32>
    %321 = vector.broadcast %1 : vector<8x1xf32> to vector<8x16xf32>
    %322 = arith.mulf %320, %321 : vector<8x16xf32>
    %323 = vector.shape_cast %322 : vector<8x16xf32> to vector<1x8x16xf32>
    %cst_186 = arith.constant dense<0.000000e+00> : vector<1xf32>
    %324 = vector.multi_reduction <add>, %323, %cst_186 [1, 2] : vector<1x8x16xf32> to vector<1xf32>
    %325 = vector.shape_cast %324 : vector<1xf32> to vector<1x1x1xf32>
    %326 = vector.extract %325[0, 0, 0] : f32 from vector<1x1x1xf32>
    %327 = vector.broadcast %326 : f32 to vector<1x8x128xf32>
    %c0_187 = arith.constant 0 : index
    %c0_188 = arith.constant 0 : index
    %c0_189 = arith.constant 0 : index
    %328 = vector.load %arg14[%c0_187, %c0_188, %c0_189] : memref<1x8x128xf32, #tpu.memory_space<vmem>>, vector<1x8x128xf32>
    tpu.vector_store %arg14[%c0_187, %c0_188, %c0_189], %327 {strides = array<i32>} : memref<1x8x128xf32, #tpu.memory_space<vmem>>, vector<1x8x128xf32>,
    return
  }
  func.func @transform_0(%arg0: i32) -> (i32, i32) {
    %c0_i32 = arith.constant 0 : i32
    %c0_i32_0 = arith.constant 0 : i32
    return %arg0, %c0_i32 : i32, i32
  }
  func.func @transform_1(%arg0: i32) -> (i32, i32) {
    %c0_i32 = arith.constant 0 : i32
    %c0_i32_0 = arith.constant 0 : i32
    return %arg0, %c0_i32 : i32, i32
  }
  func.func @transform_2(%arg0: i32) -> (i32, i32) {
    %c0_i32 = arith.constant 0 : i32
    %c0_i32_0 = arith.constant 0 : i32
    %c0_i32_1 = arith.constant 0 : i32
    return %c0_i32, %c0_i32_0 : i32, i32
  }
  func.func @transform_3(%arg0: i32) -> (i32, i32) {
    %c0_i32 = arith.constant 0 : i32
    %c0_i32_0 = arith.constant 0 : i32
    %c0_i32_1 = arith.constant 0 : i32
    return %c0_i32, %c0_i32_0 : i32, i32
  }
  func.func @transform_4(%arg0: i32) -> (i32, i32) {
    %c0_i32 = arith.constant 0 : i32
    %c0_i32_0 = arith.constant 0 : i32
    %c0_i32_1 = arith.constant 0 : i32
    return %c0_i32, %c0_i32_0 : i32, i32
  }
  func.func @transform_5(%arg0: i32) -> (i32, i32, i32) {
    %c0_i32 = arith.constant 0 : i32
    %c0_i32_0 = arith.constant 0 : i32
    %c0_i32_1 = arith.constant 0 : i32
    %c0_i32_2 = arith.constant 0 : i32
    return %c0_i32, %c0_i32_0, %c0_i32_1 : i32, i32, i32
  }
  func.func @transform_6(%arg0: i32) -> (i32, i32, i32, i32) {
    %c0_i32 = arith.constant 0 : i32
    %c0_i32_0 = arith.constant 0 : i32
    %c0_i32_1 = arith.constant 0 : i32
    %c0_i32_2 = arith.constant 0 : i32
    %c0_i32_3 = arith.constant 0 : i32
    return %c0_i32, %c0_i32_0, %c0_i32_1, %c0_i32_2 : i32, i32, i32, i32
  }
  func.func @transform_7(%arg0: i32) -> (i32, i32, i32) {
    %c0_i32 = arith.constant 0 : i32
    %c0_i32_0 = arith.constant 0 : i32
    %c0_i32_1 = arith.constant 0 : i32
    %c0_i32_2 = arith.constant 0 : i32
    return %c0_i32, %c0_i32_0, %c0_i32_1 : i32, i32, i32
  }
  func.func @transform_8(%arg0: i32) -> (i32, i32, i32) {
    %c0_i32 = arith.constant 0 : i32
    %c0_i32_0 = arith.constant 0 : i32
    %c0_i32_1 = arith.constant 0 : i32
    %c0_i32_2 = arith.constant 0 : i32
    return %c0_i32, %c0_i32_0, %c0_i32_1 : i32, i32, i32
  }
  func.func @transform_9(%arg0: i32) -> (i32, i32, i32) {
    %c0_i32 = arith.constant 0 : i32
    %c0_i32_0 = arith.constant 0 : i32
    %c0_i32_1 = arith.constant 0 : i32
    %c0_i32_2 = arith.constant 0 : i32
    return %c0_i32, %c0_i32_0, %c0_i32_1 : i32, i32, i32
  }
  func.func @transform_10(%arg0: i32) -> (i32, i32, i32) {
    %c0_i32 = arith.constant 0 : i32
    %c0_i32_0 = arith.constant 0 : i32
    %c0_i32_1 = arith.constant 0 : i32
    %c0_i32_2 = arith.constant 0 : i32
    return %c0_i32, %c0_i32_0, %c0_i32_1 : i32, i32, i32
  }
  func.func @transform_11(%arg0: i32) -> (i32, i32) {
    %c0_i32 = arith.constant 0 : i32
    %c0_i32_0 = arith.constant 0 : i32
    %c0_i32_1 = arith.constant 0 : i32
    return %c0_i32, %c0_i32_0 : i32, i32
  }
  func.func @transform_12(%arg0: i32) -> (i32, i32) {
    %c0_i32 = arith.constant 0 : i32
    %c0_i32_0 = arith.constant 0 : i32
    %c0_i32_1 = arith.constant 0 : i32
    return %c0_i32, %c0_i32_0 : i32, i32
  }
  func.func @transform_13(%arg0: i32) -> (i32, i32, i32) {
    %c0_i32 = arith.constant 0 : i32
    %c0_i32_0 = arith.constant 0 : i32
    %c0_i32_1 = arith.constant 0 : i32
    return %arg0, %c0_i32, %c0_i32_0 : i32, i32, i32
  }
}

</mosaic_0001>

<llo_original>
// kernel: simmim_forward.1
$region0: #{simmim_forward.1}
  #allocation0 [shape = 'u32[]', space=smem, size = 0x4, offset = 0x4, fixed_abs, tag = 'smem constant byte address 0x4 - core index']
  #allocation1 [shape = 'u32[144,128]{1,0:T(1,128)}', space=vmem, size = 0x12000, scoped, tag = 'internal scratch']
  #allocation2 [shape = 'f32[4,8,8]{2,1,0:T(8,128)}', space=vmem, size = 0x4000, scoped, tag = 'scratch operand']
  #allocation3 [shape = 'f32[4,8,8]{2,1,0:T(8,128)}', space=vmem, size = 0x4000, scoped, tag = 'scratch operand']
  #allocation4 [shape = 'f32[4,8,8]{2,1,0:T(8,128)}', space=vmem, size = 0x4000, scoped, tag = 'scratch operand']
  %s0 = inlined_call_operand.vmem [shape: f32[16,16], index: 0, kind: input, shape index: {}]
  %s1 = inlined_call_operand.vmem [shape: f32[16,1], index: 1, kind: input, shape index: {}]
  %s2 = inlined_call_operand.vmem [shape: f32[8,32], index: 2, kind: input, shape index: {}]
  %s3 = inlined_call_operand.vmem [shape: f32[8,32], index: 3, kind: input, shape index: {}]
  %s4 = inlined_call_operand.vmem [shape: f32[16,32], index: 4, kind: input, shape index: {}]
  %s5 = inlined_call_operand.vmem [shape: f32[2,32,96], index: 5, kind: input, shape index: {}]
  %s6 = inlined_call_operand.vmem [shape: f32[2,4,8,32], index: 6, kind: input, shape index: {}]
  %s7 = inlined_call_operand.vmem [shape: f32[2,32,64], index: 7, kind: input, shape index: {}]
  %s8 = inlined_call_operand.vmem [shape: f32[2,64,32], index: 8, kind: input, shape index: {}]
  %s9 = inlined_call_operand.vmem [shape: f32[2,8,32], index: 9, kind: input, shape index: {}]
  %s10 = inlined_call_operand.vmem [shape: f32[2,1,64], index: 10, kind: input, shape index: {}]
  %s11 = inlined_call_operand.vmem [shape: f32[32,16], index: 11, kind: input, shape index: {}]
  %s12 = inlined_call_operand.vmem [shape: f32[1,16], index: 12, kind: input, shape index: {}]
  %s13 = inlined_call_operand.vmem [shape: f32[2,8,128], index: 13, kind: output, shape index: {}]
  %s14 = sld [smem:[#allocation0]]
  $region85: #{simmim_forward.1} parent=0
    _
  %s16 = ssub.s32 1, %s14
  %s17 = scalar_select 0, %s16, %s14
  loop: start=0, step=1, limit=4
  $region2: #{simmim_forward.1} parent=0 // loop_pre_header
    _
  $region3: #{simmim_forward.1} parent=0 // loop_header
    %s19 = sphi 0, %s23
    %p20 = scmp.ge.s32.totalorder %s19, 4
    %s29 = sphi 0, %s31
    %s32 = sphi 0, %s29
    %s33 = sphi 0, %s32
    %s49 = sphi 0, %s33
    %s55 = sphi 0, %s57
    %s58 = sphi 0, %s55
    %s59 = sphi 0, %s58
    %s75 = sphi 0, %s59
    %s79 = sphi 0, %s79
    %s81 = sphi 0, %s79
    %s82 = sphi 0, %s81
    %s96 = sphi 0, %s82
    %s100 = sphi 0, %s100
    %s102 = sphi 0, %s100
    %s103 = sphi 0, %s102
    %s117 = sphi 0, %s103
    %s121 = sphi 0, %s121
    %s123 = sphi 0, %s121
    %s124 = sphi 0, %s123
    %s138 = sphi 0, %s124
    %s142 = sphi 0, %s142
    %s144 = sphi 0, %s142
    %s145 = sphi 0, %s144
    %s159 = sphi 0, %s145
    %s163 = sphi 0, %s163
    %s165 = sphi 0, %s163
    %s166 = sphi 0, %s165
    %s180 = sphi 0, %s166
    %s184 = sphi 0, %s184
    %s186 = sphi 0, %s184
    %s187 = sphi 0, %s186
    %s201 = sphi 0, %s187
    %s205 = sphi 0, %s205
    %s207 = sphi 0, %s205
    %s208 = sphi 0, %s207
    %s222 = sphi 0, %s208
    %s226 = sphi 0, %s226
    %s228 = sphi 0, %s226
    %s229 = sphi 0, %s228
    %s243 = sphi 0, %s229
    %s247 = sphi 0, %s247
    %s249 = sphi 0, %s247
    %s250 = sphi 0, %s249
    %s264 = sphi 0, %s250
    %s268 = sphi 0, %s268
    %s270 = sphi 0, %s268
    %s271 = sphi 0, %s270
    %s285 = sphi 0, %s271
    %s289 = sphi 0, %s289
    %s291 = sphi 0, %s289
    %s292 = sphi 0, %s291
    %s306 = sphi 0, %s292
    %s312 = sphi 0, %s314
    %s315 = sphi 0, %s312
    %s316 = sphi 0, %s315
    %s332 = sphi 0, %s316
  $region4: #{simmim_forward.1} parent=0 // loop_header_branch
    %22 = sbr.rel (%p20) target = $region8
  $region5: #{simmim_forward.1} parent=0 // loop_body
    %s24 = ssub.s32 %s19, 1
    %s25 = ssub.s32 %s19, 2
    %s26 = sadd.s32 %s19, 1
    %s27 = ssub.s32 %s19, %s26
    %p28 = scmp.eq.s32.totalorder %s27, 0
    %s30 = sadd.s32 %s29, 1
    %s31 = scalar_select %p28, %s29, %s30
    %p34 = pneg %p28
    %p35 = scmp.eq.s32.totalorder %s19, 1
    %p36 = por %p34, %p35
    %p37 = scmp.ne.s32.totalorder %s29, %s32
    %p38 = scmp.eq.s32.totalorder %s19, 0
    %p39 = por %p37, %p38
    %p40 = scmp.ne.s32.totalorder %s29, %s32
    %p41 = scmp.eq.s32.totalorder %s24, 1
    %p42 = por %p40, %p41
    %p43 = scmp.ne.s32.totalorder %s32, %s33
    %p44 = scmp.eq.s32.totalorder %s24, 0
    %p45 = por %p43, %p44
    %p46 = scmp.ne.s32.totalorder %s32, %s33
    %p47 = scmp.eq.s32.totalorder %s25, 1
    %p48 = por %p46, %p47
    %p50 = scmp.ne.s32.totalorder %s33, %s49
    %p51 = scmp.eq.s32.totalorder %s25, 0
    %p52 = por %p50, %p51
    %s53 = ssub.s32 %s19, %s26
    %p54 = scmp.eq.s32.totalorder %s53, 0
    %s56 = sadd.s32 %s55, 1
    %s57 = scalar_select %p54, %s55, %s56
    %p60 = pneg %p54
    %p61 = scmp.eq.s32.totalorder %s19, 1
    %p62 = por %p60, %p61
    %p63 = scmp.ne.s32.totalorder %s55, %s58
    %p64 = scmp.eq.s32.totalorder %s19, 0
    %p65 = por %p63, %p64
    %p66 = scmp.ne.s32.totalorder %s55, %s58
    %p67 = scmp.eq.s32.totalorder %s24, 1
    %p68 = por %p66, %p67
    %p69 = scmp.ne.s32.totalorder %s58, %s59
    %p70 = scmp.eq.s32.totalorder %s24, 0
    %p71 = por %p69, %p70
    %p72 = scmp.ne.s32.totalorder %s58, %s59
    %p73 = scmp.eq.s32.totalorder %s25, 1
    %p74 = por %p72, %p73
    %p76 = scmp.ne.s32.totalorder %s59, %s75
    %p77 = scmp.eq.s32.totalorder %s25, 0
    %p78 = por %p76, %p77
    %s80 = sadd.s32 %s79, 1
    %p83 = scmp.eq.s32.totalorder %s19, 1
    %p84 = scmp.ne.s32.totalorder %s79, %s81
    %p85 = scmp.eq.s32.totalorder %s19, 0
    %p86 = por %p84, %p85
    %p87 = scmp.ne.s32.totalorder %s79, %s81
    %p88 = scmp.eq.s32.totalorder %s24, 1
    %p89 = por %p87, %p88
    %p90 = scmp.ne.s32.totalorder %s81, %s82
    %p91 = scmp.eq.s32.totalorder %s24, 0
    %p92 = por %p90, %p91
    %p93 = scmp.ne.s32.totalorder %s81, %s82
    %p94 = scmp.eq.s32.totalorder %s25, 1
    %p95 = por %p93, %p94
    %p97 = scmp.ne.s32.totalorder %s82, %s96
    %p98 = scmp.eq.s32.totalorder %s25, 0
    %p99 = por %p97, %p98
    %s101 = sadd.s32 %s100, 1
    %p104 = scmp.eq.s32.totalorder %s19, 1
    %p105 = scmp.ne.s32.totalorder %s100, %s102
    %p106 = scmp.eq.s32.totalorder %s19, 0
    %p107 = por %p105, %p106
    %p108 = scmp.ne.s32.totalorder %s100, %s102
    %p109 = scmp.eq.s32.totalorder %s24, 1
    %p110 = por %p108, %p109
    %p111 = scmp.ne.s32.totalorder %s102, %s103
    %p112 = scmp.eq.s32.totalorder %s24, 0
    %p113 = por %p111, %p112
    %p114 = scmp.ne.s32.totalorder %s102, %s103
    %p115 = scmp.eq.s32.totalorder %s25, 1
    %p116 = por %p114, %p115
    %p118 = scmp.ne.s32.totalorder %s103, %s117
    %p119 = scmp.eq.s32.totalorder %s25, 0
    %p120 = por %p118, %p119
    %s122 = sadd.s32 %s121, 1
    %p125 = scmp.eq.s32.totalorder %s19, 1
    %p126 = scmp.ne.s32.totalorder %s121, %s123
    %p127 = scmp.eq.s32.totalorder %s19, 0
    %p128 = por %p126, %p127
    %p129 = scmp.ne.s32.totalorder %s121, %s123
    %p130 = scmp.eq.s32.totalorder %s24, 1
    %p131 = por %p129, %p130
    %p132 = scmp.ne.s32.totalorder %s123, %s124
    %p133 = scmp.eq.s32.totalorder %s24, 0
    %p134 = por %p132, %p133
    %p135 = scmp.ne.s32.totalorder %s123, %s124
    %p136 = scmp.eq.s32.totalorder %s25, 1
    %p137 = por %p135, %p136
    %p139 = scmp.ne.s32.totalorder %s124, %s138
    %p140 = scmp.eq.s32.totalorder %s25, 0
    %p141 = por %p139, %p140
    %s143 = sadd.s32 %s142, 1
    %p146 = scmp.eq.s32.totalorder %s19, 1
    %p147 = scmp.ne.s32.totalorder %s142, %s144
    %p148 = scmp.eq.s32.totalorder %s19, 0
    %p149 = por %p147, %p148
    %p150 = scmp.ne.s32.totalorder %s142, %s144
    %p151 = scmp.eq.s32.totalorder %s24, 1
    %p152 = por %p150, %p151
    %p153 = scmp.ne.s32.totalorder %s144, %s145
    %p154 = scmp.eq.s32.totalorder %s24, 0
    %p155 = por %p153, %p154
    %p156 = scmp.ne.s32.totalorder %s144, %s145
    %p157 = scmp.eq.s32.totalorder %s25, 1
    %p158 = por %p156, %p157
    %p160 = scmp.ne.s32.totalorder %s145, %s159
    %p161 = scmp.eq.s32.totalorder %s25, 0
    %p162 = por %p160, %p161
    %s164 = sadd.s32 %s163, 1
    %p167 = scmp.eq.s32.totalorder %s19, 1
    %p168 = scmp.ne.s32.totalorder %s163, %s165
    %p169 = scmp.eq.s32.totalorder %s19, 0
    %p170 = por %p168, %p169
    %p171 = scmp.ne.s32.totalorder %s163, %s165
    %p172 = scmp.eq.s32.totalorder %s24, 1
    %p173 = por %p171, %p172
    %p174 = scmp.ne.s32.totalorder %s165, %s166
    %p175 = scmp.eq.s32.totalorder %s24, 0
    %p176 = por %p174, %p175
    %p177 = scmp.ne.s32.totalorder %s165, %s166
    %p178 = scmp.eq.s32.totalorder %s25, 1
    %p179 = por %p177, %p178
    %p181 = scmp.ne.s32.totalorder %s166, %s180
    %p182 = scmp.eq.s32.totalorder %s25, 0
    %p183 = por %p181, %p182
    %s185 = sadd.s32 %s184, 1
    %p188 = scmp.eq.s32.totalorder %s19, 1
    %p189 = scmp.ne.s32.totalorder %s184, %s186
    %p190 = scmp.eq.s32.totalorder %s19, 0
    %p191 = por %p189, %p190
    %p192 = scmp.ne.s32.totalorder %s184, %s186
    %p193 = scmp.eq.s32.totalorder %s24, 1
    %p194 = por %p192, %p193
    %p195 = scmp.ne.s32.totalorder %s186, %s187
    %p196 = scmp.eq.s32.totalorder %s24, 0
    %p197 = por %p195, %p196
    %p198 = scmp.ne.s32.totalorder %s186, %s187
    %p199 = scmp.eq.s32.totalorder %s25, 1
    %p200 = por %p198, %p199
    %p202 = scmp.ne.s32.totalorder %s187, %s201
    %p203 = scmp.eq.s32.totalorder %s25, 0
    %p204 = por %p202, %p203
    %s206 = sadd.s32 %s205, 1
    %p209 = scmp.eq.s32.totalorder %s19, 1
    %p210 = scmp.ne.s32.totalorder %s205, %s207
    %p211 = scmp.eq.s32.totalorder %s19, 0
    %p212 = por %p210, %p211
    %p213 = scmp.ne.s32.totalorder %s205, %s207
    %p214 = scmp.eq.s32.totalorder %s24, 1
    %p215 = por %p213, %p214
    %p216 = scmp.ne.s32.totalorder %s207, %s208
    %p217 = scmp.eq.s32.totalorder %s24, 0
    %p218 = por %p216, %p217
    %p219 = scmp.ne.s32.totalorder %s207, %s208
    %p220 = scmp.eq.s32.totalorder %s25, 1
    %p221 = por %p219, %p220
    %p223 = scmp.ne.s32.totalorder %s208, %s222
    %p224 = scmp.eq.s32.totalorder %s25, 0
    %p225 = por %p223, %p224
    %s227 = sadd.s32 %s226, 1
    %p230 = scmp.eq.s32.totalorder %s19, 1
    %p231 = scmp.ne.s32.totalorder %s226, %s228
    %p232 = scmp.eq.s32.totalorder %s19, 0
    %p233 = por %p231, %p232
    %p234 = scmp.ne.s32.totalorder %s226, %s228
    %p235 = scmp.eq.s32.totalorder %s24, 1
    %p236 = por %p234, %p235
    %p237 = scmp.ne.s32.totalorder %s228, %s229
    %p238 = scmp.eq.s32.totalorder %s24, 0
    %p239 = por %p237, %p238
    %p240 = scmp.ne.s32.totalorder %s228, %s229
    %p241 = scmp.eq.s32.totalorder %s25, 1
    %p242 = por %p240, %p241
    %p244 = scmp.ne.s32.totalorder %s229, %s243
    %p245 = scmp.eq.s32.totalorder %s25, 0
    %p246 = por %p244, %p245
    %s248 = sadd.s32 %s247, 1
    %p251 = scmp.eq.s32.totalorder %s19, 1
    %p252 = scmp.ne.s32.totalorder %s247, %s249
    %p253 = scmp.eq.s32.totalorder %s19, 0
    %p254 = por %p252, %p253
    %p255 = scmp.ne.s32.totalorder %s247, %s249
    %p256 = scmp.eq.s32.totalorder %s24, 1
    %p257 = por %p255, %p256
    %p258 = scmp.ne.s32.totalorder %s249, %s250
    %p259 = scmp.eq.s32.totalorder %s24, 0
    %p260 = por %p258, %p259
    %p261 = scmp.ne.s32.totalorder %s249, %s250
    %p262 = scmp.eq.s32.totalorder %s25, 1
    %p263 = por %p261, %p262
    %p265 = scmp.ne.s32.totalorder %s250, %s264
    %p266 = scmp.eq.s32.totalorder %s25, 0
    %p267 = por %p265, %p266
    %s269 = sadd.s32 %s268, 1
    %p272 = scmp.eq.s32.totalorder %s19, 1
    %p273 = scmp.ne.s32.totalorder %s268, %s270
    %p274 = scmp.eq.s32.totalorder %s19, 0
    %p275 = por %p273, %p274
    %p276 = scmp.ne.s32.totalorder %s268, %s270
    %p277 = scmp.eq.s32.totalorder %s24, 1
    %p278 = por %p276, %p277
    %p279 = scmp.ne.s32.totalorder %s270, %s271
    %p280 = scmp.eq.s32.totalorder %s24, 0
    %p281 = por %p279, %p280
    %p282 = scmp.ne.s32.totalorder %s270, %s271
    %p283 = scmp.eq.s32.totalorder %s25, 1
    %p284 = por %p282, %p283
    %p286 = scmp.ne.s32.totalorder %s271, %s285
    %p287 = scmp.eq.s32.totalorder %s25, 0
    %p288 = por %p286, %p287
    %s290 = sadd.s32 %s289, 1
    %p293 = scmp.eq.s32.totalorder %s19, 1
    %p294 = scmp.ne.s32.totalorder %s289, %s291
    %p295 = scmp.eq.s32.totalorder %s19, 0
    %p296 = por %p294, %p295
    %p297 = scmp.ne.s32.totalorder %s289, %s291
    %p298 = scmp.eq.s32.totalorder %s24, 1
    %p299 = por %p297, %p298
    %p300 = scmp.ne.s32.totalorder %s291, %s292
    %p301 = scmp.eq.s32.totalorder %s24, 0
    %p302 = por %p300, %p301
    %p303 = scmp.ne.s32.totalorder %s291, %s292
    %p304 = scmp.eq.s32.totalorder %s25, 1
    %p305 = por %p303, %p304
    %p307 = scmp.ne.s32.totalorder %s292, %s306
    %p308 = scmp.eq.s32.totalorder %s25, 0
    %p309 = por %p307, %p308
    %s310 = ssub.s32 %s19, %s26
    %p311 = scmp.eq.s32.totalorder %s310, 0
    %s313 = sadd.s32 %s312, 1
    %s314 = scalar_select %p311, %s312, %s313
    %p317 = pneg %p311
    %p318 = scmp.eq.s32.totalorder %s19, 1
    %p319 = por %p317, %p318
    %p320 = scmp.ne.s32.totalorder %s312, %s315
    %p321 = scmp.eq.s32.totalorder %s19, 0
    %p322 = por %p320, %p321
    %p323 = scmp.ne.s32.totalorder %s312, %s315
    %p324 = scmp.eq.s32.totalorder %s24, 1
    %p325 = por %p323, %p324
    %p326 = scmp.ne.s32.totalorder %s315, %s316
    %p327 = scmp.eq.s32.totalorder %s24, 0
    %p328 = por %p326, %p327
    %p329 = scmp.ne.s32.totalorder %s315, %s316
    %p330 = scmp.eq.s32.totalorder %s25, 1
    %p331 = por %p329, %p330
    %p333 = scmp.ne.s32.totalorder %s316, %s332
    %p334 = scmp.eq.s32.totalorder %s25, 0
    %p335 = por %p333, %p334
    %p336 = scmp.le.s32.totalorder 1, %s19
    %p337 = scmp.lt.s32.totalorder %s19, 3
    %p338 = pnand %p336, %p337
    %p339 = pneg %p338
    // Predicated region
    $region9: #{simmim_forward.1} parent=5 // pred_check
      _
    $region10: #{simmim_forward.1} parent=5 // pred_check_branch
      %341 = sbr.rel (%p338) target = $region12
    $region11: #{simmim_forward.1} parent=5 // pred_region
      %s342 = ssub.s32 %s19, 1
      // Predicated region
      $region13: #{simmim_forward.1} parent=11 // pred_check
        %p343 = pneg %p92
      $region14: #{simmim_forward.1} parent=11 // pred_check_branch
        %345 = sbr.rel (%p343) target = $region16
      $region15: #{simmim_forward.1} parent=11 // pred_region
        _
      $region16: #{simmim_forward.1} parent=11 // pred_fallthru
        _
      // Predicated region
      $region17: #{simmim_forward.1} parent=11 // pred_check
        %p346 = pneg %p113
      $region18: #{simmim_forward.1} parent=11 // pred_check_branch
        %348 = sbr.rel (%p346) target = $region20
      $region19: #{simmim_forward.1} parent=11 // pred_region
        _
      $region20: #{simmim_forward.1} parent=11 // pred_fallthru
        _
      // Predicated region
      $region21: #{simmim_forward.1} parent=11 // pred_check
        %p349 = pneg %p134
      $region22: #{simmim_forward.1} parent=11 // pred_check_branch
        %351 = sbr.rel (%p349) target = $region24
      $region23: #{simmim_forward.1} parent=11 // pred_region
        _
      $region24: #{simmim_forward.1} parent=11 // pred_fallthru
        _
      // Predicated region
      $region25: #{simmim_forward.1} parent=11 // pred_check
        %p352 = pneg %p155
      $region26: #{simmim_forward.1} parent=11 // pred_check_branch
        %354 = sbr.rel (%p352) target = $region28
      $region27: #{simmim_forward.1} parent=11 // pred_region
        _
      $region28: #{simmim_forward.1} parent=11 // pred_fallthru
        _
      // Predicated region
      $region29: #{simmim_forward.1} parent=11 // pred_check
        %p355 = pneg %p176
      $region30: #{simmim_forward.1} parent=11 // pred_check_branch
        %357 = sbr.rel (%p355) target = $region32
      $region31: #{simmim_forward.1} parent=11 // pred_region
        _
      $region32: #{simmim_forward.1} parent=11 // pred_fallthru
        _
      // Predicated region
      $region33: #{simmim_forward.1} parent=11 // pred_check
        %p358 = pneg %p197
      $region34: #{simmim_forward.1} parent=11 // pred_check_branch
        %360 = sbr.rel (%p358) target = $region36
      $region35: #{simmim_forward.1} parent=11 // pred_region
        _
      $region36: #{simmim_forward.1} parent=11 // pred_fallthru
        _
      // Predicated region
      $region37: #{simmim_forward.1} parent=11 // pred_check
        %p361 = pneg %p218
      $region38: #{simmim_forward.1} parent=11 // pred_check_branch
        %363 = sbr.rel (%p361) target = $region40
      $region39: #{simmim_forward.1} parent=11 // pred_region
        _
      $region40: #{simmim_forward.1} parent=11 // pred_fallthru
        _
      // Predicated region
      $region41: #{simmim_forward.1} parent=11 // pred_check
        %p364 = pneg %p239
      $region42: #{simmim_forward.1} parent=11 // pred_check_branch
        %366 = sbr.rel (%p364) target = $region44
      $region43: #{simmim_forward.1} parent=11 // pred_region
        _
      $region44: #{simmim_forward.1} parent=11 // pred_fallthru
        _
      // Predicated region
      $region45: #{simmim_forward.1} parent=11 // pred_check
        %p367 = pneg %p260
      $region46: #{simmim_forward.1} parent=11 // pred_check_branch
        %369 = sbr.rel (%p367) target = $region48
      $region47: #{simmim_forward.1} parent=11 // pred_region
        _
      $region48: #{simmim_forward.1} parent=11 // pred_fallthru
        _
      // Predicated region
      $region49: #{simmim_forward.1} parent=11 // pred_check
        %p370 = pneg %p281
      $region50: #{simmim_forward.1} parent=11 // pred_check_branch
        %372 = sbr.rel (%p370) target = $region52
      $region51: #{simmim_forward.1} parent=11 // pred_region
        _
      $region52: #{simmim_forward.1} parent=11 // pred_fallthru
        _
      // Predicated region
      $region53: #{simmim_forward.1} parent=11 // pred_check
        %p373 = pneg %p302
      $region54: #{simmim_forward.1} parent=11 // pred_check_branch
        %375 = sbr.rel (%p373) target = $region56
      $region55: #{simmim_forward.1} parent=11 // pred_region
        _
      $region56: #{simmim_forward.1} parent=11 // pred_fallthru
        _
    $region12: #{simmim_forward.1} parent=5 // pred_fallthru
      _
    %p376 = scmp.lt.s32.totalorder %s19, 2
    // Predicated region
    $region57: #{simmim_forward.1} parent=5 // pred_check
      %p377 = pneg %p376
    $region58: #{simmim_forward.1} parent=5 // pred_check_branch
      %379 = sbr.rel (%p377) target = $region60
    $region59: #{simmim_forward.1} parent=5 // pred_region
      // Predicated region
      $region61: #{simmim_forward.1} parent=59 // pred_check
        %p380 = pneg %p39
      $region62: #{simmim_forward.1} parent=59 // pred_check_branch
        %382 = sbr.rel (%p380) target = $region64
      $region63: #{simmim_forward.1} parent=59 // pred_region
        %p383 = scmp.lt.s32.totalorder %s19, 1
        %s384 = scalar_select %p383, %s19, 1
        %s385 = smul.addr %s384, 8
        %s386 = scalar_lea.vmem %s0, %s385
      $region64: #{simmim_forward.1} parent=59 // pred_fallthru
        _
      // Predicated region
      $region65: #{simmim_forward.1} parent=59 // pred_check
        %p387 = pneg %p65
      $region66: #{simmim_forward.1} parent=59 // pred_check_branch
        %389 = sbr.rel (%p387) target = $region68
      $region67: #{simmim_forward.1} parent=59 // pred_region
        %p390 = scmp.lt.s32.totalorder %s19, 1
        %s391 = scalar_select %p390, %s19, 1
        %s392 = smul.addr %s391, 8
        %s393 = scalar_lea.vmem %s1, %s392
      $region68: #{simmim_forward.1} parent=59 // pred_fallthru
        _
    $region60: #{simmim_forward.1} parent=5 // pred_fallthru
      _
    %p394 = scmp.le.s32.totalorder 1, %s19
    %p395 = scmp.lt.s32.totalorder %s19, 3
    %p396 = pnand %p394, %p395
    %p397 = pneg %p396
    // Predicated region
    $region69: #{simmim_forward.1} parent=5 // pred_check
      _
    $region70: #{simmim_forward.1} parent=5 // pred_check_branch
      %399 = sbr.rel (%p396) target = $region72
    $region71: #{simmim_forward.1} parent=5 // pred_region
      %s400 = ssub.s32 %s19, 1
      %p401 = scmp.lt.s32.totalorder %s24, 1
      %s402 = scalar_select %p401, %s24, 1
      %s403 = smul.addr %s402, 8
      %s404 = scalar_lea.vmem %s0, %s403
      %p405 = pneg %p45
      %p406 = pneg %p42
      %p407 = scmp.lt.s32.totalorder %s24, 1
      %s408 = scalar_select %p407, %s24, 1
      %s409 = smul.addr %s408, 8
      %s410 = scalar_lea.vmem %s1, %s409
      %p411 = pneg %p71
      %p412 = pneg %p68
      %p413 = pneg %p92
      %p414 = pneg %p89
      %p415 = pneg %p113
      %p416 = pneg %p110
      %p417 = pneg %p134
      %p418 = pneg %p131
      %p419 = pneg %p155
      %p420 = pneg %p152
      %p421 = pneg %p176
      %p422 = pneg %p173
      %p423 = pneg %p197
      %p424 = pneg %p194
      %p425 = pneg %p218
      %p426 = pneg %p215
      %p427 = pneg %p239
      %p428 = pneg %p236
      %p429 = pneg %p260
      %p430 = pneg %p257
      %p431 = pneg %p281
      %p432 = pneg %p278
      %p433 = pneg %p302
      %p434 = pneg %p299
      %p435 = pneg %p328
      %p436 = pneg %p325
      %p437 = scmp.lt.s32.totalorder %s24, 1
      %s438 = scalar_select %p437, %s24, 1
      %s439 = smul.addr %s438, 8
      %s440 = scalar_lea.vmem %s13, %s439
      %p441 = scmp.lt.s32.totalorder %s24, 1
      %s442 = scalar_select %p441, %s24, 1
      %s443 = smul.addr %s442, 8
      %s444 = scalar_lea.vmem %s0, %s443
      %p445 = scmp.lt.s32.totalorder %s24, 1
      %s446 = scalar_select %p445, %s24, 1
      %s447 = smul.addr %s446, 8
      %s448 = scalar_lea.vmem %s1, %s447
      %p449 = scmp.lt.s32.totalorder %s24, 1
      %s450 = scalar_select %p449, %s24, 1
      %s451 = smul.addr %s450, 8
      %s452 = scalar_lea.vmem %s13, %s451
      %v453 = vld [vmem:[%s444] sm:$0xff]
      %v454 = vld [vmem:[%s448] sm:$0xff]
      %v455 = vld [vmem:[%s4] sm:$0xff]
      %v456 = vld [vmem:[%s4 + $0x8] sm:$0xff]
      %v457 = vld [vmem:[%s2] sm:$0xff]
      %vm458 = vcmask 130048
      %v460 = vsel %vm458, %v453, 0
      %462 = vmatprep.subr.mxu0 0.0
      %463 = vmatpush1.msra.mxu0 %v455
      %464 = vmatprep.subr.mxu0 0.0
      %465 = vmatpush1.msra.mxu0 %v456
      %466 = vmatprep.subr.mxu0 0.0
      %467 = vmatpush1.msra.mxu0 0.0
      %468 = vmatprep.subr.mxu0 0.0
      %469 = vmatpush1.msra.mxu0 0.0
      %470 = vmatprep.subr.mxu0 0.0
      %471 = vmatpush1.msra.mxu0 0.0
      %472 = vmatprep.subr.mxu0 0.0
      %473 = vmatpush1.msra.mxu0 0.0
      %474 = vmatprep.subr.mxu0 0.0
      %475 = vmatpush1.msra.mxu0 0.0
      %476 = vmatprep.subr.mxu0 0.0
      %477 = vmatpush1.msra.mxu0 0.0
      %478 = vmatprep.subr.mxu0 0.0
      %479 = vmatpush1.msra.mxu0 0.0
      %480 = vmatprep.subr.mxu0 0.0
      %481 = vmatpush1.msra.mxu0 0.0
      %482 = vmatprep.subr.mxu0 0.0
      %483 = vmatpush1.msra.mxu0 0.0
      %484 = vmatprep.subr.mxu0 0.0
      %485 = vmatpush1.msra.mxu0 0.0
      %486 = vmatprep.subr.mxu0 0.0
      %487 = vmatpush1.msra.mxu0 0.0
      %488 = vmatprep.subr.mxu0 0.0
      %489 = vmatpush1.msra.mxu0 0.0
      %490 = vmatprep.subr.mxu0 0.0
      %491 = vmatpush1.msra.mxu0 0.0
      %492 = vmatprep.subr.mxu0 0.0
      %493 = vmatpush1.msra.mxu0 0.0
      %494 = vmatprep.subr.mxu0 0.0
      %495 = vmatpush1.msra.mxu0 0.0
      %496 = vmatprep.subr.mxu0 0.0
      %497 = vmatpush1.msra.mxu0 0.0
      %498 = vmatprep.subr.mxu0 0.0
      %499 = vmatpush1.msra.mxu0 0.0
      %500 = vmatprep.subr.mxu0 0.0
      %501 = vmatpush1.msra.mxu0 0.0
      %502 = vmatprep.subr.mxu0 0.0
      %503 = vmatpush1.msra.mxu0 0.0
      %504 = vmatprep.subr.mxu0 0.0
      %505 = vmatpush1.msra.mxu0 0.0
      %506 = vmatprep.subr.mxu0 0.0
      %507 = vmatpush1.msra.mxu0 0.0
      %508 = vmatprep.subr.mxu0 0.0
      %509 = vmatpush1.msra.mxu0 0.0
      %510 = vmatprep.subr.mxu0 0.0
      %511 = vmatpush1.msra.mxu0 0.0
      %512 = vmatprep.subr.mxu0 0.0
      %513 = vmatpush1.msra.mxu0 0.0
      %514 = vmatprep.subr.mxu0 0.0
      %515 = vmatpush1.msra.mxu0 0.0
      %516 = vmatprep.subr.mxu0 0.0
      %517 = vmatpush1.msra.mxu0 0.0
      %518 = vmatprep.subr.mxu0 0.0
      %519 = vmatpush1.msra.mxu0 0.0
      %520 = vmatprep.subr.mxu0 0.0
      %521 = vmatpush1.msra.mxu0 0.0
      %522 = vmatprep.subr.mxu0 0.0
      %523 = vmatpush1.msra.mxu0 0.0
      %524 = vmatprep.subr.mxu0 0.0
      %525 = vmatpush1.msra.mxu0 0.0
      %526 = vmatprep.mubr.f32.mxu0 0.0
      %527 = vmatmul.mubr.f32.gmra.mrb[0].mxu0 %v460
      %v528 = vpop.f32.mrb[0].mxu0
      %v529 = vadd.f32 %v457, %v528
      %v530 = vpop.f32.mrb[0].mxu0
      %531 = vdwg.mxu0
      %vm532 = vcmp.gt.f32.partialorder %v454, 0.0
      %v533 = vld [vmem:[%s3] sm:$0xff]
      %v534 = vsel %vm532, 1, 0
      %535 = vset.pattern.permute.xlu0 0
      %536 = vperm.xlu0 %535, %v534
      %v537 = vpop.permute.xlu0 %536
      %vm538 = vcmp.eq.s32.totalorder %v537, 1
      %v539 = vsel %vm538, %v533, %v529
      %v540 = vld [vmem:[%s9] sm:$0xff]
      %vm541 = vcmask 261120
      %v542 = vsel %vm541, %v539, 0.0
      %543 = vadd.xlane.f32.xlu0 %v542
      %v544 = vpop.xlane.xlu0 %543
      %v545 = vrcp.pop 32.0
      %v546 = vmul.f32 %v544, %v545
      %v547 = vsub.f32 %v539, %v546
      %v548 = vmul.f32 %v547, %v547
      %v549 = vsel %vm541, %v548, 0.0
      %550 = vadd.xlane.f32.xlu0 %v549
      %v551 = vpop.xlane.xlu0 %550
      %v552 = vmul.f32 %v551, %v545
      %v553 = vadd.f32 %v552, 1e-05
      %v554 = vrsqrt.pop %v553
      %v555 = vmul.f32 %v547, %v554
      %v556 = vlaneseq
      %v557 = vshrl.u32 %v556, 7
      %v558 = vsub.s32 0, %v557
      %v559 = vrot.slane %v540, %v558
      %v560 = vmul.f32 %v555, %v559
      %v561 = vlaneseq
      %v562 = vshrl.u32 %v561, 7
      %v563 = vsub.s32 1, %v562
      %v564 = vrot.slane %v540, %v563
      %v565 = vadd.f32 %v560, %v564
      %v566 = vld [vmem:[%s5] sm:$0xff]
      %v567 = vld [vmem:[%s5 + $0x8] sm:$0xff]
      %v568 = vld [vmem:[%s5 + $0x10] sm:$0xff]
      %v569 = vld [vmem:[%s5 + $0x18] sm:$0xff]
      %v571 = vsel %vm541, %v565, 0
      %573 = vmatprep.subr.mxu0 0.0
      %574 = vmatpush1.msra.mxu0 %v566
      %575 = vmatprep.subr.mxu0 0.0
      %576 = vmatpush1.msra.mxu0 %v567
      %577 = vmatprep.subr.mxu0 0.0
      %578 = vmatpush1.msra.mxu0 %v568
      %579 = vmatprep.subr.mxu0 0.0
      %580 = vmatpush1.msra.mxu0 %v569
      %581 = vmatprep.subr.mxu0 0.0
      %582 = vmatpush1.msra.mxu0 0.0
      %583 = vmatprep.subr.mxu0 0.0
      %584 = vmatpush1.msra.mxu0 0.0
      %585 = vmatprep.subr.mxu0 0.0
      %586 = vmatpush1.msra.mxu0 0.0
      %587 = vmatprep.subr.mxu0 0.0
      %588 = vmatpush1.msra.mxu0 0.0
      %589 = vmatprep.subr.mxu0 0.0
      %590 = vmatpush1.msra.mxu0 0.0
      %591 = vmatprep.subr.mxu0 0.0
      %592 = vmatpush1.msra.mxu0 0.0
      %593 = vmatprep.subr.mxu0 0.0
      %594 = vmatpush1.msra.mxu0 0.0
      %595 = vmatprep.subr.mxu0 0.0
      %596 = vmatpush1.msra.mxu0 0.0
      %597 = vmatprep.subr.mxu0 0.0
      %598 = vmatpush1.msra.mxu0 0.0
      %599 = vmatprep.subr.mxu0 0.0
      %600 = vmatpush1.msra.mxu0 0.0
      %601 = vmatprep.subr.mxu0 0.0
      %602 = vmatpush1.msra.mxu0 0.0
      %603 = vmatprep.subr.mxu0 0.0
      %604 = vmatpush1.msra.mxu0 0.0
      %605 = vmatprep.subr.mxu0 0.0
      %606 = vmatpush1.msra.mxu0 0.0
      %607 = vmatprep.subr.mxu0 0.0
      %608 = vmatpush1.msra.mxu0 0.0
      %609 = vmatprep.subr.mxu0 0.0
      %610 = vmatpush1.msra.mxu0 0.0
      %611 = vmatprep.subr.mxu0 0.0
      %612 = vmatpush1.msra.mxu0 0.0
      %613 = vmatprep.subr.mxu0 0.0
      %614 = vmatpush1.msra.mxu0 0.0
      %615 = vmatprep.subr.mxu0 0.0
      %616 = vmatpush1.msra.mxu0 0.0
      %617 = vmatprep.subr.mxu0 0.0
      %618 = vmatpush1.msra.mxu0 0.0
      %619 = vmatprep.subr.mxu0 0.0
      %620 = vmatpush1.msra.mxu0 0.0
      %621 = vmatprep.subr.mxu0 0.0
      %622 = vmatpush1.msra.mxu0 0.0
      %623 = vmatprep.subr.mxu0 0.0
      %624 = vmatpush1.msra.mxu0 0.0
      %625 = vmatprep.subr.mxu0 0.0
      %626 = vmatpush1.msra.mxu0 0.0
      %627 = vmatprep.subr.mxu0 0.0
      %628 = vmatpush1.msra.mxu0 0.0
      %629 = vmatprep.subr.mxu0 0.0
      %630 = vmatpush1.msra.mxu0 0.0
      %631 = vmatprep.subr.mxu0 0.0
      %632 = vmatpush1.msra.mxu0 0.0
      %633 = vmatprep.subr.mxu0 0.0
      %634 = vmatpush1.msra.mxu0 0.0
      %635 = vmatprep.subr.mxu0 0.0
      %636 = vmatpush1.msra.mxu0 0.0
      %637 = vmatprep.mubr.f32.mxu0 0.0
      %638 = vmatmul.mubr.f32.gmra.mrb[0].mxu0 %v571
      %v639 = vpop.f32.mrb[0].mxu0
      %v640 = vadd.f32 0.0, %v639
      %v641 = vpop.f32.mrb[0].mxu0
      %642 = vdwg.mxu0
      %vm643 = vcmask 64512
      %644 = vst.msk [vmem:[#allocation2] sm:$0xff] %vm643, %v640
      %646 = vrot.lane.b32.xlu0 %v640, 96
      %v647 = vpop.permute.xlu0 %646
      %649 = vst.msk [vmem:[#allocation3] sm:$0xff] %vm643, %v647
      %650 = vrot.lane.b32.xlu0 %v640, 64
      %v651 = vpop.permute.xlu0 %650
      %653 = vst.msk [vmem:[#allocation4] sm:$0xff] %vm643, %v651
      %654 = vrot.lane.b32.xlu0 %v640, 120
      %v655 = vpop.permute.xlu0 %654
      %s657 = scalar_lea.vmem [#allocation2], 8
      %658 = vst.msk [vmem:[%s657] sm:$0xff] %vm643, %v655
      %659 = vrot.lane.b32.xlu0 %v640, 88
      %v660 = vpop.permute.xlu0 %659
      %s662 = scalar_lea.vmem [#allocation3], 8
      %663 = vst.msk [vmem:[%s662] sm:$0xff] %vm643, %v660
      %664 = vrot.lane.b32.xlu0 %v640, 56
      %v665 = vpop.permute.xlu0 %664
      %s667 = scalar_lea.vmem [#allocation4], 8
      %668 = vst.msk [vmem:[%s667] sm:$0xff] %vm643, %v665
      %669 = vrot.lane.b32.xlu0 %v640, 112
      %v670 = vpop.permute.xlu0 %669
      %s672 = scalar_lea.vmem [#allocation2], 16
      %673 = vst.msk [vmem:[%s672] sm:$0xff] %vm643, %v670
      %674 = vrot.lane.b32.xlu0 %v640, 80
      %v675 = vpop.permute.xlu0 %674
      %s677 = scalar_lea.vmem [#allocation3], 16
      %678 = vst.msk [vmem:[%s677] sm:$0xff] %vm643, %v675
      %679 = vrot.lane.b32.xlu0 %v640, 48
      %v680 = vpop.permute.xlu0 %679
      %s682 = scalar_lea.vmem [#allocation4], 16
      %683 = vst.msk [vmem:[%s682] sm:$0xff] %vm643, %v680
      %684 = vrot.lane.b32.xlu0 %v640, 104
      %v685 = vpop.permute.xlu0 %684
      %s687 = scalar_lea.vmem [#allocation2], 24
      %688 = vst.msk [vmem:[%s687] sm:$0xff] %vm643, %v685
      %689 = vrot.lane.b32.xlu0 %v640, 72
      %v690 = vpop.permute.xlu0 %689
      %s692 = scalar_lea.vmem [#allocation3], 24
      %693 = vst.msk [vmem:[%s692] sm:$0xff] %vm643, %v690
      %694 = vrot.lane.b32.xlu0 %v640, 40
      %v695 = vpop.permute.xlu0 %694
      %s697 = scalar_lea.vmem [#allocation4], 24
      %698 = vst.msk [vmem:[%s697] sm:$0xff] %vm643, %v695
      %v699 = vld [vmem:[#allocation2] sm:$0xff]
      %v700 = vld [vmem:[#allocation2 + $0x8] sm:$0xff]
      %v701 = vld [vmem:[#allocation2 + $0x10] sm:$0xff]
      %v702 = vld [vmem:[#allocation2 + $0x18] sm:$0xff]
      %v703 = vld [vmem:[#allocation3] sm:$0xff]
      %v704 = vld [vmem:[#allocation3 + $0x8] sm:$0xff]
      %v705 = vld [vmem:[#allocation3 + $0x10] sm:$0xff]
      %v706 = vld [vmem:[#allocation3 + $0x18] sm:$0xff]
      %v707 = vld [vmem:[#allocation4] sm:$0xff]
      %v708 = vld [vmem:[#allocation4 + $0x8] sm:$0xff]
      %v709 = vld [vmem:[#allocation4 + $0x10] sm:$0xff]
      %v710 = vld [vmem:[#allocation4 + $0x18] sm:$0xff]
      %v712 = vsel %vm643, %v699, 0
      %v715 = vsel %vm643, %v703, 0
      %717 = vmatprep.subr.mxu0 0.0
      %718 = vmatpush1.xpose.msra.mxu0 %v715
      %719 = vmatprep.subr.mxu0 0.0
      %720 = vmatpush1.xpose.msra.mxu0 0.0
      %721 = vmatprep.subr.mxu0 0.0
      %722 = vmatpush1.xpose.msra.mxu0 0.0
      %723 = vmatprep.subr.mxu0 0.0
      %724 = vmatpush1.xpose.msra.mxu0 0.0
      %725 = vmatprep.subr.mxu0 0.0
      %726 = vmatpush1.xpose.msra.mxu0 0.0
      %727 = vmatprep.subr.mxu0 0.0
      %728 = vmatpush1.xpose.msra.mxu0 0.0
      %729 = vmatprep.subr.mxu0 0.0
      %730 = vmatpush1.xpose.msra.mxu0 0.0
      %731 = vmatprep.subr.mxu0 0.0
      %732 = vmatpush1.xpose.msra.mxu0 0.0
      %733 = vmatprep.subr.mxu0 0.0
      %734 = vmatpush1.xpose.msra.mxu0 0.0
      %735 = vmatprep.subr.mxu0 0.0
      %736 = vmatpush1.xpose.msra.mxu0 0.0
      %737 = vmatprep.subr.mxu0 0.0
      %738 = vmatpush1.xpose.msra.mxu0 0.0
      %739 = vmatprep.subr.mxu0 0.0
      %740 = vmatpush1.xpose.msra.mxu0 0.0
      %741 = vmatprep.subr.mxu0 0.0
      %742 = vmatpush1.xpose.msra.mxu0 0.0
      %743 = vmatprep.subr.mxu0 0.0
      %744 = vmatpush1.xpose.msra.mxu0 0.0
      %745 = vmatprep.subr.mxu0 0.0
      %746 = vmatpush1.xpose.msra.mxu0 0.0
      %747 = vmatprep.subr.mxu0 0.0
      %748 = vmatpush1.xpose.msra.mxu0 0.0
      %749 = vmatprep.subr.mxu0 0.0
      %750 = vmatpush1.xpose.msra.mxu0 0.0
      %751 = vmatprep.subr.mxu0 0.0
      %752 = vmatpush1.xpose.msra.mxu0 0.0
      %753 = vmatprep.subr.mxu0 0.0
      %754 = vmatpush1.xpose.msra.mxu0 0.0
      %755 = vmatprep.subr.mxu0 0.0
      %756 = vmatpush1.xpose.msra.mxu0 0.0
      %757 = vmatprep.subr.mxu0 0.0
      %758 = vmatpush1.xpose.msra.mxu0 0.0
      %759 = vmatprep.subr.mxu0 0.0
      %760 = vmatpush1.xpose.msra.mxu0 0.0
      %761 = vmatprep.subr.mxu0 0.0
      %762 = vmatpush1.xpose.msra.mxu0 0.0
      %763 = vmatprep.subr.mxu0 0.0
      %764 = vmatpush1.xpose.msra.mxu0 0.0
      %765 = vmatprep.subr.mxu0 0.0
      %766 = vmatpush1.xpose.msra.mxu0 0.0
      %767 = vmatprep.subr.mxu0 0.0
      %768 = vmatpush1.xpose.msra.mxu0 0.0
      %769 = vmatprep.subr.mxu0 0.0
      %770 = vmatpush1.xpose.msra.mxu0 0.0
      %771 = vmatprep.subr.mxu0 0.0
      %772 = vmatpush1.xpose.msra.mxu0 0.0
      %773 = vmatprep.subr.mxu0 0.0
      %774 = vmatpush1.xpose.msra.mxu0 0.0
      %775 = vmatprep.subr.mxu0 0.0
      %776 = vmatpush1.xpose.msra.mxu0 0.0
      %777 = vmatprep.subr.mxu0 0.0
      %778 = vmatpush1.xpose.msra.mxu0 0.0
      %779 = vmatprep.subr.mxu0 0.0
      %780 = vmatpush1.xpose.msra.mxu0 0.0
      %781 = vmatprep.mubr.f32.mxu0 0.0
      %782 = vmatmul.mubr.f32.gmra.mrb[0].mxu0 %v712
      %v783 = vpop.f32.mrb[0].mxu0
      %v784 = vadd.f32 0.0, %v783
      %v785 = vpop.f32.mrb[0].mxu0
      %786 = vdwg.mxu0
      %v788 = vsel %vm643, %v700, 0
      %v791 = vsel %vm643, %v704, 0
      %793 = vmatprep.subr.mxu0 0.0
      %794 = vmatpush1.xpose.msra.mxu0 %v791
      %795 = vmatprep.subr.mxu0 0.0
      %796 = vmatpush1.xpose.msra.mxu0 0.0
      %797 = vmatprep.subr.mxu0 0.0
      %798 = vmatpush1.xpose.msra.mxu0 0.0
      %799 = vmatprep.subr.mxu0 0.0
      %800 = vmatpush1.xpose.msra.mxu0 0.0
      %801 = vmatprep.subr.mxu0 0.0
      %802 = vmatpush1.xpose.msra.mxu0 0.0
      %803 = vmatprep.subr.mxu0 0.0
      %804 = vmatpush1.xpose.msra.mxu0 0.0
      %805 = vmatprep.subr.mxu0 0.0
      %806 = vmatpush1.xpose.msra.mxu0 0.0
      %807 = vmatprep.subr.mxu0 0.0
      %808 = vmatpush1.xpose.msra.mxu0 0.0
      %809 = vmatprep.subr.mxu0 0.0
      %810 = vmatpush1.xpose.msra.mxu0 0.0
      %811 = vmatprep.subr.mxu0 0.0
      %812 = vmatpush1.xpose.msra.mxu0 0.0
      %813 = vmatprep.subr.mxu0 0.0
      %814 = vmatpush1.xpose.msra.mxu0 0.0
      %815 = vmatprep.subr.mxu0 0.0
      %816 = vmatpush1.xpose.msra.mxu0 0.0
      %817 = vmatprep.subr.mxu0 0.0
      %818 = vmatpush1.xpose.msra.mxu0 0.0
      %819 = vmatprep.subr.mxu0 0.0
      %820 = vmatpush1.xpose.msra.mxu0 0.0
      %821 = vmatprep.subr.mxu0 0.0
      %822 = vmatpush1.xpose.msra.mxu0 0.0
      %823 = vmatprep.subr.mxu0 0.0
      %824 = vmatpush1.xpose.msra.mxu0 0.0
      %825 = vmatprep.subr.mxu0 0.0
      %826 = vmatpush1.xpose.msra.mxu0 0.0
      %827 = vmatprep.subr.mxu0 0.0
      %828 = vmatpush1.xpose.msra.mxu0 0.0
      %829 = vmatprep.subr.mxu0 0.0
      %830 = vmatpush1.xpose.msra.mxu0 0.0
      %831 = vmatprep.subr.mxu0 0.0
      %832 = vmatpush1.xpose.msra.mxu0 0.0
      %833 = vmatprep.subr.mxu0 0.0
      %834 = vmatpush1.xpose.msra.mxu0 0.0
      %835 = vmatprep.subr.mxu0 0.0
      %836 = vmatpush1.xpose.msra.mxu0 0.0
      %837 = vmatprep.subr.mxu0 0.0
      %838 = vmatpush1.xpose.msra.mxu0 0.0
      %839 = vmatprep.subr.mxu0 0.0
      %840 = vmatpush1.xpose.msra.mxu0 0.0
      %841 = vmatprep.subr.mxu0 0.0
      %842 = vmatpush1.xpose.msra.mxu0 0.0
      %843 = vmatprep.subr.mxu0 0.0
      %844 = vmatpush1.xpose.msra.mxu0 0.0
      %845 = vmatprep.subr.mxu0 0.0
      %846 = vmatpush1.xpose.msra.mxu0 0.0
      %847 = vmatprep.subr.mxu0 0.0
      %848 = vmatpush1.xpose.msra.mxu0 0.0
      %849 = vmatprep.subr.mxu0 0.0
      %850 = vmatpush1.xpose.msra.mxu0 0.0
      %851 = vmatprep.subr.mxu0 0.0
      %852 = vmatpush1.xpose.msra.mxu0 0.0
      %853 = vmatprep.subr.mxu0 0.0
      %854 = vmatpush1.xpose.msra.mxu0 0.0
      %855 = vmatprep.subr.mxu0 0.0
      %856 = vmatpush1.xpose.msra.mxu0 0.0
      %857 = vmatprep.mubr.f32.mxu0 0.0
      %858 = vmatmul.mubr.f32.gmra.mrb[0].mxu0 %v788
      %v859 = vpop.f32.mrb[0].mxu0
      %v860 = vadd.f32 0.0, %v859
      %v861 = vpop.f32.mrb[0].mxu0
      %862 = vdwg.mxu0
      %v864 = vsel %vm643, %v701, 0
      %v867 = vsel %vm643, %v705, 0
      %869 = vmatprep.subr.mxu0 0.0
      %870 = vmatpush1.xpose.msra.mxu0 %v867
      %871 = vmatprep.subr.mxu0 0.0
      %872 = vmatpush1.xpose.msra.mxu0 0.0
      %873 = vmatprep.subr.mxu0 0.0
      %874 = vmatpush1.xpose.msra.mxu0 0.0
      %875 = vmatprep.subr.mxu0 0.0
      %876 = vmatpush1.xpose.msra.mxu0 0.0
      %877 = vmatprep.subr.mxu0 0.0
      %878 = vmatpush1.xpose.msra.mxu0 0.0
      %879 = vmatprep.subr.mxu0 0.0
      %880 = vmatpush1.xpose.msra.mxu0 0.0
      %881 = vmatprep.subr.mxu0 0.0
      %882 = vmatpush1.xpose.msra.mxu0 0.0
      %883 = vmatprep.subr.mxu0 0.0
      %884 = vmatpush1.xpose.msra.mxu0 0.0
      %885 = vmatprep.subr.mxu0 0.0
      %886 = vmatpush1.xpose.msra.mxu0 0.0
      %887 = vmatprep.subr.mxu0 0.0
      %888 = vmatpush1.xpose.msra.mxu0 0.0
      %889 = vmatprep.subr.mxu0 0.0
      %890 = vmatpush1.xpose.msra.mxu0 0.0
      %891 = vmatprep.subr.mxu0 0.0
      %892 = vmatpush1.xpose.msra.mxu0 0.0
      %893 = vmatprep.subr.mxu0 0.0
      %894 = vmatpush1.xpose.msra.mxu0 0.0
      %895 = vmatprep.subr.mxu0 0.0
      %896 = vmatpush1.xpose.msra.mxu0 0.0
      %897 = vmatprep.subr.mxu0 0.0
      %898 = vmatpush1.xpose.msra.mxu0 0.0
      %899 = vmatprep.subr.mxu0 0.0
      %900 = vmatpush1.xpose.msra.mxu0 0.0
      %901 = vmatprep.subr.mxu0 0.0
      %902 = vmatpush1.xpose.msra.mxu0 0.0
      %903 = vmatprep.subr.mxu0 0.0
      %904 = vmatpush1.xpose.msra.mxu0 0.0
      %905 = vmatprep.subr.mxu0 0.0
      %906 = vmatpush1.xpose.msra.mxu0 0.0
      %907 = vmatprep.subr.mxu0 0.0
      %908 = vmatpush1.xpose.msra.mxu0 0.0
      %909 = vmatprep.subr.mxu0 0.0
      %910 = vmatpush1.xpose.msra.mxu0 0.0
      %911 = vmatprep.subr.mxu0 0.0
      %912 = vmatpush1.xpose.msra.mxu0 0.0
      %913 = vmatprep.subr.mxu0 0.0
      %914 = vmatpush1.xpose.msra.mxu0 0.0
      %915 = vmatprep.subr.mxu0 0.0
      %916 = vmatpush1.xpose.msra.mxu0 0.0
      %917 = vmatprep.subr.mxu0 0.0
      %918 = vmatpush1.xpose.msra.mxu0 0.0
      %919 = vmatprep.subr.mxu0 0.0
      %920 = vmatpush1.xpose.msra.mxu0 0.0
      %921 = vmatprep.subr.mxu0 0.0
      %922 = vmatpush1.xpose.msra.mxu0 0.0
      %923 = vmatprep.subr.mxu0 0.0
      %924 = vmatpush1.xpose.msra.mxu0 0.0
      %925 = vmatprep.subr.mxu0 0.0
      %926 = vmatpush1.xpose.msra.mxu0 0.0
      %927 = vmatprep.subr.mxu0 0.0
      %928 = vmatpush1.xpose.msra.mxu0 0.0
      %929 = vmatprep.subr.mxu0 0.0
      %930 = vmatpush1.xpose.msra.mxu0 0.0
      %931 = vmatprep.subr.mxu0 0.0
      %932 = vmatpush1.xpose.msra.mxu0 0.0
      %933 = vmatprep.mubr.f32.mxu0 0.0
      %934 = vmatmul.mubr.f32.gmra.mrb[0].mxu0 %v864
      %v935 = vpop.f32.mrb[0].mxu0
      %v936 = vadd.f32 0.0, %v935
      %v937 = vpop.f32.mrb[0].mxu0
      %938 = vdwg.mxu0
      %v940 = vsel %vm643, %v702, 0
      %v943 = vsel %vm643, %v706, 0
      %945 = vmatprep.subr.mxu0 0.0
      %946 = vmatpush1.xpose.msra.mxu0 %v943
      %947 = vmatprep.subr.mxu0 0.0
      %948 = vmatpush1.xpose.msra.mxu0 0.0
      %949 = vmatprep.subr.mxu0 0.0
      %950 = vmatpush1.xpose.msra.mxu0 0.0
      %951 = vmatprep.subr.mxu0 0.0
      %952 = vmatpush1.xpose.msra.mxu0 0.0
      %953 = vmatprep.subr.mxu0 0.0
      %954 = vmatpush1.xpose.msra.mxu0 0.0
      %955 = vmatprep.subr.mxu0 0.0
      %956 = vmatpush1.xpose.msra.mxu0 0.0
      %957 = vmatprep.subr.mxu0 0.0
      %958 = vmatpush1.xpose.msra.mxu0 0.0
      %959 = vmatprep.subr.mxu0 0.0
      %960 = vmatpush1.xpose.msra.mxu0 0.0
      %961 = vmatprep.subr.mxu0 0.0
      %962 = vmatpush1.xpose.msra.mxu0 0.0
      %963 = vmatprep.subr.mxu0 0.0
      %964 = vmatpush1.xpose.msra.mxu0 0.0
      %965 = vmatprep.subr.mxu0 0.0
      %966 = vmatpush1.xpose.msra.mxu0 0.0
      %967 = vmatprep.subr.mxu0 0.0
      %968 = vmatpush1.xpose.msra.mxu0 0.0
      %969 = vmatprep.subr.mxu0 0.0
      %970 = vmatpush1.xpose.msra.mxu0 0.0
      %971 = vmatprep.subr.mxu0 0.0
      %972 = vmatpush1.xpose.msra.mxu0 0.0
      %973 = vmatprep.subr.mxu0 0.0
      %974 = vmatpush1.xpose.msra.mxu0 0.0
      %975 = vmatprep.subr.mxu0 0.0
      %976 = vmatpush1.xpose.msra.mxu0 0.0
      %977 = vmatprep.subr.mxu0 0.0
      %978 = vmatpush1.xpose.msra.mxu0 0.0
      %979 = vmatprep.subr.mxu0 0.0
      %980 = vmatpush1.xpose.msra.mxu0 0.0
      %981 = vmatprep.subr.mxu0 0.0
      %982 = vmatpush1.xpose.msra.mxu0 0.0
      %983 = vmatprep.subr.mxu0 0.0
      %984 = vmatpush1.xpose.msra.mxu0 0.0
      %985 = vmatprep.subr.mxu0 0.0
      %986 = vmatpush1.xpose.msra.mxu0 0.0
      %987 = vmatprep.subr.mxu0 0.0
      %988 = vmatpush1.xpose.msra.mxu0 0.0
      %989 = vmatprep.subr.mxu0 0.0
      %990 = vmatpush1.xpose.msra.mxu0 0.0
      %991 = vmatprep.subr.mxu0 0.0
      %992 = vmatpush1.xpose.msra.mxu0 0.0
      %993 = vmatprep.subr.mxu0 0.0
      %994 = vmatpush1.xpose.msra.mxu0 0.0
      %995 = vmatprep.subr.mxu0 0.0
      %996 = vmatpush1.xpose.msra.mxu0 0.0
      %997 = vmatprep.subr.mxu0 0.0
      %998 = vmatpush1.xpose.msra.mxu0 0.0
      %999 = vmatprep.subr.mxu0 0.0
      %1000 = vmatpush1.xpose.msra.mxu0 0.0
      %1001 = vmatprep.subr.mxu0 0.0
      %1002 = vmatpush1.xpose.msra.mxu0 0.0
      %1003 = vmatprep.subr.mxu0 0.0
      %1004 = vmatpush1.xpose.msra.mxu0 0.0
      %1005 = vmatprep.subr.mxu0 0.0
      %1006 = vmatpush1.xpose.msra.mxu0 0.0
      %1007 = vmatprep.subr.mxu0 0.0
      %1008 = vmatpush1.xpose.msra.mxu0 0.0
      %1009 = vmatprep.mubr.f32.mxu0 0.0
      %1010 = vmatmul.mubr.f32.gmra.mrb[0].mxu0 %v940
      %v1011 = vpop.f32.mrb[0].mxu0
      %v1012 = vadd.f32 0.0, %v1011
      %v1013 = vpop.f32.mrb[0].mxu0
      %1014 = vdwg.mxu0
      %v1015 = vsel %vm643, %v784, -inf
      %1016 = vmax.xlane.f32.xlu0 %v1015
      %v1017 = vpop.xlane.xlu0 %1016
      %v1018 = vsel %vm643, %v860, -inf
      %1019 = vmax.xlane.f32.xlu0 %v1018
      %v1020 = vpop.xlane.xlu0 %1019
      %v1021 = vsel %vm643, %v936, -inf
      %1022 = vmax.xlane.f32.xlu0 %v1021
      %v1023 = vpop.xlane.xlu0 %1022
      %v1024 = vsel %vm643, %v1012, -inf
      %1025 = vmax.xlane.f32.xlu0 %v1024
      %v1026 = vpop.xlane.xlu0 %1025
      %v1027 = vsub.f32 %v784, %v1017
      %v1028 = vsub.f32 %v860, %v1020
      %v1029 = vsub.f32 %v936, %v1023
      %v1030 = vsub.f32 %v1012, %v1026
      %v1031 = vmul.f32 %v1027, 1.442695
      %v1032 = vpow.pop %v1031
      %v1033 = vmul.f32 %v1028, 1.442695
      %v1034 = vpow.pop %v1033
      %v1035 = vmul.f32 %v1029, 1.442695
      %v1036 = vpow.pop %v1035
      %v1037 = vmul.f32 %v1030, 1.442695
      %v1038 = vpow.pop %v1037
      %v1039 = vsel %vm643, %v1032, 0.0
      %1040 = vadd.xlane.f32.xlu0 %v1039
      %v1041 = vpop.xlane.xlu0 %1040
      %v1042 = vsel %vm643, %v1034, 0.0
      %1043 = vadd.xlane.f32.xlu0 %v1042
      %v1044 = vpop.xlane.xlu0 %1043
      %v1045 = vsel %vm643, %v1036, 0.0
      %1046 = vadd.xlane.f32.xlu0 %v1045
      %v1047 = vpop.xlane.xlu0 %1046
      %v1048 = vsel %vm643, %v1038, 0.0
      %1049 = vadd.xlane.f32.xlu0 %v1048
      %v1050 = vpop.xlane.xlu0 %1049
      %v1051 = vrcp.pop %v1041
      %v1052 = vrcp.pop %v1044
      %v1053 = vrcp.pop %v1047
      %v1054 = vrcp.pop %v1050
      %v1055 = vmul.f32 %v1032, %v1051
      %v1056 = vmul.f32 %v1034, %v1052
      %v1057 = vmul.f32 %v1036, %v1053
      %v1058 = vmul.f32 %v1038, %v1054
      %v1060 = vsel %vm643, %v1055, 0
      %1062 = vmatprep.subr.mxu0 0.0
      %1063 = vmatpush1.msra.mxu0 %v707
      %1064 = vmatprep.subr.mxu0 0.0
      %1065 = vmatpush1.msra.mxu0 0.0
      %1066 = vmatprep.subr.mxu0 0.0
      %1067 = vmatpush1.msra.mxu0 0.0
      %1068 = vmatprep.subr.mxu0 0.0
      %1069 = vmatpush1.msra.mxu0 0.0
      %1070 = vmatprep.subr.mxu0 0.0
      %1071 = vmatpush1.msra.mxu0 0.0
      %1072 = vmatprep.subr.mxu0 0.0
      %1073 = vmatpush1.msra.mxu0 0.0
      %1074 = vmatprep.subr.mxu0 0.0
      %1075 = vmatpush1.msra.mxu0 0.0
      %1076 = vmatprep.subr.mxu0 0.0
      %1077 = vmatpush1.msra.mxu0 0.0
      %1078 = vmatprep.subr.mxu0 0.0
      %1079 = vmatpush1.msra.mxu0 0.0
      %1080 = vmatprep.subr.mxu0 0.0
      %1081 = vmatpush1.msra.mxu0 0.0
      %1082 = vmatprep.subr.mxu0 0.0
      %1083 = vmatpush1.msra.mxu0 0.0
      %1084 = vmatprep.subr.mxu0 0.0
      %1085 = vmatpush1.msra.mxu0 0.0
      %1086 = vmatprep.subr.mxu0 0.0
      %1087 = vmatpush1.msra.mxu0 0.0
      %1088 = vmatprep.subr.mxu0 0.0
      %1089 = vmatpush1.msra.mxu0 0.0
      %1090 = vmatprep.subr.mxu0 0.0
      %1091 = vmatpush1.msra.mxu0 0.0
      %1092 = vmatprep.subr.mxu0 0.0
      %1093 = vmatpush1.msra.mxu0 0.0
      %1094 = vmatprep.subr.mxu0 0.0
      %1095 = vmatpush1.msra.mxu0 0.0
      %1096 = vmatprep.subr.mxu0 0.0
      %1097 = vmatpush1.msra.mxu0 0.0
      %1098 = vmatprep.subr.mxu0 0.0
      %1099 = vmatpush1.msra.mxu0 0.0
      %1100 = vmatprep.subr.mxu0 0.0
      %1101 = vmatpush1.msra.mxu0 0.0
      %1102 = vmatprep.subr.mxu0 0.0
      %1103 = vmatpush1.msra.mxu0 0.0
      %1104 = vmatprep.subr.mxu0 0.0
      %1105 = vmatpush1.msra.mxu0 0.0
      %1106 = vmatprep.subr.mxu0 0.0
      %1107 = vmatpush1.msra.mxu0 0.0
      %1108 = vmatprep.subr.mxu0 0.0
      %1109 = vmatpush1.msra.mxu0 0.0
      %1110 = vmatprep.subr.mxu0 0.0
      %1111 = vmatpush1.msra.mxu0 0.0
      %1112 = vmatprep.subr.mxu0 0.0
      %1113 = vmatpush1.msra.mxu0 0.0
      %1114 = vmatprep.subr.mxu0 0.0
      %1115 = vmatpush1.msra.mxu0 0.0
      %1116 = vmatprep.subr.mxu0 0.0
      %1117 = vmatpush1.msra.mxu0 0.0
      %1118 = vmatprep.subr.mxu0 0.0
      %1119 = vmatpush1.msra.mxu0 0.0
      %1120 = vmatprep.subr.mxu0 0.0
      %1121 = vmatpush1.msra.mxu0 0.0
      %1122 = vmatprep.subr.mxu0 0.0
      %1123 = vmatpush1.msra.mxu0 0.0
      %1124 = vmatprep.subr.mxu0 0.0
      %1125 = vmatpush1.msra.mxu0 0.0
      %1126 = vmatprep.mubr.f32.mxu0 0.0
      %1127 = vmatmul.mubr.f32.gmra.mrb[0].mxu0 %v1060
      %v1128 = vpop.f32.mrb[0].mxu0
      %v1129 = vadd.f32 0.0, %v1128
      %v1130 = vpop.f32.mrb[0].mxu0
      %1131 = vdwg.mxu0
      %v1133 = vsel %vm643, %v1056, 0
      %1135 = vmatprep.subr.mxu0 0.0
      %1136 = vmatpush1.msra.mxu0 %v708
      %1137 = vmatprep.subr.mxu0 0.0
      %1138 = vmatpush1.msra.mxu0 0.0
      %1139 = vmatprep.subr.mxu0 0.0
      %1140 = vmatpush1.msra.mxu0 0.0
      %1141 = vmatprep.subr.mxu0 0.0
      %1142 = vmatpush1.msra.mxu0 0.0
      %1143 = vmatprep.subr.mxu0 0.0
      %1144 = vmatpush1.msra.mxu0 0.0
      %1145 = vmatprep.subr.mxu0 0.0
      %1146 = vmatpush1.msra.mxu0 0.0
      %1147 = vmatprep.subr.mxu0 0.0
      %1148 = vmatpush1.msra.mxu0 0.0
      %1149 = vmatprep.subr.mxu0 0.0
      %1150 = vmatpush1.msra.mxu0 0.0
      %1151 = vmatprep.subr.mxu0 0.0
      %1152 = vmatpush1.msra.mxu0 0.0
      %1153 = vmatprep.subr.mxu0 0.0
      %1154 = vmatpush1.msra.mxu0 0.0
      %1155 = vmatprep.subr.mxu0 0.0
      %1156 = vmatpush1.msra.mxu0 0.0
      %1157 = vmatprep.subr.mxu0 0.0
      %1158 = vmatpush1.msra.mxu0 0.0
      %1159 = vmatprep.subr.mxu0 0.0
      %1160 = vmatpush1.msra.mxu0 0.0
      %1161 = vmatprep.subr.mxu0 0.0
      %1162 = vmatpush1.msra.mxu0 0.0
      %1163 = vmatprep.subr.mxu0 0.0
      %1164 = vmatpush1.msra.mxu0 0.0
      %1165 = vmatprep.subr.mxu0 0.0
      %1166 = vmatpush1.msra.mxu0 0.0
      %1167 = vmatprep.subr.mxu0 0.0
      %1168 = vmatpush1.msra.mxu0 0.0
      %1169 = vmatprep.subr.mxu0 0.0
      %1170 = vmatpush1.msra.mxu0 0.0
      %1171 = vmatprep.subr.mxu0 0.0
      %1172 = vmatpush1.msra.mxu0 0.0
      %1173 = vmatprep.subr.mxu0 0.0
      %1174 = vmatpush1.msra.mxu0 0.0
      %1175 = vmatprep.subr.mxu0 0.0
      %1176 = vmatpush1.msra.mxu0 0.0
      %1177 = vmatprep.subr.mxu0 0.0
      %1178 = vmatpush1.msra.mxu0 0.0
      %1179 = vmatprep.subr.mxu0 0.0
      %1180 = vmatpush1.msra.mxu0 0.0
      %1181 = vmatprep.subr.mxu0 0.0
      %1182 = vmatpush1.msra.mxu0 0.0
      %1183 = vmatprep.subr.mxu0 0.0
      %1184 = vmatpush1.msra.mxu0 0.0
      %1185 = vmatprep.subr.mxu0 0.0
      %1186 = vmatpush1.msra.mxu0 0.0
      %1187 = vmatprep.subr.mxu0 0.0
      %1188 = vmatpush1.msra.mxu0 0.0
      %1189 = vmatprep.subr.mxu0 0.0
      %1190 = vmatpush1.msra.mxu0 0.0
      %1191 = vmatprep.subr.mxu0 0.0
      %1192 = vmatpush1.msra.mxu0 0.0
      %1193 = vmatprep.subr.mxu0 0.0
      %1194 = vmatpush1.msra.mxu0 0.0
      %1195 = vmatprep.subr.mxu0 0.0
      %1196 = vmatpush1.msra.mxu0 0.0
      %1197 = vmatprep.subr.mxu0 0.0
      %1198 = vmatpush1.msra.mxu0 0.0
      %1199 = vmatprep.mubr.f32.mxu0 0.0
      %1200 = vmatmul.mubr.f32.gmra.mrb[0].mxu0 %v1133
      %v1201 = vpop.f32.mrb[0].mxu0
      %v1202 = vadd.f32 0.0, %v1201
      %v1203 = vpop.f32.mrb[0].mxu0
      %1204 = vdwg.mxu0
      %v1206 = vsel %vm643, %v1057, 0
      %1208 = vmatprep.subr.mxu0 0.0
      %1209 = vmatpush1.msra.mxu0 %v709
      %1210 = vmatprep.subr.mxu0 0.0
      %1211 = vmatpush1.msra.mxu0 0.0
      %1212 = vmatprep.subr.mxu0 0.0
      %1213 = vmatpush1.msra.mxu0 0.0
      %1214 = vmatprep.subr.mxu0 0.0
      %1215 = vmatpush1.msra.mxu0 0.0
      %1216 = vmatprep.subr.mxu0 0.0
      %1217 = vmatpush1.msra.mxu0 0.0
      %1218 = vmatprep.subr.mxu0 0.0
      %1219 = vmatpush1.msra.mxu0 0.0
      %1220 = vmatprep.subr.mxu0 0.0
      %1221 = vmatpush1.msra.mxu0 0.0
      %1222 = vmatprep.subr.mxu0 0.0
      %1223 = vmatpush1.msra.mxu0 0.0
      %1224 = vmatprep.subr.mxu0 0.0
      %1225 = vmatpush1.msra.mxu0 0.0
      %1226 = vmatprep.subr.mxu0 0.0
      %1227 = vmatpush1.msra.mxu0 0.0
      %1228 = vmatprep.subr.mxu0 0.0
      %1229 = vmatpush1.msra.mxu0 0.0
      %1230 = vmatprep.subr.mxu0 0.0
      %1231 = vmatpush1.msra.mxu0 0.0
      %1232 = vmatprep.subr.mxu0 0.0
      %1233 = vmatpush1.msra.mxu0 0.0
      %1234 = vmatprep.subr.mxu0 0.0
      %1235 = vmatpush1.msra.mxu0 0.0
      %1236 = vmatprep.subr.mxu0 0.0
      %1237 = vmatpush1.msra.mxu0 0.0
      %1238 = vmatprep.subr.mxu0 0.0
      %1239 = vmatpush1.msra.mxu0 0.0
      %1240 = vmatprep.subr.mxu0 0.0
      %1241 = vmatpush1.msra.mxu0 0.0
      %1242 = vmatprep.subr.mxu0 0.0
      %1243 = vmatpush1.msra.mxu0 0.0
      %1244 = vmatprep.subr.mxu0 0.0
      %1245 = vmatpush1.msra.mxu0 0.0
      %1246 = vmatprep.subr.mxu0 0.0
      %1247 = vmatpush1.msra.mxu0 0.0
      %1248 = vmatprep.subr.mxu0 0.0
      %1249 = vmatpush1.msra.mxu0 0.0
      %1250 = vmatprep.subr.mxu0 0.0
      %1251 = vmatpush1.msra.mxu0 0.0
      %1252 = vmatprep.subr.mxu0 0.0
      %1253 = vmatpush1.msra.mxu0 0.0
      %1254 = vmatprep.subr.mxu0 0.0
      %1255 = vmatpush1.msra.mxu0 0.0
      %1256 = vmatprep.subr.mxu0 0.0
      %1257 = vmatpush1.msra.mxu0 0.0
      %1258 = vmatprep.subr.mxu0 0.0
      %1259 = vmatpush1.msra.mxu0 0.0
      %1260 = vmatprep.subr.mxu0 0.0
      %1261 = vmatpush1.msra.mxu0 0.0
      %1262 = vmatprep.subr.mxu0 0.0
      %1263 = vmatpush1.msra.mxu0 0.0
      %1264 = vmatprep.subr.mxu0 0.0
      %1265 = vmatpush1.msra.mxu0 0.0
      %1266 = vmatprep.subr.mxu0 0.0
      %1267 = vmatpush1.msra.mxu0 0.0
      %1268 = vmatprep.subr.mxu0 0.0
      %1269 = vmatpush1.msra.mxu0 0.0
      %1270 = vmatprep.subr.mxu0 0.0
      %1271 = vmatpush1.msra.mxu0 0.0
      %1272 = vmatprep.mubr.f32.mxu0 0.0
      %1273 = vmatmul.mubr.f32.gmra.mrb[0].mxu0 %v1206
      %v1274 = vpop.f32.mrb[0].mxu0
      %v1275 = vadd.f32 0.0, %v1274
      %v1276 = vpop.f32.mrb[0].mxu0
      %1277 = vdwg.mxu0
      %v1279 = vsel %vm643, %v1058, 0
      %1281 = vmatprep.subr.mxu0 0.0
      %1282 = vmatpush1.msra.mxu0 %v710
      %1283 = vmatprep.subr.mxu0 0.0
      %1284 = vmatpush1.msra.mxu0 0.0
      %1285 = vmatprep.subr.mxu0 0.0
      %1286 = vmatpush1.msra.mxu0 0.0
      %1287 = vmatprep.subr.mxu0 0.0
      %1288 = vmatpush1.msra.mxu0 0.0
      %1289 = vmatprep.subr.mxu0 0.0
      %1290 = vmatpush1.msra.mxu0 0.0
      %1291 = vmatprep.subr.mxu0 0.0
      %1292 = vmatpush1.msra.mxu0 0.0
      %1293 = vmatprep.subr.mxu0 0.0
      %1294 = vmatpush1.msra.mxu0 0.0
      %1295 = vmatprep.subr.mxu0 0.0
      %1296 = vmatpush1.msra.mxu0 0.0
      %1297 = vmatprep.subr.mxu0 0.0
      %1298 = vmatpush1.msra.mxu0 0.0
      %1299 = vmatprep.subr.mxu0 0.0
      %1300 = vmatpush1.msra.mxu0 0.0
      %1301 = vmatprep.subr.mxu0 0.0
      %1302 = vmatpush1.msra.mxu0 0.0
      %1303 = vmatprep.subr.mxu0 0.0
      %1304 = vmatpush1.msra.mxu0 0.0
      %1305 = vmatprep.subr.mxu0 0.0
      %1306 = vmatpush1.msra.mxu0 0.0
      %1307 = vmatprep.subr.mxu0 0.0
      %1308 = vmatpush1.msra.mxu0 0.0
      %1309 = vmatprep.subr.mxu0 0.0
      %1310 = vmatpush1.msra.mxu0 0.0
      %1311 = vmatprep.subr.mxu0 0.0
      %1312 = vmatpush1.msra.mxu0 0.0
      %1313 = vmatprep.subr.mxu0 0.0
      %1314 = vmatpush1.msra.mxu0 0.0
      %1315 = vmatprep.subr.mxu0 0.0
      %1316 = vmatpush1.msra.mxu0 0.0
      %1317 = vmatprep.subr.mxu0 0.0
      %1318 = vmatpush1.msra.mxu0 0.0
      %1319 = vmatprep.subr.mxu0 0.0
      %1320 = vmatpush1.msra.mxu0 0.0
      %1321 = vmatprep.subr.mxu0 0.0
      %1322 = vmatpush1.msra.mxu0 0.0
      %1323 = vmatprep.subr.mxu0 0.0
      %1324 = vmatpush1.msra.mxu0 0.0
      %1325 = vmatprep.subr.mxu0 0.0
      %1326 = vmatpush1.msra.mxu0 0.0
      %1327 = vmatprep.subr.mxu0 0.0
      %1328 = vmatpush1.msra.mxu0 0.0
      %1329 = vmatprep.subr.mxu0 0.0
      %1330 = vmatpush1.msra.mxu0 0.0
      %1331 = vmatprep.subr.mxu0 0.0
      %1332 = vmatpush1.msra.mxu0 0.0
      %1333 = vmatprep.subr.mxu0 0.0
      %1334 = vmatpush1.msra.mxu0 0.0
      %1335 = vmatprep.subr.mxu0 0.0
      %1336 = vmatpush1.msra.mxu0 0.0
      %1337 = vmatprep.subr.mxu0 0.0
      %1338 = vmatpush1.msra.mxu0 0.0
      %1339 = vmatprep.subr.mxu0 0.0
      %1340 = vmatpush1.msra.mxu0 0.0
      %1341 = vmatprep.subr.mxu0 0.0
      %1342 = vmatpush1.msra.mxu0 0.0
      %1343 = vmatprep.subr.mxu0 0.0
      %1344 = vmatpush1.msra.mxu0 0.0
      %1345 = vmatprep.mubr.f32.mxu0 0.0
      %1346 = vmatmul.mubr.f32.gmra.mrb[0].mxu0 %v1279
      %v1347 = vpop.f32.mrb[0].mxu0
      %v1348 = vadd.f32 0.0, %v1347
      %v1349 = vpop.f32.mrb[0].mxu0
      %1350 = vdwg.mxu0
      %v1351 = vld [vmem:[%s6] sm:$0xff]
      %v1352 = vld [vmem:[%s6 + $0x8] sm:$0xff]
      %v1353 = vld [vmem:[%s6 + $0x10] sm:$0xff]
      %v1354 = vld [vmem:[%s6 + $0x18] sm:$0xff]
      %v1356 = vsel %vm643, %v1129, 0
      %1358 = vmatprep.subr.mxu0 0.0
      %1359 = vmatpush1.msra.mxu0 %v1351
      %1360 = vmatprep.subr.mxu0 0.0
      %1361 = vmatpush1.msra.mxu0 0.0
      %1362 = vmatprep.subr.mxu0 0.0
      %1363 = vmatpush1.msra.mxu0 0.0
      %1364 = vmatprep.subr.mxu0 0.0
      %1365 = vmatpush1.msra.mxu0 0.0
      %1366 = vmatprep.subr.mxu0 0.0
      %1367 = vmatpush1.msra.mxu0 0.0
      %1368 = vmatprep.subr.mxu0 0.0
      %1369 = vmatpush1.msra.mxu0 0.0
      %1370 = vmatprep.subr.mxu0 0.0
      %1371 = vmatpush1.msra.mxu0 0.0
      %1372 = vmatprep.subr.mxu0 0.0
      %1373 = vmatpush1.msra.mxu0 0.0
      %1374 = vmatprep.subr.mxu0 0.0
      %1375 = vmatpush1.msra.mxu0 0.0
      %1376 = vmatprep.subr.mxu0 0.0
      %1377 = vmatpush1.msra.mxu0 0.0
      %1378 = vmatprep.subr.mxu0 0.0
      %1379 = vmatpush1.msra.mxu0 0.0
      %1380 = vmatprep.subr.mxu0 0.0
      %1381 = vmatpush1.msra.mxu0 0.0
      %1382 = vmatprep.subr.mxu0 0.0
      %1383 = vmatpush1.msra.mxu0 0.0
      %1384 = vmatprep.subr.mxu0 0.0
      %1385 = vmatpush1.msra.mxu0 0.0
      %1386 = vmatprep.subr.mxu0 0.0
      %1387 = vmatpush1.msra.mxu0 0.0
      %1388 = vmatprep.subr.mxu0 0.0
      %1389 = vmatpush1.msra.mxu0 0.0
      %1390 = vmatprep.subr.mxu0 0.0
      %1391 = vmatpush1.msra.mxu0 0.0
      %1392 = vmatprep.subr.mxu0 0.0
      %1393 = vmatpush1.msra.mxu0 0.0
      %1394 = vmatprep.subr.mxu0 0.0
      %1395 = vmatpush1.msra.mxu0 0.0
      %1396 = vmatprep.subr.mxu0 0.0
      %1397 = vmatpush1.msra.mxu0 0.0
      %1398 = vmatprep.subr.mxu0 0.0
      %1399 = vmatpush1.msra.mxu0 0.0
      %1400 = vmatprep.subr.mxu0 0.0
      %1401 = vmatpush1.msra.mxu0 0.0
      %1402 = vmatprep.subr.mxu0 0.0
      %1403 = vmatpush1.msra.mxu0 0.0
      %1404 = vmatprep.subr.mxu0 0.0
      %1405 = vmatpush1.msra.mxu0 0.0
      %1406 = vmatprep.subr.mxu0 0.0
      %1407 = vmatpush1.msra.mxu0 0.0
      %1408 = vmatprep.subr.mxu0 0.0
      %1409 = vmatpush1.msra.mxu0 0.0
      %1410 = vmatprep.subr.mxu0 0.0
      %1411 = vmatpush1.msra.mxu0 0.0
      %1412 = vmatprep.subr.mxu0 0.0
      %1413 = vmatpush1.msra.mxu0 0.0
      %1414 = vmatprep.subr.mxu0 0.0
      %1415 = vmatpush1.msra.mxu0 0.0
      %1416 = vmatprep.subr.mxu0 0.0
      %1417 = vmatpush1.msra.mxu0 0.0
      %1418 = vmatprep.subr.mxu0 0.0
      %1419 = vmatpush1.msra.mxu0 0.0
      %1420 = vmatprep.subr.mxu0 0.0
      %1421 = vmatpush1.msra.mxu0 0.0
      %1422 = vmatprep.mubr.f32.mxu0 0.0
      %1423 = vmatmul.mubr.f32.gmra.mrb[0].mxu0 %v1356
      %v1424 = vpop.f32.mrb[0].mxu0
      %v1425 = vadd.f32 0.0, %v1424
      %v1426 = vpop.f32.mrb[0].mxu0
      %1427 = vdwg.mxu0
      %v1429 = vsel %vm643, %v1202, 0
      %1431 = vmatprep.subr.mxu0 0.0
      %1432 = vmatpush1.msra.mxu0 %v1352
      %1433 = vmatprep.subr.mxu0 0.0
      %1434 = vmatpush1.msra.mxu0 0.0
      %1435 = vmatprep.subr.mxu0 0.0
      %1436 = vmatpush1.msra.mxu0 0.0
      %1437 = vmatprep.subr.mxu0 0.0
      %1438 = vmatpush1.msra.mxu0 0.0
      %1439 = vmatprep.subr.mxu0 0.0
      %1440 = vmatpush1.msra.mxu0 0.0
      %1441 = vmatprep.subr.mxu0 0.0
      %1442 = vmatpush1.msra.mxu0 0.0
      %1443 = vmatprep.subr.mxu0 0.0
      %1444 = vmatpush1.msra.mxu0 0.0
      %1445 = vmatprep.subr.mxu0 0.0
      %1446 = vmatpush1.msra.mxu0 0.0
      %1447 = vmatprep.subr.mxu0 0.0
      %1448 = vmatpush1.msra.mxu0 0.0
      %1449 = vmatprep.subr.mxu0 0.0
      %1450 = vmatpush1.msra.mxu0 0.0
      %1451 = vmatprep.subr.mxu0 0.0
      %1452 = vmatpush1.msra.mxu0 0.0
      %1453 = vmatprep.subr.mxu0 0.0
      %1454 = vmatpush1.msra.mxu0 0.0
      %1455 = vmatprep.subr.mxu0 0.0
      %1456 = vmatpush1.msra.mxu0 0.0
      %1457 = vmatprep.subr.mxu0 0.0
      %1458 = vmatpush1.msra.mxu0 0.0
      %1459 = vmatprep.subr.mxu0 0.0
      %1460 = vmatpush1.msra.mxu0 0.0
      %1461 = vmatprep.subr.mxu0 0.0
      %1462 = vmatpush1.msra.mxu0 0.0
      %1463 = vmatprep.subr.mxu0 0.0
      %1464 = vmatpush1.msra.mxu0 0.0
      %1465 = vmatprep.subr.mxu0 0.0
      %1466 = vmatpush1.msra.mxu0 0.0
      %1467 = vmatprep.subr.mxu0 0.0
      %1468 = vmatpush1.msra.mxu0 0.0
      %1469 = vmatprep.subr.mxu0 0.0
      %1470 = vmatpush1.msra.mxu0 0.0
      %1471 = vmatprep.subr.mxu0 0.0
      %1472 = vmatpush1.msra.mxu0 0.0
      %1473 = vmatprep.subr.mxu0 0.0
      %1474 = vmatpush1.msra.mxu0 0.0
      %1475 = vmatprep.subr.mxu0 0.0
      %1476 = vmatpush1.msra.mxu0 0.0
      %1477 = vmatprep.subr.mxu0 0.0
      %1478 = vmatpush1.msra.mxu0 0.0
      %1479 = vmatprep.subr.mxu0 0.0
      %1480 = vmatpush1.msra.mxu0 0.0
      %1481 = vmatprep.subr.mxu0 0.0
      %1482 = vmatpush1.msra.mxu0 0.0
      %1483 = vmatprep.subr.mxu0 0.0
      %1484 = vmatpush1.msra.mxu0 0.0
      %1485 = vmatprep.subr.mxu0 0.0
      %1486 = vmatpush1.msra.mxu0 0.0
      %1487 = vmatprep.subr.mxu0 0.0
      %1488 = vmatpush1.msra.mxu0 0.0
      %1489 = vmatprep.subr.mxu0 0.0
      %1490 = vmatpush1.msra.mxu0 0.0
      %1491 = vmatprep.subr.mxu0 0.0
      %1492 = vmatpush1.msra.mxu0 0.0
      %1493 = vmatprep.subr.mxu0 0.0
      %1494 = vmatpush1.msra.mxu0 0.0
      %1495 = vmatprep.mubr.f32.mxu0 0.0
      %1496 = vmatmul.mubr.f32.gmra.mrb[0].mxu0 %v1429
      %v1497 = vpop.f32.mrb[0].mxu0
      %v1498 = vadd.f32 0.0, %v1497
      %v1499 = vpop.f32.mrb[0].mxu0
      %1500 = vdwg.mxu0
      %v1502 = vsel %vm643, %v1275, 0
      %1504 = vmatprep.subr.mxu0 0.0
      %1505 = vmatpush1.msra.mxu0 %v1353
      %1506 = vmatprep.subr.mxu0 0.0
      %1507 = vmatpush1.msra.mxu0 0.0
      %1508 = vmatprep.subr.mxu0 0.0
      %1509 = vmatpush1.msra.mxu0 0.0
      %1510 = vmatprep.subr.mxu0 0.0
      %1511 = vmatpush1.msra.mxu0 0.0
      %1512 = vmatprep.subr.mxu0 0.0
      %1513 = vmatpush1.msra.mxu0 0.0
      %1514 = vmatprep.subr.mxu0 0.0
      %1515 = vmatpush1.msra.mxu0 0.0
      %1516 = vmatprep.subr.mxu0 0.0
      %1517 = vmatpush1.msra.mxu0 0.0
      %1518 = vmatprep.subr.mxu0 0.0
      %1519 = vmatpush1.msra.mxu0 0.0
      %1520 = vmatprep.subr.mxu0 0.0
      %1521 = vmatpush1.msra.mxu0 0.0
      %1522 = vmatprep.subr.mxu0 0.0
      %1523 = vmatpush1.msra.mxu0 0.0
      %1524 = vmatprep.subr.mxu0 0.0
      %1525 = vmatpush1.msra.mxu0 0.0
      %1526 = vmatprep.subr.mxu0 0.0
      %1527 = vmatpush1.msra.mxu0 0.0
      %1528 = vmatprep.subr.mxu0 0.0
      %1529 = vmatpush1.msra.mxu0 0.0
      %1530 = vmatprep.subr.mxu0 0.0
      %1531 = vmatpush1.msra.mxu0 0.0
      %1532 = vmatprep.subr.mxu0 0.0
      %1533 = vmatpush1.msra.mxu0 0.0
      %1534 = vmatprep.subr.mxu0 0.0
      %1535 = vmatpush1.msra.mxu0 0.0
      %1536 = vmatprep.subr.mxu0 0.0
      %1537 = vmatpush1.msra.mxu0 0.0
      %1538 = vmatprep.subr.mxu0 0.0
      %1539 = vmatpush1.msra.mxu0 0.0
      %1540 = vmatprep.subr.mxu0 0.0
      %1541 = vmatpush1.msra.mxu0 0.0
      %1542 = vmatprep.subr.mxu0 0.0
      %1543 = vmatpush1.msra.mxu0 0.0
      %1544 = vmatprep.subr.mxu0 0.0
      %1545 = vmatpush1.msra.mxu0 0.0
      %1546 = vmatprep.subr.mxu0 0.0
      %1547 = vmatpush1.msra.mxu0 0.0
      %1548 = vmatprep.subr.mxu0 0.0
      %1549 = vmatpush1.msra.mxu0 0.0
      %1550 = vmatprep.subr.mxu0 0.0
      %1551 = vmatpush1.msra.mxu0 0.0
      %1552 = vmatprep.subr.mxu0 0.0
      %1553 = vmatpush1.msra.mxu0 0.0
      %1554 = vmatprep.subr.mxu0 0.0
      %1555 = vmatpush1.msra.mxu0 0.0
      %1556 = vmatprep.subr.mxu0 0.0
      %1557 = vmatpush1.msra.mxu0 0.0
      %1558 = vmatprep.subr.mxu0 0.0
      %1559 = vmatpush1.msra.mxu0 0.0
      %1560 = vmatprep.subr.mxu0 0.0
      %1561 = vmatpush1.msra.mxu0 0.0
      %1562 = vmatprep.subr.mxu0 0.0
      %1563 = vmatpush1.msra.mxu0 0.0
      %1564 = vmatprep.subr.mxu0 0.0
      %1565 = vmatpush1.msra.mxu0 0.0
      %1566 = vmatprep.subr.mxu0 0.0
      %1567 = vmatpush1.msra.mxu0 0.0
      %1568 = vmatprep.mubr.f32.mxu0 0.0
      %1569 = vmatmul.mubr.f32.gmra.mrb[0].mxu0 %v1502
      %v1570 = vpop.f32.mrb[0].mxu0
      %v1571 = vadd.f32 0.0, %v1570
      %v1572 = vpop.f32.mrb[0].mxu0
      %1573 = vdwg.mxu0
      %v1575 = vsel %vm643, %v1348, 0
      %1577 = vmatprep.subr.mxu0 0.0
      %1578 = vmatpush1.msra.mxu0 %v1354
      %1579 = vmatprep.subr.mxu0 0.0
      %1580 = vmatpush1.msra.mxu0 0.0
      %1581 = vmatprep.subr.mxu0 0.0
      %1582 = vmatpush1.msra.mxu0 0.0
      %1583 = vmatprep.subr.mxu0 0.0
      %1584 = vmatpush1.msra.mxu0 0.0
      %1585 = vmatprep.subr.mxu0 0.0
      %1586 = vmatpush1.msra.mxu0 0.0
      %1587 = vmatprep.subr.mxu0 0.0
      %1588 = vmatpush1.msra.mxu0 0.0
      %1589 = vmatprep.subr.mxu0 0.0
      %1590 = vmatpush1.msra.mxu0 0.0
      %1591 = vmatprep.subr.mxu0 0.0
      %1592 = vmatpush1.msra.mxu0 0.0
      %1593 = vmatprep.subr.mxu0 0.0
      %1594 = vmatpush1.msra.mxu0 0.0
      %1595 = vmatprep.subr.mxu0 0.0
      %1596 = vmatpush1.msra.mxu0 0.0
      %1597 = vmatprep.subr.mxu0 0.0
      %1598 = vmatpush1.msra.mxu0 0.0
      %1599 = vmatprep.subr.mxu0 0.0
      %1600 = vmatpush1.msra.mxu0 0.0
      %1601 = vmatprep.subr.mxu0 0.0
      %1602 = vmatpush1.msra.mxu0 0.0
      %1603 = vmatprep.subr.mxu0 0.0
      %1604 = vmatpush1.msra.mxu0 0.0
      %1605 = vmatprep.subr.mxu0 0.0
      %1606 = vmatpush1.msra.mxu0 0.0
      %1607 = vmatprep.subr.mxu0 0.0
      %1608 = vmatpush1.msra.mxu0 0.0
      %1609 = vmatprep.subr.mxu0 0.0
      %1610 = vmatpush1.msra.mxu0 0.0
      %1611 = vmatprep.subr.mxu0 0.0
      %1612 = vmatpush1.msra.mxu0 0.0
      %1613 = vmatprep.subr.mxu0 0.0
      %1614 = vmatpush1.msra.mxu0 0.0
      %1615 = vmatprep.subr.mxu0 0.0
      %1616 = vmatpush1.msra.mxu0 0.0
      %1617 = vmatprep.subr.mxu0 0.0
      %1618 = vmatpush1.msra.mxu0 0.0
      %1619 = vmatprep.subr.mxu0 0.0
      %1620 = vmatpush1.msra.mxu0 0.0
      %1621 = vmatprep.subr.mxu0 0.0
      %1622 = vmatpush1.msra.mxu0 0.0
      %1623 = vmatprep.subr.mxu0 0.0
      %1624 = vmatpush1.msra.mxu0 0.0
      %1625 = vmatprep.subr.mxu0 0.0
      %1626 = vmatpush1.msra.mxu0 0.0
      %1627 = vmatprep.subr.mxu0 0.0
      %1628 = vmatpush1.msra.mxu0 0.0
      %1629 = vmatprep.subr.mxu0 0.0
      %1630 = vmatpush1.msra.mxu0 0.0
      %1631 = vmatprep.subr.mxu0 0.0
      %1632 = vmatpush1.msra.mxu0 0.0
      %1633 = vmatprep.subr.mxu0 0.0
      %1634 = vmatpush1.msra.mxu0 0.0
      %1635 = vmatprep.subr.mxu0 0.0
      %1636 = vmatpush1.msra.mxu0 0.0
      %1637 = vmatprep.subr.mxu0 0.0
      %1638 = vmatpush1.msra.mxu0 0.0
      %1639 = vmatprep.subr.mxu0 0.0
      %1640 = vmatpush1.msra.mxu0 0.0
      %1641 = vmatprep.mubr.f32.mxu0 0.0
      %1642 = vmatmul.mubr.f32.gmra.mrb[0].mxu0 %v1575
      %v1643 = vpop.f32.mrb[0].mxu0
      %v1644 = vadd.f32 0.0, %v1643
      %v1645 = vpop.f32.mrb[0].mxu0
      %1646 = vdwg.mxu0
      %v1647 = vsel %vm541, %v1425, 0.0
      %v1648 = vsel %vm541, %v1498, 0.0
      %v1649 = vadd.f32 %v1647, %v1648
      %v1650 = vsel %vm541, %v1571, 0.0
      %v1651 = vadd.f32 %v1649, %v1650
      %v1652 = vsel %vm541, %v1644, 0.0
      %v1653 = vadd.f32 %v1651, %v1652
      %v1654 = vadd.f32 %v539, %v1653
      %v1655 = vlaneseq
      %v1656 = vshrl.u32 %v1655, 7
      %v1657 = vsub.s32 4, %v1656
      %v1658 = vrot.slane %v540, %v1657
      %v1659 = vadd.f32 %v1654, %v1658
      %v1660 = vsel %vm541, %v1659, 0.0
      %1661 = vadd.xlane.f32.xlu0 %v1660
      %v1662 = vpop.xlane.xlu0 %1661
      %v1663 = vmul.f32 %v1662, %v545
      %v1664 = vsub.f32 %v1659, %v1663
      %v1665 = vmul.f32 %v1664, %v1664
      %v1666 = vsel %vm541, %v1665, 0.0
      %1667 = vadd.xlane.f32.xlu0 %v1666
      %v1668 = vpop.xlane.xlu0 %1667
      %v1669 = vmul.f32 %v1668, %v545
      %v1670 = vadd.f32 %v1669, 1e-05
      %v1671 = vrsqrt.pop %v1670
      %v1672 = vmul.f32 %v1664, %v1671
      %v1673 = vlaneseq
      %v1674 = vshrl.u32 %v1673, 7
      %v1675 = vsub.s32 2, %v1674
      %v1676 = vrot.slane %v540, %v1675
      %v1677 = vmul.f32 %v1672, %v1676
      %v1678 = vlaneseq
      %v1679 = vshrl.u32 %v1678, 7
      %v1680 = vsub.s32 3, %v1679
      %v1681 = vrot.slane %v540, %v1680
      %v1682 = vadd.f32 %v1677, %v1681
      %v1683 = vld [vmem:[%s7] sm:$0xff]
      %v1684 = vld [vmem:[%s7 + $0x8] sm:$0xff]
      %v1685 = vld [vmem:[%s7 + $0x10] sm:$0xff]
      %v1686 = vld [vmem:[%s7 + $0x18] sm:$0xff]
      %v1687 = vld [vmem:[%s10] sm:$0x1]
      %v1689 = vlaneseq
      %v1690 = vshrl.u32 %v1689, 7
      %v1691 = vsub.s32 0, %v1690
      %v1692 = vrot.slane %v1687, %v1691
      %v1695 = vsel %vm541, %v1682, 0
      %1697 = vmatprep.subr.mxu0 0.0
      %1698 = vmatpush1.msra.mxu0 %v1683
      %1699 = vmatprep.subr.mxu0 0.0
      %1700 = vmatpush1.msra.mxu0 %v1684
      %1701 = vmatprep.subr.mxu0 0.0
      %1702 = vmatpush1.msra.mxu0 %v1685
      %1703 = vmatprep.subr.mxu0 0.0
      %1704 = vmatpush1.msra.mxu0 %v1686
      %1705 = vmatprep.subr.mxu0 0.0
      %1706 = vmatpush1.msra.mxu0 0.0
      %1707 = vmatprep.subr.mxu0 0.0
      %1708 = vmatpush1.msra.mxu0 0.0
      %1709 = vmatprep.subr.mxu0 0.0
      %1710 = vmatpush1.msra.mxu0 0.0
      %1711 = vmatprep.subr.mxu0 0.0
      %1712 = vmatpush1.msra.mxu0 0.0
      %1713 = vmatprep.subr.mxu0 0.0
      %1714 = vmatpush1.msra.mxu0 0.0
      %1715 = vmatprep.subr.mxu0 0.0
      %1716 = vmatpush1.msra.mxu0 0.0
      %1717 = vmatprep.subr.mxu0 0.0
      %1718 = vmatpush1.msra.mxu0 0.0
      %1719 = vmatprep.subr.mxu0 0.0
      %1720 = vmatpush1.msra.mxu0 0.0
      %1721 = vmatprep.subr.mxu0 0.0
      %1722 = vmatpush1.msra.mxu0 0.0
      %1723 = vmatprep.subr.mxu0 0.0
      %1724 = vmatpush1.msra.mxu0 0.0
      %1725 = vmatprep.subr.mxu0 0.0
      %1726 = vmatpush1.msra.mxu0 0.0
      %1727 = vmatprep.subr.mxu0 0.0
      %1728 = vmatpush1.msra.mxu0 0.0
      %1729 = vmatprep.subr.mxu0 0.0
      %1730 = vmatpush1.msra.mxu0 0.0
      %1731 = vmatprep.subr.mxu0 0.0
      %1732 = vmatpush1.msra.mxu0 0.0
      %1733 = vmatprep.subr.mxu0 0.0
      %1734 = vmatpush1.msra.mxu0 0.0
      %1735 = vmatprep.subr.mxu0 0.0
      %1736 = vmatpush1.msra.mxu0 0.0
      %1737 = vmatprep.subr.mxu0 0.0
      %1738 = vmatpush1.msra.mxu0 0.0
      %1739 = vmatprep.subr.mxu0 0.0
      %1740 = vmatpush1.msra.mxu0 0.0
      %1741 = vmatprep.subr.mxu0 0.0
      %1742 = vmatpush1.msra.mxu0 0.0
      %1743 = vmatprep.subr.mxu0 0.0
      %1744 = vmatpush1.msra.mxu0 0.0
      %1745 = vmatprep.subr.mxu0 0.0
      %1746 = vmatpush1.msra.mxu0 0.0
      %1747 = vmatprep.subr.mxu0 0.0
      %1748 = vmatpush1.msra.mxu0 0.0
      %1749 = vmatprep.subr.mxu0 0.0
      %1750 = vmatpush1.msra.mxu0 0.0
      %1751 = vmatprep.subr.mxu0 0.0
      %1752 = vmatpush1.msra.mxu0 0.0
      %1753 = vmatprep.subr.mxu0 0.0
      %1754 = vmatpush1.msra.mxu0 0.0
      %1755 = vmatprep.subr.mxu0 0.0
      %1756 = vmatpush1.msra.mxu0 0.0
      %1757 = vmatprep.subr.mxu0 0.0
      %1758 = vmatpush1.msra.mxu0 0.0
      %1759 = vmatprep.subr.mxu0 0.0
      %1760 = vmatpush1.msra.mxu0 0.0
      %1761 = vmatprep.mubr.f32.mxu0 0.0
      %1762 = vmatmul.mubr.f32.gmra.mrb[0].mxu0 %v1695
      %v1763 = vpop.f32.mrb[0].mxu0
      %v1764 = vadd.f32 %v1692, %v1763
      %v1765 = vpop.f32.mrb[0].mxu0
      %1766 = vdwg.mxu0
      %v1767 = vmul.f32 %v1764, %v1764
      %v1768 = vmul.f32 %v1764, %v1767
      %v1769 = vmul.f32 %v1768, 0.044715
      %v1770 = vadd.f32 %v1764, %v1769
      %v1771 = vmul.f32 %v1770, 0.7978846
      %v1772 = vtanh.pop %v1771
      %v1773 = vadd.f32 %v1772, 1.0
      %v1774 = vmul.f32 %v1773, 0.5
      %v1775 = vmul.f32 %v1764, %v1774
      %v1776 = vld [vmem:[%s8] sm:$0xff]
      %v1777 = vld [vmem:[%s8 + $0x8] sm:$0xff]
      %v1778 = vld [vmem:[%s8 + $0x10] sm:$0xff]
      %v1779 = vld [vmem:[%s8 + $0x18] sm:$0xff]
      %v1780 = vld [vmem:[%s8 + $0x20] sm:$0xff]
      %v1781 = vld [vmem:[%s8 + $0x28] sm:$0xff]
      %v1782 = vld [vmem:[%s8 + $0x30] sm:$0xff]
      %v1783 = vld [vmem:[%s8 + $0x38] sm:$0xff]
      %vm1784 = vcmask 523264
      %v1786 = vsel %vm1784, %v1775, 0
      %1788 = vmatprep.subr.mxu0 0.0
      %1789 = vmatpush1.msra.mxu0 %v1776
      %1790 = vmatprep.subr.mxu0 0.0
      %1791 = vmatpush1.msra.mxu0 %v1777
      %1792 = vmatprep.subr.mxu0 0.0
      %1793 = vmatpush1.msra.mxu0 %v1778
      %1794 = vmatprep.subr.mxu0 0.0
      %1795 = vmatpush1.msra.mxu0 %v1779
      %1796 = vmatprep.subr.mxu0 0.0
      %1797 = vmatpush1.msra.mxu0 %v1780
      %1798 = vmatprep.subr.mxu0 0.0
      %1799 = vmatpush1.msra.mxu0 %v1781
      %1800 = vmatprep.subr.mxu0 0.0
      %1801 = vmatpush1.msra.mxu0 %v1782
      %1802 = vmatprep.subr.mxu0 0.0
      %1803 = vmatpush1.msra.mxu0 %v1783
      %1804 = vmatprep.subr.mxu0 0.0
      %1805 = vmatpush1.msra.mxu0 0.0
      %1806 = vmatprep.subr.mxu0 0.0
      %1807 = vmatpush1.msra.mxu0 0.0
      %1808 = vmatprep.subr.mxu0 0.0
      %1809 = vmatpush1.msra.mxu0 0.0
      %1810 = vmatprep.subr.mxu0 0.0
      %1811 = vmatpush1.msra.mxu0 0.0
      %1812 = vmatprep.subr.mxu0 0.0
      %1813 = vmatpush1.msra.mxu0 0.0
      %1814 = vmatprep.subr.mxu0 0.0
      %1815 = vmatpush1.msra.mxu0 0.0
      %1816 = vmatprep.subr.mxu0 0.0
      %1817 = vmatpush1.msra.mxu0 0.0
      %1818 = vmatprep.subr.mxu0 0.0
      %1819 = vmatpush1.msra.mxu0 0.0
      %1820 = vmatprep.subr.mxu0 0.0
      %1821 = vmatpush1.msra.mxu0 0.0
      %1822 = vmatprep.subr.mxu0 0.0
      %1823 = vmatpush1.msra.mxu0 0.0
      %1824 = vmatprep.subr.mxu0 0.0
      %1825 = vmatpush1.msra.mxu0 0.0
      %1826 = vmatprep.subr.mxu0 0.0
      %1827 = vmatpush1.msra.mxu0 0.0
      %1828 = vmatprep.subr.mxu0 0.0
      %1829 = vmatpush1.msra.mxu0 0.0
      %1830 = vmatprep.subr.mxu0 0.0
      %1831 = vmatpush1.msra.mxu0 0.0
      %1832 = vmatprep.subr.mxu0 0.0
      %1833 = vmatpush1.msra.mxu0 0.0
      %1834 = vmatprep.subr.mxu0 0.0
      %1835 = vmatpush1.msra.mxu0 0.0
      %1836 = vmatprep.subr.mxu0 0.0
      %1837 = vmatpush1.msra.mxu0 0.0
      %1838 = vmatprep.subr.mxu0 0.0
      %1839 = vmatpush1.msra.mxu0 0.0
      %1840 = vmatprep.subr.mxu0 0.0
      %1841 = vmatpush1.msra.mxu0 0.0
      %1842 = vmatprep.subr.mxu0 0.0
      %1843 = vmatpush1.msra.mxu0 0.0
      %1844 = vmatprep.subr.mxu0 0.0
      %1845 = vmatpush1.msra.mxu0 0.0
      %1846 = vmatprep.subr.mxu0 0.0
      %1847 = vmatpush1.msra.mxu0 0.0
      %1848 = vmatprep.subr.mxu0 0.0
      %1849 = vmatpush1.msra.mxu0 0.0
      %1850 = vmatprep.subr.mxu0 0.0
      %1851 = vmatpush1.msra.mxu0 0.0
      %1852 = vmatprep.mubr.f32.mxu0 0.0
      %1853 = vmatmul.mubr.f32.gmra.mrb[0].mxu0 %v1786
      %v1854 = vpop.f32.mrb[0].mxu0
      %v1855 = vadd.f32 0.0, %v1854
      %v1856 = vpop.f32.mrb[0].mxu0
      %1857 = vdwg.mxu0
      %v1858 = vadd.f32 %v1659, %v1855
      %v1859 = vlaneseq
      %v1860 = vshrl.u32 %v1859, 7
      %v1861 = vsub.s32 5, %v1860
      %v1862 = vrot.slane %v540, %v1861
      %v1863 = vadd.f32 %v1858, %v1862
      %s1864 = scalar_lea.vmem %s9, 8
      %v1865 = vld [vmem:[%s1864] sm:$0xff]
      %v1866 = vsel %vm541, %v1863, 0.0
      %1867 = vadd.xlane.f32.xlu0 %v1866
      %v1868 = vpop.xlane.xlu0 %1867
      %v1869 = vmul.f32 %v1868, %v545
      %v1870 = vsub.f32 %v1863, %v1869
      %v1871 = vmul.f32 %v1870, %v1870
      %v1872 = vsel %vm541, %v1871, 0.0
      %1873 = vadd.xlane.f32.xlu0 %v1872
      %v1874 = vpop.xlane.xlu0 %1873
      %v1875 = vmul.f32 %v1874, %v545
      %v1876 = vadd.f32 %v1875, 1e-05
      %v1877 = vrsqrt.pop %v1876
      %v1878 = vmul.f32 %v1870, %v1877
      %v1879 = vlaneseq
      %v1880 = vshrl.u32 %v1879, 7
      %v1881 = vsub.s32 0, %v1880
      %v1882 = vrot.slane %v1865, %v1881
      %v1883 = vmul.f32 %v1878, %v1882
      %v1884 = vlaneseq
      %v1885 = vshrl.u32 %v1884, 7
      %v1886 = vsub.s32 1, %v1885
      %v1887 = vrot.slane %v1865, %v1886
      %v1888 = vadd.f32 %v1883, %v1887
      %s1889 = scalar_lea.vmem %s5, 32
      %v1890 = vld [vmem:[%s1889] sm:$0xff]
      %v1891 = vld [vmem:[%s1889 + $0x8] sm:$0xff]
      %v1892 = vld [vmem:[%s1889 + $0x10] sm:$0xff]
      %v1893 = vld [vmem:[%s1889 + $0x18] sm:$0xff]
      %v1895 = vsel %vm541, %v1888, 0
      %1897 = vmatprep.subr.mxu0 0.0
      %1898 = vmatpush1.msra.mxu0 %v1890
      %1899 = vmatprep.subr.mxu0 0.0
      %1900 = vmatpush1.msra.mxu0 %v1891
      %1901 = vmatprep.subr.mxu0 0.0
      %1902 = vmatpush1.msra.mxu0 %v1892
      %1903 = vmatprep.subr.mxu0 0.0
      %1904 = vmatpush1.msra.mxu0 %v1893
      %1905 = vmatprep.subr.mxu0 0.0
      %1906 = vmatpush1.msra.mxu0 0.0
      %1907 = vmatprep.subr.mxu0 0.0
      %1908 = vmatpush1.msra.mxu0 0.0
      %1909 = vmatprep.subr.mxu0 0.0
      %1910 = vmatpush1.msra.mxu0 0.0
      %1911 = vmatprep.subr.mxu0 0.0
      %1912 = vmatpush1.msra.mxu0 0.0
      %1913 = vmatprep.subr.mxu0 0.0
      %1914 = vmatpush1.msra.mxu0 0.0
      %1915 = vmatprep.subr.mxu0 0.0
      %1916 = vmatpush1.msra.mxu0 0.0
      %1917 = vmatprep.subr.mxu0 0.0
      %1918 = vmatpush1.msra.mxu0 0.0
      %1919 = vmatprep.subr.mxu0 0.0
      %1920 = vmatpush1.msra.mxu0 0.0
      %1921 = vmatprep.subr.mxu0 0.0
      %1922 = vmatpush1.msra.mxu0 0.0
      %1923 = vmatprep.subr.mxu0 0.0
      %1924 = vmatpush1.msra.mxu0 0.0
      %1925 = vmatprep.subr.mxu0 0.0
      %1926 = vmatpush1.msra.mxu0 0.0
      %1927 = vmatprep.subr.mxu0 0.0
      %1928 = vmatpush1.msra.mxu0 0.0
      %1929 = vmatprep.subr.mxu0 0.0
      %1930 = vmatpush1.msra.mxu0 0.0
      %1931 = vmatprep.subr.mxu0 0.0
      %1932 = vmatpush1.msra.mxu0 0.0
      %1933 = vmatprep.subr.mxu0 0.0
      %1934 = vmatpush1.msra.mxu0 0.0
      %1935 = vmatprep.subr.mxu0 0.0
      %1936 = vmatpush1.msra.mxu0 0.0
      %1937 = vmatprep.subr.mxu0 0.0
      %1938 = vmatpush1.msra.mxu0 0.0
      %1939 = vmatprep.subr.mxu0 0.0
      %1940 = vmatpush1.msra.mxu0 0.0
      %1941 = vmatprep.subr.mxu0 0.0
      %1942 = vmatpush1.msra.mxu0 0.0
      %1943 = vmatprep.subr.mxu0 0.0
      %1944 = vmatpush1.msra.mxu0 0.0
      %1945 = vmatprep.subr.mxu0 0.0
      %1946 = vmatpush1.msra.mxu0 0.0
      %1947 = vmatprep.subr.mxu0 0.0
      %1948 = vmatpush1.msra.mxu0 0.0
      %1949 = vmatprep.subr.mxu0 0.0
      %1950 = vmatpush1.msra.mxu0 0.0
      %1951 = vmatprep.subr.mxu0 0.0
      %1952 = vmatpush1.msra.mxu0 0.0
      %1953 = vmatprep.subr.mxu0 0.0
      %1954 = vmatpush1.msra.mxu0 0.0
      %1955 = vmatprep.subr.mxu0 0.0
      %1956 = vmatpush1.msra.mxu0 0.0
      %1957 = vmatprep.subr.mxu0 0.0
      %1958 = vmatpush1.msra.mxu0 0.0
      %1959 = vmatprep.subr.mxu0 0.0
      %1960 = vmatpush1.msra.mxu0 0.0
      %1961 = vmatprep.mubr.f32.mxu0 0.0
      %1962 = vmatmul.mubr.f32.gmra.mrb[0].mxu0 %v1895
      %v1963 = vpop.f32.mrb[0].mxu0
      %v1964 = vadd.f32 0.0, %v1963
      %v1965 = vpop.f32.mrb[0].mxu0
      %1966 = vdwg.mxu0
      %1967 = vst.msk [vmem:[#allocation2] sm:$0xff] %vm643, %v1964
      %1969 = vrot.lane.b32.xlu0 %v1964, 96
      %v1970 = vpop.permute.xlu0 %1969
      %1972 = vst.msk [vmem:[#allocation3] sm:$0xff] %vm643, %v1970
      %1973 = vrot.lane.b32.xlu0 %v1964, 64
      %v1974 = vpop.permute.xlu0 %1973
      %1976 = vst.msk [vmem:[#allocation4] sm:$0xff] %vm643, %v1974
      %1977 = vrot.lane.b32.xlu0 %v1964, 120
      %v1978 = vpop.permute.xlu0 %1977
      %1980 = vst.msk [vmem:[%s657] sm:$0xff] %vm643, %v1978
      %1981 = vrot.lane.b32.xlu0 %v1964, 88
      %v1982 = vpop.permute.xlu0 %1981
      %1984 = vst.msk [vmem:[%s662] sm:$0xff] %vm643, %v1982
      %1985 = vrot.lane.b32.xlu0 %v1964, 56
      %v1986 = vpop.permute.xlu0 %1985
      %1988 = vst.msk [vmem:[%s667] sm:$0xff] %vm643, %v1986
      %1989 = vrot.lane.b32.xlu0 %v1964, 112
      %v1990 = vpop.permute.xlu0 %1989
      %1992 = vst.msk [vmem:[%s672] sm:$0xff] %vm643, %v1990
      %1993 = vrot.lane.b32.xlu0 %v1964, 80
      %v1994 = vpop.permute.xlu0 %1993
      %1996 = vst.msk [vmem:[%s677] sm:$0xff] %vm643, %v1994
      %1997 = vrot.lane.b32.xlu0 %v1964, 48
      %v1998 = vpop.permute.xlu0 %1997
      %2000 = vst.msk [vmem:[%s682] sm:$0xff] %vm643, %v1998
      %2001 = vrot.lane.b32.xlu0 %v1964, 104
      %v2002 = vpop.permute.xlu0 %2001
      %2004 = vst.msk [vmem:[%s687] sm:$0xff] %vm643, %v2002
      %2005 = vrot.lane.b32.xlu0 %v1964, 72
      %v2006 = vpop.permute.xlu0 %2005
      %2008 = vst.msk [vmem:[%s692] sm:$0xff] %vm643, %v2006
      %2009 = vrot.lane.b32.xlu0 %v1964, 40
      %v2010 = vpop.permute.xlu0 %2009
      %2012 = vst.msk [vmem:[%s697] sm:$0xff] %vm643, %v2010
      %v2013 = vld [vmem:[#allocation2] sm:$0xff]
      %v2014 = vld [vmem:[#allocation2 + $0x8] sm:$0xff]
      %v2015 = vld [vmem:[#allocation2 + $0x10] sm:$0xff]
      %v2016 = vld [vmem:[#allocation2 + $0x18] sm:$0xff]
      %v2017 = vld [vmem:[#allocation3] sm:$0xff]
      %v2018 = vld [vmem:[#allocation3 + $0x8] sm:$0xff]
      %v2019 = vld [vmem:[#allocation3 + $0x10] sm:$0xff]
      %v2020 = vld [vmem:[#allocation3 + $0x18] sm:$0xff]
      %v2021 = vld [vmem:[#allocation4] sm:$0xff]
      %v2022 = vld [vmem:[#allocation4 + $0x8] sm:$0xff]
      %v2023 = vld [vmem:[#allocation4 + $0x10] sm:$0xff]
      %v2024 = vld [vmem:[#allocation4 + $0x18] sm:$0xff]
      %v2026 = vsel %vm643, %v2013, 0
      %v2029 = vsel %vm643, %v2017, 0
      %2031 = vmatprep.subr.mxu0 0.0
      %2032 = vmatpush1.xpose.msra.mxu0 %v2029
      %2033 = vmatprep.subr.mxu0 0.0
      %2034 = vmatpush1.xpose.msra.mxu0 0.0
      %2035 = vmatprep.subr.mxu0 0.0
      %2036 = vmatpush1.xpose.msra.mxu0 0.0
      %2037 = vmatprep.subr.mxu0 0.0
      %2038 = vmatpush1.xpose.msra.mxu0 0.0
      %2039 = vmatprep.subr.mxu0 0.0
      %2040 = vmatpush1.xpose.msra.mxu0 0.0
      %2041 = vmatprep.subr.mxu0 0.0
      %2042 = vmatpush1.xpose.msra.mxu0 0.0
      %2043 = vmatprep.subr.mxu0 0.0
      %2044 = vmatpush1.xpose.msra.mxu0 0.0
      %2045 = vmatprep.subr.mxu0 0.0
      %2046 = vmatpush1.xpose.msra.mxu0 0.0
      %2047 = vmatprep.subr.mxu0 0.0
      %2048 = vmatpush1.xpose.msra.mxu0 0.0
      %2049 = vmatprep.subr.mxu0 0.0
      %2050 = vmatpush1.xpose.msra.mxu0 0.0
      %2051 = vmatprep.subr.mxu0 0.0
      %2052 = vmatpush1.xpose.msra.mxu0 0.0
      %2053 = vmatprep.subr.mxu0 0.0
      %2054 = vmatpush1.xpose.msra.mxu0 0.0
      %2055 = vmatprep.subr.mxu0 0.0
      %2056 = vmatpush1.xpose.msra.mxu0 0.0
      %2057 = vmatprep.subr.mxu0 0.0
      %2058 = vmatpush1.xpose.msra.mxu0 0.0
      %2059 = vmatprep.subr.mxu0 0.0
      %2060 = vmatpush1.xpose.msra.mxu0 0.0
      %2061 = vmatprep.subr.mxu0 0.0
      %2062 = vmatpush1.xpose.msra.mxu0 0.0
      %2063 = vmatprep.subr.mxu0 0.0
      %2064 = vmatpush1.xpose.msra.mxu0 0.0
      %2065 = vmatprep.subr.mxu0 0.0
      %2066 = vmatpush1.xpose.msra.mxu0 0.0
      %2067 = vmatprep.subr.mxu0 0.0
      %2068 = vmatpush1.xpose.msra.mxu0 0.0
      %2069 = vmatprep.subr.mxu0 0.0
      %2070 = vmatpush1.xpose.msra.mxu0 0.0
      %2071 = vmatprep.subr.mxu0 0.0
      %2072 = vmatpush1.xpose.msra.mxu0 0.0
      %2073 = vmatprep.subr.mxu0 0.0
      %2074 = vmatpush1.xpose.msra.mxu0 0.0
      %2075 = vmatprep.subr.mxu0 0.0
      %2076 = vmatpush1.xpose.msra.mxu0 0.0
      %2077 = vmatprep.subr.mxu0 0.0
      %2078 = vmatpush1.xpose.msra.mxu0 0.0
      %2079 = vmatprep.subr.mxu0 0.0
      %2080 = vmatpush1.xpose.msra.mxu0 0.0
      %2081 = vmatprep.subr.mxu0 0.0
      %2082 = vmatpush1.xpose.msra.mxu0 0.0
      %2083 = vmatprep.subr.mxu0 0.0
      %2084 = vmatpush1.xpose.msra.mxu0 0.0
      %2085 = vmatprep.subr.mxu0 0.0
      %2086 = vmatpush1.xpose.msra.mxu0 0.0
      %2087 = vmatprep.subr.mxu0 0.0
      %2088 = vmatpush1.xpose.msra.mxu0 0.0
      %2089 = vmatprep.subr.mxu0 0.0
      %2090 = vmatpush1.xpose.msra.mxu0 0.0
      %2091 = vmatprep.subr.mxu0 0.0
      %2092 = vmatpush1.xpose.msra.mxu0 0.0
      %2093 = vmatprep.subr.mxu0 0.0
      %2094 = vmatpush1.xpose.msra.mxu0 0.0
      %2095 = vmatprep.mubr.f32.mxu0 0.0
      %2096 = vmatmul.mubr.f32.gmra.mrb[0].mxu0 %v2026
      %v2097 = vpop.f32.mrb[0].mxu0
      %v2098 = vadd.f32 0.0, %v2097
      %v2099 = vpop.f32.mrb[0].mxu0
      %2100 = vdwg.mxu0
      %v2102 = vsel %vm643, %v2014, 0
      %v2105 = vsel %vm643, %v2018, 0
      %2107 = vmatprep.subr.mxu0 0.0
      %2108 = vmatpush1.xpose.msra.mxu0 %v2105
      %2109 = vmatprep.subr.mxu0 0.0
      %2110 = vmatpush1.xpose.msra.mxu0 0.0
      %2111 = vmatprep.subr.mxu0 0.0
      %2112 = vmatpush1.xpose.msra.mxu0 0.0
      %2113 = vmatprep.subr.mxu0 0.0
      %2114 = vmatpush1.xpose.msra.mxu0 0.0
      %2115 = vmatprep.subr.mxu0 0.0
      %2116 = vmatpush1.xpose.msra.mxu0 0.0
      %2117 = vmatprep.subr.mxu0 0.0
      %2118 = vmatpush1.xpose.msra.mxu0 0.0
      %2119 = vmatprep.subr.mxu0 0.0
      %2120 = vmatpush1.xpose.msra.mxu0 0.0
      %2121 = vmatprep.subr.mxu0 0.0
      %2122 = vmatpush1.xpose.msra.mxu0 0.0
      %2123 = vmatprep.subr.mxu0 0.0
      %2124 = vmatpush1.xpose.msra.mxu0 0.0
      %2125 = vmatprep.subr.mxu0 0.0
      %2126 = vmatpush1.xpose.msra.mxu0 0.0
      %2127 = vmatprep.subr.mxu0 0.0
      %2128 = vmatpush1.xpose.msra.mxu0 0.0
      %2129 = vmatprep.subr.mxu0 0.0
      %2130 = vmatpush1.xpose.msra.mxu0 0.0
      %2131 = vmatprep.subr.mxu0 0.0
      %2132 = vmatpush1.xpose.msra.mxu0 0.0
      %2133 = vmatprep.subr.mxu0 0.0
      %2134 = vmatpush1.xpose.msra.mxu0 0.0
      %2135 = vmatprep.subr.mxu0 0.0
      %2136 = vmatpush1.xpose.msra.mxu0 0.0
      %2137 = vmatprep.subr.mxu0 0.0
      %2138 = vmatpush1.xpose.msra.mxu0 0.0
      %2139 = vmatprep.subr.mxu0 0.0
      %2140 = vmatpush1.xpose.msra.mxu0 0.0
      %2141 = vmatprep.subr.mxu0 0.0
      %2142 = vmatpush1.xpose.msra.mxu0 0.0
      %2143 = vmatprep.subr.mxu0 0.0
      %2144 = vmatpush1.xpose.msra.mxu0 0.0
      %2145 = vmatprep.subr.mxu0 0.0
      %2146 = vmatpush1.xpose.msra.mxu0 0.0
      %2147 = vmatprep.subr.mxu0 0.0
      %2148 = vmatpush1.xpose.msra.mxu0 0.0
      %2149 = vmatprep.subr.mxu0 0.0
      %2150 = vmatpush1.xpose.msra.mxu0 0.0
      %2151 = vmatprep.subr.mxu0 0.0
      %2152 = vmatpush1.xpose.msra.mxu0 0.0
      %2153 = vmatprep.subr.mxu0 0.0
      %2154 = vmatpush1.xpose.msra.mxu0 0.0
      %2155 = vmatprep.subr.mxu0 0.0
      %2156 = vmatpush1.xpose.msra.mxu0 0.0
      %2157 = vmatprep.subr.mxu0 0.0
      %2158 = vmatpush1.xpose.msra.mxu0 0.0
      %2159 = vmatprep.subr.mxu0 0.0
      %2160 = vmatpush1.xpose.msra.mxu0 0.0
      %2161 = vmatprep.subr.mxu0 0.0
      %2162 = vmatpush1.xpose.msra.mxu0 0.0
      %2163 = vmatprep.subr.mxu0 0.0
      %2164 = vmatpush1.xpose.msra.mxu0 0.0
      %2165 = vmatprep.subr.mxu0 0.0
      %2166 = vmatpush1.xpose.msra.mxu0 0.0
      %2167 = vmatprep.subr.mxu0 0.0
      %2168 = vmatpush1.xpose.msra.mxu0 0.0
      %2169 = vmatprep.subr.mxu0 0.0
      %2170 = vmatpush1.xpose.msra.mxu0 0.0
      %2171 = vmatprep.mubr.f32.mxu0 0.0
      %2172 = vmatmul.mubr.f32.gmra.mrb[0].mxu0 %v2102
      %v2173 = vpop.f32.mrb[0].mxu0
      %v2174 = vadd.f32 0.0, %v2173
      %v2175 = vpop.f32.mrb[0].mxu0
      %2176 = vdwg.mxu0
      %v2178 = vsel %vm643, %v2015, 0
      %v2181 = vsel %vm643, %v2019, 0
      %2183 = vmatprep.subr.mxu0 0.0
      %2184 = vmatpush1.xpose.msra.mxu0 %v2181
      %2185 = vmatprep.subr.mxu0 0.0
      %2186 = vmatpush1.xpose.msra.mxu0 0.0
      %2187 = vmatprep.subr.mxu0 0.0
      %2188 = vmatpush1.xpose.msra.mxu0 0.0
      %2189 = vmatprep.subr.mxu0 0.0
      %2190 = vmatpush1.xpose.msra.mxu0 0.0
      %2191 = vmatprep.subr.mxu0 0.0
      %2192 = vmatpush1.xpose.msra.mxu0 0.0
      %2193 = vmatprep.subr.mxu0 0.0
      %2194 = vmatpush1.xpose.msra.mxu0 0.0
      %2195 = vmatprep.subr.mxu0 0.0
      %2196 = vmatpush1.xpose.msra.mxu0 0.0
      %2197 = vmatprep.subr.mxu0 0.0
      %2198 = vmatpush1.xpose.msra.mxu0 0.0
      %2199 = vmatprep.subr.mxu0 0.0
      %2200 = vmatpush1.xpose.msra.mxu0 0.0
      %2201 = vmatprep.subr.mxu0 0.0
      %2202 = vmatpush1.xpose.msra.mxu0 0.0
      %2203 = vmatprep.subr.mxu0 0.0
      %2204 = vmatpush1.xpose.msra.mxu0 0.0
      %2205 = vmatprep.subr.mxu0 0.0
      %2206 = vmatpush1.xpose.msra.mxu0 0.0
      %2207 = vmatprep.subr.mxu0 0.0
      %2208 = vmatpush1.xpose.msra.mxu0 0.0
      %2209 = vmatprep.subr.mxu0 0.0
      %2210 = vmatpush1.xpose.msra.mxu0 0.0
      %2211 = vmatprep.subr.mxu0 0.0
      %2212 = vmatpush1.xpose.msra.mxu0 0.0
      %2213 = vmatprep.subr.mxu0 0.0
      %2214 = vmatpush1.xpose.msra.mxu0 0.0
      %2215 = vmatprep.subr.mxu0 0.0
      %2216 = vmatpush1.xpose.msra.mxu0 0.0
      %2217 = vmatprep.subr.mxu0 0.0
      %2218 = vmatpush1.xpose.msra.mxu0 0.0
      %2219 = vmatprep.subr.mxu0 0.0
      %2220 = vmatpush1.xpose.msra.mxu0 0.0
      %2221 = vmatprep.subr.mxu0 0.0
      %2222 = vmatpush1.xpose.msra.mxu0 0.0
      %2223 = vmatprep.subr.mxu0 0.0
      %2224 = vmatpush1.xpose.msra.mxu0 0.0
      %2225 = vmatprep.subr.mxu0 0.0
      %2226 = vmatpush1.xpose.msra.mxu0 0.0
      %2227 = vmatprep.subr.mxu0 0.0
      %2228 = vmatpush1.xpose.msra.mxu0 0.0
      %2229 = vmatprep.subr.mxu0 0.0
      %2230 = vmatpush1.xpose.msra.mxu0 0.0
      %2231 = vmatprep.subr.mxu0 0.0
      %2232 = vmatpush1.xpose.msra.mxu0 0.0
      %2233 = vmatprep.subr.mxu0 0.0
      %2234 = vmatpush1.xpose.msra.mxu0 0.0
      %2235 = vmatprep.subr.mxu0 0.0
      %2236 = vmatpush1.xpose.msra.mxu0 0.0
      %2237 = vmatprep.subr.mxu0 0.0
      %2238 = vmatpush1.xpose.msra.mxu0 0.0
      %2239 = vmatprep.subr.mxu0 0.0
      %2240 = vmatpush1.xpose.msra.mxu0 0.0
      %2241 = vmatprep.subr.mxu0 0.0
      %2242 = vmatpush1.xpose.msra.mxu0 0.0
      %2243 = vmatprep.subr.mxu0 0.0
      %2244 = vmatpush1.xpose.msra.mxu0 0.0
      %2245 = vmatprep.subr.mxu0 0.0
      %2246 = vmatpush1.xpose.msra.mxu0 0.0
      %2247 = vmatprep.mubr.f32.mxu0 0.0
      %2248 = vmatmul.mubr.f32.gmra.mrb[0].mxu0 %v2178
      %v2249 = vpop.f32.mrb[0].mxu0
      %v2250 = vadd.f32 0.0, %v2249
      %v2251 = vpop.f32.mrb[0].mxu0
      %2252 = vdwg.mxu0
      %v2254 = vsel %vm643, %v2016, 0
      %v2257 = vsel %vm643, %v2020, 0
      %2259 = vmatprep.subr.mxu0 0.0
      %2260 = vmatpush1.xpose.msra.mxu0 %v2257
      %2261 = vmatprep.subr.mxu0 0.0
      %2262 = vmatpush1.xpose.msra.mxu0 0.0
      %2263 = vmatprep.subr.mxu0 0.0
      %2264 = vmatpush1.xpose.msra.mxu0 0.0
      %2265 = vmatprep.subr.mxu0 0.0
      %2266 = vmatpush1.xpose.msra.mxu0 0.0
      %2267 = vmatprep.subr.mxu0 0.0
      %2268 = vmatpush1.xpose.msra.mxu0 0.0
      %2269 = vmatprep.subr.mxu0 0.0
      %2270 = vmatpush1.xpose.msra.mxu0 0.0
      %2271 = vmatprep.subr.mxu0 0.0
      %2272 = vmatpush1.xpose.msra.mxu0 0.0
      %2273 = vmatprep.subr.mxu0 0.0
      %2274 = vmatpush1.xpose.msra.mxu0 0.0
      %2275 = vmatprep.subr.mxu0 0.0
      %2276 = vmatpush1.xpose.msra.mxu0 0.0
      %2277 = vmatprep.subr.mxu0 0.0
      %2278 = vmatpush1.xpose.msra.mxu0 0.0
      %2279 = vmatprep.subr.mxu0 0.0
      %2280 = vmatpush1.xpose.msra.mxu0 0.0
      %2281 = vmatprep.subr.mxu0 0.0
      %2282 = vmatpush1.xpose.msra.mxu0 0.0
      %2283 = vmatprep.subr.mxu0 0.0
      %2284 = vmatpush1.xpose.msra.mxu0 0.0
      %2285 = vmatprep.subr.mxu0 0.0
      %2286 = vmatpush1.xpose.msra.mxu0 0.0
      %2287 = vmatprep.subr.mxu0 0.0
      %2288 = vmatpush1.xpose.msra.mxu0 0.0
      %2289 = vmatprep.subr.mxu0 0.0
      %2290 = vmatpush1.xpose.msra.mxu0 0.0
      %2291 = vmatprep.subr.mxu0 0.0
      %2292 = vmatpush1.xpose.msra.mxu0 0.0
      %2293 = vmatprep.subr.mxu0 0.0
      %2294 = vmatpush1.xpose.msra.mxu0 0.0
      %2295 = vmatprep.subr.mxu0 0.0
      %2296 = vmatpush1.xpose.msra.mxu0 0.0
      %2297 = vmatprep.subr.mxu0 0.0
      %2298 = vmatpush1.xpose.msra.mxu0 0.0
      %2299 = vmatprep.subr.mxu0 0.0
      %2300 = vmatpush1.xpose.msra.mxu0 0.0
      %2301 = vmatprep.subr.mxu0 0.0
      %2302 = vmatpush1.xpose.msra.mxu0 0.0
      %2303 = vmatprep.subr.mxu0 0.0
      %2304 = vmatpush1.xpose.msra.mxu0 0.0
      %2305 = vmatprep.subr.mxu0 0.0
      %2306 = vmatpush1.xpose.msra.mxu0 0.0
      %2307 = vmatprep.subr.mxu0 0.0
      %2308 = vmatpush1.xpose.msra.mxu0 0.0
      %2309 = vmatprep.subr.mxu0 0.0
      %2310 = vmatpush1.xpose.msra.mxu0 0.0
      %2311 = vmatprep.subr.mxu0 0.0
      %2312 = vmatpush1.xpose.msra.mxu0 0.0
      %2313 = vmatprep.subr.mxu0 0.0
      %2314 = vmatpush1.xpose.msra.mxu0 0.0
      %2315 = vmatprep.subr.mxu0 0.0
      %2316 = vmatpush1.xpose.msra.mxu0 0.0
      %2317 = vmatprep.subr.mxu0 0.0
      %2318 = vmatpush1.xpose.msra.mxu0 0.0
      %2319 = vmatprep.subr.mxu0 0.0
      %2320 = vmatpush1.xpose.msra.mxu0 0.0
      %2321 = vmatprep.subr.mxu0 0.0
      %2322 = vmatpush1.xpose.msra.mxu0 0.0
      %2323 = vmatprep.mubr.f32.mxu0 0.0
      %2324 = vmatmul.mubr.f32.gmra.mrb[0].mxu0 %v2254
      %v2325 = vpop.f32.mrb[0].mxu0
      %v2326 = vadd.f32 0.0, %v2325
      %v2327 = vpop.f32.mrb[0].mxu0
      %2328 = vdwg.mxu0
      %v2329 = vsel %vm643, %v2098, -inf
      %2330 = vmax.xlane.f32.xlu0 %v2329
      %v2331 = vpop.xlane.xlu0 %2330
      %v2332 = vsel %vm643, %v2174, -inf
      %2333 = vmax.xlane.f32.xlu0 %v2332
      %v2334 = vpop.xlane.xlu0 %2333
      %v2335 = vsel %vm643, %v2250, -inf
      %2336 = vmax.xlane.f32.xlu0 %v2335
      %v2337 = vpop.xlane.xlu0 %2336
      %v2338 = vsel %vm643, %v2326, -inf
      %2339 = vmax.xlane.f32.xlu0 %v2338
      %v2340 = vpop.xlane.xlu0 %2339
      %v2341 = vsub.f32 %v2098, %v2331
      %v2342 = vsub.f32 %v2174, %v2334
      %v2343 = vsub.f32 %v2250, %v2337
      %v2344 = vsub.f32 %v2326, %v2340
      %v2345 = vmul.f32 %v2341, 1.442695
      %v2346 = vpow.pop %v2345
      %v2347 = vmul.f32 %v2342, 1.442695
      %v2348 = vpow.pop %v2347
      %v2349 = vmul.f32 %v2343, 1.442695
      %v2350 = vpow.pop %v2349
      %v2351 = vmul.f32 %v2344, 1.442695
      %v2352 = vpow.pop %v2351
      %v2353 = vsel %vm643, %v2346, 0.0
      %2354 = vadd.xlane.f32.xlu0 %v2353
      %v2355 = vpop.xlane.xlu0 %2354
      %v2356 = vsel %vm643, %v2348, 0.0
      %2357 = vadd.xlane.f32.xlu0 %v2356
      %v2358 = vpop.xlane.xlu0 %2357
      %v2359 = vsel %vm643, %v2350, 0.0
      %2360 = vadd.xlane.f32.xlu0 %v2359
      %v2361 = vpop.xlane.xlu0 %2360
      %v2362 = vsel %vm643, %v2352, 0.0
      %2363 = vadd.xlane.f32.xlu0 %v2362
      %v2364 = vpop.xlane.xlu0 %2363
      %v2365 = vrcp.pop %v2355
      %v2366 = vrcp.pop %v2358
      %v2367 = vrcp.pop %v2361
      %v2368 = vrcp.pop %v2364
      %v2369 = vmul.f32 %v2346, %v2365
      %v2370 = vmul.f32 %v2348, %v2366
      %v2371 = vmul.f32 %v2350, %v2367
      %v2372 = vmul.f32 %v2352, %v2368
      %v2374 = vsel %vm643, %v2369, 0
      %2376 = vmatprep.subr.mxu0 0.0
      %2377 = vmatpush1.msra.mxu0 %v2021
      %2378 = vmatprep.subr.mxu0 0.0
      %2379 = vmatpush1.msra.mxu0 0.0
      %2380 = vmatprep.subr.mxu0 0.0
      %2381 = vmatpush1.msra.mxu0 0.0
      %2382 = vmatprep.subr.mxu0 0.0
      %2383 = vmatpush1.msra.mxu0 0.0
      %2384 = vmatprep.subr.mxu0 0.0
      %2385 = vmatpush1.msra.mxu0 0.0
      %2386 = vmatprep.subr.mxu0 0.0
      %2387 = vmatpush1.msra.mxu0 0.0
      %2388 = vmatprep.subr.mxu0 0.0
      %2389 = vmatpush1.msra.mxu0 0.0
      %2390 = vmatprep.subr.mxu0 0.0
      %2391 = vmatpush1.msra.mxu0 0.0
      %2392 = vmatprep.subr.mxu0 0.0
      %2393 = vmatpush1.msra.mxu0 0.0
      %2394 = vmatprep.subr.mxu0 0.0
      %2395 = vmatpush1.msra.mxu0 0.0
      %2396 = vmatprep.subr.mxu0 0.0
      %2397 = vmatpush1.msra.mxu0 0.0
      %2398 = vmatprep.subr.mxu0 0.0
      %2399 = vmatpush1.msra.mxu0 0.0
      %2400 = vmatprep.subr.mxu0 0.0
      %2401 = vmatpush1.msra.mxu0 0.0
      %2402 = vmatprep.subr.mxu0 0.0
      %2403 = vmatpush1.msra.mxu0 0.0
      %2404 = vmatprep.subr.mxu0 0.0
      %2405 = vmatpush1.msra.mxu0 0.0
      %2406 = vmatprep.subr.mxu0 0.0
      %2407 = vmatpush1.msra.mxu0 0.0
      %2408 = vmatprep.subr.mxu0 0.0
      %2409 = vmatpush1.msra.mxu0 0.0
      %2410 = vmatprep.subr.mxu0 0.0
      %2411 = vmatpush1.msra.mxu0 0.0
      %2412 = vmatprep.subr.mxu0 0.0
      %2413 = vmatpush1.msra.mxu0 0.0
      %2414 = vmatprep.subr.mxu0 0.0
      %2415 = vmatpush1.msra.mxu0 0.0
      %2416 = vmatprep.subr.mxu0 0.0
      %2417 = vmatpush1.msra.mxu0 0.0
      %2418 = vmatprep.subr.mxu0 0.0
      %2419 = vmatpush1.msra.mxu0 0.0
      %2420 = vmatprep.subr.mxu0 0.0
      %2421 = vmatpush1.msra.mxu0 0.0
      %2422 = vmatprep.subr.mxu0 0.0
      %2423 = vmatpush1.msra.mxu0 0.0
      %2424 = vmatprep.subr.mxu0 0.0
      %2425 = vmatpush1.msra.mxu0 0.0
      %2426 = vmatprep.subr.mxu0 0.0
      %2427 = vmatpush1.msra.mxu0 0.0
      %2428 = vmatprep.subr.mxu0 0.0
      %2429 = vmatpush1.msra.mxu0 0.0
      %2430 = vmatprep.subr.mxu0 0.0
      %2431 = vmatpush1.msra.mxu0 0.0
      %2432 = vmatprep.subr.mxu0 0.0
      %2433 = vmatpush1.msra.mxu0 0.0
      %2434 = vmatprep.subr.mxu0 0.0
      %2435 = vmatpush1.msra.mxu0 0.0
      %2436 = vmatprep.subr.mxu0 0.0
      %2437 = vmatpush1.msra.mxu0 0.0
      %2438 = vmatprep.subr.mxu0 0.0
      %2439 = vmatpush1.msra.mxu0 0.0
      %2440 = vmatprep.mubr.f32.mxu0 0.0
      %2441 = vmatmul.mubr.f32.gmra.mrb[0].mxu0 %v2374
      %v2442 = vpop.f32.mrb[0].mxu0
      %v2443 = vadd.f32 0.0, %v2442
      %v2444 = vpop.f32.mrb[0].mxu0
      %2445 = vdwg.mxu0
      %v2447 = vsel %vm643, %v2370, 0
      %2449 = vmatprep.subr.mxu0 0.0
      %2450 = vmatpush1.msra.mxu0 %v2022
      %2451 = vmatprep.subr.mxu0 0.0
      %2452 = vmatpush1.msra.mxu0 0.0
      %2453 = vmatprep.subr.mxu0 0.0
      %2454 = vmatpush1.msra.mxu0 0.0
      %2455 = vmatprep.subr.mxu0 0.0
      %2456 = vmatpush1.msra.mxu0 0.0
      %2457 = vmatprep.subr.mxu0 0.0
      %2458 = vmatpush1.msra.mxu0 0.0
      %2459 = vmatprep.subr.mxu0 0.0
      %2460 = vmatpush1.msra.mxu0 0.0
      %2461 = vmatprep.subr.mxu0 0.0
      %2462 = vmatpush1.msra.mxu0 0.0
      %2463 = vmatprep.subr.mxu0 0.0
      %2464 = vmatpush1.msra.mxu0 0.0
      %2465 = vmatprep.subr.mxu0 0.0
      %2466 = vmatpush1.msra.mxu0 0.0
      %2467 = vmatprep.subr.mxu0 0.0
      %2468 = vmatpush1.msra.mxu0 0.0
      %2469 = vmatprep.subr.mxu0 0.0
      %2470 = vmatpush1.msra.mxu0 0.0
      %2471 = vmatprep.subr.mxu0 0.0
      %2472 = vmatpush1.msra.mxu0 0.0
      %2473 = vmatprep.subr.mxu0 0.0
      %2474 = vmatpush1.msra.mxu0 0.0
      %2475 = vmatprep.subr.mxu0 0.0
      %2476 = vmatpush1.msra.mxu0 0.0
      %2477 = vmatprep.subr.mxu0 0.0
      %2478 = vmatpush1.msra.mxu0 0.0
      %2479 = vmatprep.subr.mxu0 0.0
      %2480 = vmatpush1.msra.mxu0 0.0
      %2481 = vmatprep.subr.mxu0 0.0
      %2482 = vmatpush1.msra.mxu0 0.0
      %2483 = vmatprep.subr.mxu0 0.0
      %2484 = vmatpush1.msra.mxu0 0.0
      %2485 = vmatprep.subr.mxu0 0.0
      %2486 = vmatpush1.msra.mxu0 0.0
      %2487 = vmatprep.subr.mxu0 0.0
      %2488 = vmatpush1.msra.mxu0 0.0
      %2489 = vmatprep.subr.mxu0 0.0
      %2490 = vmatpush1.msra.mxu0 0.0
      %2491 = vmatprep.subr.mxu0 0.0
      %2492 = vmatpush1.msra.mxu0 0.0
      %2493 = vmatprep.subr.mxu0 0.0
      %2494 = vmatpush1.msra.mxu0 0.0
      %2495 = vmatprep.subr.mxu0 0.0
      %2496 = vmatpush1.msra.mxu0 0.0
      %2497 = vmatprep.subr.mxu0 0.0
      %2498 = vmatpush1.msra.mxu0 0.0
      %2499 = vmatprep.subr.mxu0 0.0
      %2500 = vmatpush1.msra.mxu0 0.0
      %2501 = vmatprep.subr.mxu0 0.0
      %2502 = vmatpush1.msra.mxu0 0.0
      %2503 = vmatprep.subr.mxu0 0.0
      %2504 = vmatpush1.msra.mxu0 0.0
      %2505 = vmatprep.subr.mxu0 0.0
      %2506 = vmatpush1.msra.mxu0 0.0
      %2507 = vmatprep.subr.mxu0 0.0
      %2508 = vmatpush1.msra.mxu0 0.0
      %2509 = vmatprep.subr.mxu0 0.0
      %2510 = vmatpush1.msra.mxu0 0.0
      %2511 = vmatprep.subr.mxu0 0.0
      %2512 = vmatpush1.msra.mxu0 0.0
      %2513 = vmatprep.mubr.f32.mxu0 0.0
      %2514 = vmatmul.mubr.f32.gmra.mrb[0].mxu0 %v2447
      %v2515 = vpop.f32.mrb[0].mxu0
      %v2516 = vadd.f32 0.0, %v2515
      %v2517 = vpop.f32.mrb[0].mxu0
      %2518 = vdwg.mxu0
      %v2520 = vsel %vm643, %v2371, 0
      %2522 = vmatprep.subr.mxu0 0.0
      %2523 = vmatpush1.msra.mxu0 %v2023
      %2524 = vmatprep.subr.mxu0 0.0
      %2525 = vmatpush1.msra.mxu0 0.0
      %2526 = vmatprep.subr.mxu0 0.0
      %2527 = vmatpush1.msra.mxu0 0.0
      %2528 = vmatprep.subr.mxu0 0.0
      %2529 = vmatpush1.msra.mxu0 0.0
      %2530 = vmatprep.subr.mxu0 0.0
      %2531 = vmatpush1.msra.mxu0 0.0
      %2532 = vmatprep.subr.mxu0 0.0
      %2533 = vmatpush1.msra.mxu0 0.0
      %2534 = vmatprep.subr.mxu0 0.0
      %2535 = vmatpush1.msra.mxu0 0.0
      %2536 = vmatprep.subr.mxu0 0.0
      %2537 = vmatpush1.msra.mxu0 0.0
      %2538 = vmatprep.subr.mxu0 0.0
      %2539 = vmatpush1.msra.mxu0 0.0
      %2540 = vmatprep.subr.mxu0 0.0
      %2541 = vmatpush1.msra.mxu0 0.0
      %2542 = vmatprep.subr.mxu0 0.0
      %2543 = vmatpush1.msra.mxu0 0.0
      %2544 = vmatprep.subr.mxu0 0.0
      %2545 = vmatpush1.msra.mxu0 0.0
      %2546 = vmatprep.subr.mxu0 0.0
      %2547 = vmatpush1.msra.mxu0 0.0
      %2548 = vmatprep.subr.mxu0 0.0
      %2549 = vmatpush1.msra.mxu0 0.0
      %2550 = vmatprep.subr.mxu0 0.0
      %2551 = vmatpush1.msra.mxu0 0.0
      %2552 = vmatprep.subr.mxu0 0.0
      %2553 = vmatpush1.msra.mxu0 0.0
      %2554 = vmatprep.subr.mxu0 0.0
      %2555 = vmatpush1.msra.mxu0 0.0
      %2556 = vmatprep.subr.mxu0 0.0
      %2557 = vmatpush1.msra.mxu0 0.0
      %2558 = vmatprep.subr.mxu0 0.0
      %2559 = vmatpush1.msra.mxu0 0.0
      %2560 = vmatprep.subr.mxu0 0.0
      %2561 = vmatpush1.msra.mxu0 0.0
      %2562 = vmatprep.subr.mxu0 0.0
      %2563 = vmatpush1.msra.mxu0 0.0
      %2564 = vmatprep.subr.mxu0 0.0
      %2565 = vmatpush1.msra.mxu0 0.0
      %2566 = vmatprep.subr.mxu0 0.0
      %2567 = vmatpush1.msra.mxu0 0.0
      %2568 = vmatprep.subr.mxu0 0.0
      %2569 = vmatpush1.msra.mxu0 0.0
      %2570 = vmatprep.subr.mxu0 0.0
      %2571 = vmatpush1.msra.mxu0 0.0
      %2572 = vmatprep.subr.mxu0 0.0
      %2573 = vmatpush1.msra.mxu0 0.0
      %2574 = vmatprep.subr.mxu0 0.0
      %2575 = vmatpush1.msra.mxu0 0.0
      %2576 = vmatprep.subr.mxu0 0.0
      %2577 = vmatpush1.msra.mxu0 0.0
      %2578 = vmatprep.subr.mxu0 0.0
      %2579 = vmatpush1.msra.mxu0 0.0
      %2580 = vmatprep.subr.mxu0 0.0
      %2581 = vmatpush1.msra.mxu0 0.0
      %2582 = vmatprep.subr.mxu0 0.0
      %2583 = vmatpush1.msra.mxu0 0.0
      %2584 = vmatprep.subr.mxu0 0.0
      %2585 = vmatpush1.msra.mxu0 0.0
      %2586 = vmatprep.mubr.f32.mxu0 0.0
      %2587 = vmatmul.mubr.f32.gmra.mrb[0].mxu0 %v2520
      %v2588 = vpop.f32.mrb[0].mxu0
      %v2589 = vadd.f32 0.0, %v2588
      %v2590 = vpop.f32.mrb[0].mxu0
      %2591 = vdwg.mxu0
      %v2593 = vsel %vm643, %v2372, 0
      %2595 = vmatprep.subr.mxu0 0.0
      %2596 = vmatpush1.msra.mxu0 %v2024
      %2597 = vmatprep.subr.mxu0 0.0
      %2598 = vmatpush1.msra.mxu0 0.0
      %2599 = vmatprep.subr.mxu0 0.0
      %2600 = vmatpush1.msra.mxu0 0.0
      %2601 = vmatprep.subr.mxu0 0.0
      %2602 = vmatpush1.msra.mxu0 0.0
      %2603 = vmatprep.subr.mxu0 0.0
      %2604 = vmatpush1.msra.mxu0 0.0
      %2605 = vmatprep.subr.mxu0 0.0
      %2606 = vmatpush1.msra.mxu0 0.0
      %2607 = vmatprep.subr.mxu0 0.0
      %2608 = vmatpush1.msra.mxu0 0.0
      %2609 = vmatprep.subr.mxu0 0.0
      %2610 = vmatpush1.msra.mxu0 0.0
      %2611 = vmatprep.subr.mxu0 0.0
      %2612 = vmatpush1.msra.mxu0 0.0
      %2613 = vmatprep.subr.mxu0 0.0
      %2614 = vmatpush1.msra.mxu0 0.0
      %2615 = vmatprep.subr.mxu0 0.0
      %2616 = vmatpush1.msra.mxu0 0.0
      %2617 = vmatprep.subr.mxu0 0.0
      %2618 = vmatpush1.msra.mxu0 0.0
      %2619 = vmatprep.subr.mxu0 0.0
      %2620 = vmatpush1.msra.mxu0 0.0
      %2621 = vmatprep.subr.mxu0 0.0
      %2622 = vmatpush1.msra.mxu0 0.0
      %2623 = vmatprep.subr.mxu0 0.0
      %2624 = vmatpush1.msra.mxu0 0.0
      %2625 = vmatprep.subr.mxu0 0.0
      %2626 = vmatpush1.msra.mxu0 0.0
      %2627 = vmatprep.subr.mxu0 0.0
      %2628 = vmatpush1.msra.mxu0 0.0
      %2629 = vmatprep.subr.mxu0 0.0
      %2630 = vmatpush1.msra.mxu0 0.0
      %2631 = vmatprep.subr.mxu0 0.0
      %2632 = vmatpush1.msra.mxu0 0.0
      %2633 = vmatprep.subr.mxu0 0.0
      %2634 = vmatpush1.msra.mxu0 0.0
      %2635 = vmatprep.subr.mxu0 0.0
      %2636 = vmatpush1.msra.mxu0 0.0
      %2637 = vmatprep.subr.mxu0 0.0
      %2638 = vmatpush1.msra.mxu0 0.0
      %2639 = vmatprep.subr.mxu0 0.0
      %2640 = vmatpush1.msra.mxu0 0.0
      %2641 = vmatprep.subr.mxu0 0.0
      %2642 = vmatpush1.msra.mxu0 0.0
      %2643 = vmatprep.subr.mxu0 0.0
      %2644 = vmatpush1.msra.mxu0 0.0
      %2645 = vmatprep.subr.mxu0 0.0
      %2646 = vmatpush1.msra.mxu0 0.0
      %2647 = vmatprep.subr.mxu0 0.0
      %2648 = vmatpush1.msra.mxu0 0.0
      %2649 = vmatprep.subr.mxu0 0.0
      %2650 = vmatpush1.msra.mxu0 0.0
      %2651 = vmatprep.subr.mxu0 0.0
      %2652 = vmatpush1.msra.mxu0 0.0
      %2653 = vmatprep.subr.mxu0 0.0
      %2654 = vmatpush1.msra.mxu0 0.0
      %2655 = vmatprep.subr.mxu0 0.0
      %2656 = vmatpush1.msra.mxu0 0.0
      %2657 = vmatprep.subr.mxu0 0.0
      %2658 = vmatpush1.msra.mxu0 0.0
      %2659 = vmatprep.mubr.f32.mxu0 0.0
      %2660 = vmatmul.mubr.f32.gmra.mrb[0].mxu0 %v2593
      %v2661 = vpop.f32.mrb[0].mxu0
      %v2662 = vadd.f32 0.0, %v2661
      %v2663 = vpop.f32.mrb[0].mxu0
      %2664 = vdwg.mxu0
      %s2665 = scalar_lea.vmem %s6, 32
      %v2666 = vld [vmem:[%s2665] sm:$0xff]
      %v2667 = vld [vmem:[%s2665 + $0x8] sm:$0xff]
      %v2668 = vld [vmem:[%s2665 + $0x10] sm:$0xff]
      %v2669 = vld [vmem:[%s2665 + $0x18] sm:$0xff]
      %v2671 = vsel %vm643, %v2443, 0
      %2673 = vmatprep.subr.mxu0 0.0
      %2674 = vmatpush1.msra.mxu0 %v2666
      %2675 = vmatprep.subr.mxu0 0.0
      %2676 = vmatpush1.msra.mxu0 0.0
      %2677 = vmatprep.subr.mxu0 0.0
      %2678 = vmatpush1.msra.mxu0 0.0
      %2679 = vmatprep.subr.mxu0 0.0
      %2680 = vmatpush1.msra.mxu0 0.0
      %2681 = vmatprep.subr.mxu0 0.0
      %2682 = vmatpush1.msra.mxu0 0.0
      %2683 = vmatprep.subr.mxu0 0.0
      %2684 = vmatpush1.msra.mxu0 0.0
      %2685 = vmatprep.subr.mxu0 0.0
      %2686 = vmatpush1.msra.mxu0 0.0
      %2687 = vmatprep.subr.mxu0 0.0
      %2688 = vmatpush1.msra.mxu0 0.0
      %2689 = vmatprep.subr.mxu0 0.0
      %2690 = vmatpush1.msra.mxu0 0.0
      %2691 = vmatprep.subr.mxu0 0.0
      %2692 = vmatpush1.msra.mxu0 0.0
      %2693 = vmatprep.subr.mxu0 0.0
      %2694 = vmatpush1.msra.mxu0 0.0
      %2695 = vmatprep.subr.mxu0 0.0
      %2696 = vmatpush1.msra.mxu0 0.0
      %2697 = vmatprep.subr.mxu0 0.0
      %2698 = vmatpush1.msra.mxu0 0.0
      %2699 = vmatprep.subr.mxu0 0.0
      %2700 = vmatpush1.msra.mxu0 0.0
      %2701 = vmatprep.subr.mxu0 0.0
      %2702 = vmatpush1.msra.mxu0 0.0
      %2703 = vmatprep.subr.mxu0 0.0
      %2704 = vmatpush1.msra.mxu0 0.0
      %2705 = vmatprep.subr.mxu0 0.0
      %2706 = vmatpush1.msra.mxu0 0.0
      %2707 = vmatprep.subr.mxu0 0.0
      %2708 = vmatpush1.msra.mxu0 0.0
      %2709 = vmatprep.subr.mxu0 0.0
      %2710 = vmatpush1.msra.mxu0 0.0
      %2711 = vmatprep.subr.mxu0 0.0
      %2712 = vmatpush1.msra.mxu0 0.0
      %2713 = vmatprep.subr.mxu0 0.0
      %2714 = vmatpush1.msra.mxu0 0.0
      %2715 = vmatprep.subr.mxu0 0.0
      %2716 = vmatpush1.msra.mxu0 0.0
      %2717 = vmatprep.subr.mxu0 0.0
      %2718 = vmatpush1.msra.mxu0 0.0
      %2719 = vmatprep.subr.mxu0 0.0
      %2720 = vmatpush1.msra.mxu0 0.0
      %2721 = vmatprep.subr.mxu0 0.0
      %2722 = vmatpush1.msra.mxu0 0.0
      %2723 = vmatprep.subr.mxu0 0.0
      %2724 = vmatpush1.msra.mxu0 0.0
      %2725 = vmatprep.subr.mxu0 0.0
      %2726 = vmatpush1.msra.mxu0 0.0
      %2727 = vmatprep.subr.mxu0 0.0
      %2728 = vmatpush1.msra.mxu0 0.0
      %2729 = vmatprep.subr.mxu0 0.0
      %2730 = vmatpush1.msra.mxu0 0.0
      %2731 = vmatprep.subr.mxu0 0.0
      %2732 = vmatpush1.msra.mxu0 0.0
      %2733 = vmatprep.subr.mxu0 0.0
      %2734 = vmatpush1.msra.mxu0 0.0
      %2735 = vmatprep.subr.mxu0 0.0
      %2736 = vmatpush1.msra.mxu0 0.0
      %2737 = vmatprep.mubr.f32.mxu0 0.0
      %2738 = vmatmul.mubr.f32.gmra.mrb[0].mxu0 %v2671
      %v2739 = vpop.f32.mrb[0].mxu0
      %v2740 = vadd.f32 0.0, %v2739
      %v2741 = vpop.f32.mrb[0].mxu0
      %2742 = vdwg.mxu0
      %v2744 = vsel %vm643, %v2516, 0
      %2746 = vmatprep.subr.mxu0 0.0
      %2747 = vmatpush1.msra.mxu0 %v2667
      %2748 = vmatprep.subr.mxu0 0.0
      %2749 = vmatpush1.msra.mxu0 0.0
      %2750 = vmatprep.subr.mxu0 0.0
      %2751 = vmatpush1.msra.mxu0 0.0
      %2752 = vmatprep.subr.mxu0 0.0
      %2753 = vmatpush1.msra.mxu0 0.0
      %2754 = vmatprep.subr.mxu0 0.0
      %2755 = vmatpush1.msra.mxu0 0.0
      %2756 = vmatprep.subr.mxu0 0.0
      %2757 = vmatpush1.msra.mxu0 0.0
      %2758 = vmatprep.subr.mxu0 0.0
      %2759 = vmatpush1.msra.mxu0 0.0
      %2760 = vmatprep.subr.mxu0 0.0
      %2761 = vmatpush1.msra.mxu0 0.0
      %2762 = vmatprep.subr.mxu0 0.0
      %2763 = vmatpush1.msra.mxu0 0.0
      %2764 = vmatprep.subr.mxu0 0.0
      %2765 = vmatpush1.msra.mxu0 0.0
      %2766 = vmatprep.subr.mxu0 0.0
      %2767 = vmatpush1.msra.mxu0 0.0
      %2768 = vmatprep.subr.mxu0 0.0
      %2769 = vmatpush1.msra.mxu0 0.0
      %2770 = vmatprep.subr.mxu0 0.0
      %2771 = vmatpush1.msra.mxu0 0.0
      %2772 = vmatprep.subr.mxu0 0.0
      %2773 = vmatpush1.msra.mxu0 0.0
      %2774 = vmatprep.subr.mxu0 0.0
      %2775 = vmatpush1.msra.mxu0 0.0
      %2776 = vmatprep.subr.mxu0 0.0
      %2777 = vmatpush1.msra.mxu0 0.0
      %2778 = vmatprep.subr.mxu0 0.0
      %2779 = vmatpush1.msra.mxu0 0.0
      %2780 = vmatprep.subr.mxu0 0.0
      %2781 = vmatpush1.msra.mxu0 0.0
      %2782 = vmatprep.subr.mxu0 0.0
      %2783 = vmatpush1.msra.mxu0 0.0
      %2784 = vmatprep.subr.mxu0 0.0
      %2785 = vmatpush1.msra.mxu0 0.0
      %2786 = vmatprep.subr.mxu0 0.0
      %2787 = vmatpush1.msra.mxu0 0.0
      %2788 = vmatprep.subr.mxu0 0.0
      %2789 = vmatpush1.msra.mxu0 0.0
      %2790 = vmatprep.subr.mxu0 0.0
      %2791 = vmatpush1.msra.mxu0 0.0
      %2792 = vmatprep.subr.mxu0 0.0
      %2793 = vmatpush1.msra.mxu0 0.0
      %2794 = vmatprep.subr.mxu0 0.0
      %2795 = vmatpush1.msra.mxu0 0.0
      %2796 = vmatprep.subr.mxu0 0.0
      %2797 = vmatpush1.msra.mxu0 0.0
      %2798 = vmatprep.subr.mxu0 0.0
      %2799 = vmatpush1.msra.mxu0 0.0
      %2800 = vmatprep.subr.mxu0 0.0
      %2801 = vmatpush1.msra.mxu0 0.0
      %2802 = vmatprep.subr.mxu0 0.0
      %2803 = vmatpush1.msra.mxu0 0.0
      %2804 = vmatprep.subr.mxu0 0.0
      %2805 = vmatpush1.msra.mxu0 0.0
      %2806 = vmatprep.subr.mxu0 0.0
      %2807 = vmatpush1.msra.mxu0 0.0
      %2808 = vmatprep.subr.mxu0 0.0
      %2809 = vmatpush1.msra.mxu0 0.0
      %2810 = vmatprep.mubr.f32.mxu0 0.0
      %2811 = vmatmul.mubr.f32.gmra.mrb[0].mxu0 %v2744
      %v2812 = vpop.f32.mrb[0].mxu0
      %v2813 = vadd.f32 0.0, %v2812
      %v2814 = vpop.f32.mrb[0].mxu0
      %2815 = vdwg.mxu0
      %v2817 = vsel %vm643, %v2589, 0
      %2819 = vmatprep.subr.mxu0 0.0
      %2820 = vmatpush1.msra.mxu0 %v2668
      %2821 = vmatprep.subr.mxu0 0.0
      %2822 = vmatpush1.msra.mxu0 0.0
      %2823 = vmatprep.subr.mxu0 0.0
      %2824 = vmatpush1.msra.mxu0 0.0
      %2825 = vmatprep.subr.mxu0 0.0
      %2826 = vmatpush1.msra.mxu0 0.0
      %2827 = vmatprep.subr.mxu0 0.0
      %2828 = vmatpush1.msra.mxu0 0.0
      %2829 = vmatprep.subr.mxu0 0.0
      %2830 = vmatpush1.msra.mxu0 0.0
      %2831 = vmatprep.subr.mxu0 0.0
      %2832 = vmatpush1.msra.mxu0 0.0
      %2833 = vmatprep.subr.mxu0 0.0
      %2834 = vmatpush1.msra.mxu0 0.0
      %2835 = vmatprep.subr.mxu0 0.0
      %2836 = vmatpush1.msra.mxu0 0.0
      %2837 = vmatprep.subr.mxu0 0.0
      %2838 = vmatpush1.msra.mxu0 0.0
      %2839 = vmatprep.subr.mxu0 0.0
      %2840 = vmatpush1.msra.mxu0 0.0
      %2841 = vmatprep.subr.mxu0 0.0
      %2842 = vmatpush1.msra.mxu0 0.0
      %2843 = vmatprep.subr.mxu0 0.0
      %2844 = vmatpush1.msra.mxu0 0.0
      %2845 = vmatprep.subr.mxu0 0.0
      %2846 = vmatpush1.msra.mxu0 0.0
      %2847 = vmatprep.subr.mxu0 0.0
      %2848 = vmatpush1.msra.mxu0 0.0
      %2849 = vmatprep.subr.mxu0 0.0
      %2850 = vmatpush1.msra.mxu0 0.0
      %2851 = vmatprep.subr.mxu0 0.0
      %2852 = vmatpush1.msra.mxu0 0.0
      %2853 = vmatprep.subr.mxu0 0.0
      %2854 = vmatpush1.msra.mxu0 0.0
      %2855 = vmatprep.subr.mxu0 0.0
      %2856 = vmatpush1.msra.mxu0 0.0
      %2857 = vmatprep.subr.mxu0 0.0
      %2858 = vmatpush1.msra.mxu0 0.0
      %2859 = vmatprep.subr.mxu0 0.0
      %2860 = vmatpush1.msra.mxu0 0.0
      %2861 = vmatprep.subr.mxu0 0.0
      %2862 = vmatpush1.msra.mxu0 0.0
      %2863 = vmatprep.subr.mxu0 0.0
      %2864 = vmatpush1.msra.mxu0 0.0
      %2865 = vmatprep.subr.mxu0 0.0
      %2866 = vmatpush1.msra.mxu0 0.0
      %2867 = vmatprep.subr.mxu0 0.0
      %2868 = vmatpush1.msra.mxu0 0.0
      %2869 = vmatprep.subr.mxu0 0.0
      %2870 = vmatpush1.msra.mxu0 0.0
      %2871 = vmatprep.subr.mxu0 0.0
      %2872 = vmatpush1.msra.mxu0 0.0
      %2873 = vmatprep.subr.mxu0 0.0
      %2874 = vmatpush1.msra.mxu0 0.0
      %2875 = vmatprep.subr.mxu0 0.0
      %2876 = vmatpush1.msra.mxu0 0.0
      %2877 = vmatprep.subr.mxu0 0.0
      %2878 = vmatpush1.msra.mxu0 0.0
      %2879 = vmatprep.subr.mxu0 0.0
      %2880 = vmatpush1.msra.mxu0 0.0
      %2881 = vmatprep.subr.mxu0 0.0
      %2882 = vmatpush1.msra.mxu0 0.0
      %2883 = vmatprep.mubr.f32.mxu0 0.0
      %2884 = vmatmul.mubr.f32.gmra.mrb[0].mxu0 %v2817
      %v2885 = vpop.f32.mrb[0].mxu0
      %v2886 = vadd.f32 0.0, %v2885
      %v2887 = vpop.f32.mrb[0].mxu0
      %2888 = vdwg.mxu0
      %v2890 = vsel %vm643, %v2662, 0
      %2892 = vmatprep.subr.mxu0 0.0
      %2893 = vmatpush1.msra.mxu0 %v2669
      %2894 = vmatprep.subr.mxu0 0.0
      %2895 = vmatpush1.msra.mxu0 0.0
      %2896 = vmatprep.subr.mxu0 0.0
      %2897 = vmatpush1.msra.mxu0 0.0
      %2898 = vmatprep.subr.mxu0 0.0
      %2899 = vmatpush1.msra.mxu0 0.0
      %2900 = vmatprep.subr.mxu0 0.0
      %2901 = vmatpush1.msra.mxu0 0.0
      %2902 = vmatprep.subr.mxu0 0.0
      %2903 = vmatpush1.msra.mxu0 0.0
      %2904 = vmatprep.subr.mxu0 0.0
      %2905 = vmatpush1.msra.mxu0 0.0
      %2906 = vmatprep.subr.mxu0 0.0
      %2907 = vmatpush1.msra.mxu0 0.0
      %2908 = vmatprep.subr.mxu0 0.0
      %2909 = vmatpush1.msra.mxu0 0.0
      %2910 = vmatprep.subr.mxu0 0.0
      %2911 = vmatpush1.msra.mxu0 0.0
      %2912 = vmatprep.subr.mxu0 0.0
      %2913 = vmatpush1.msra.mxu0 0.0
      %2914 = vmatprep.subr.mxu0 0.0
      %2915 = vmatpush1.msra.mxu0 0.0
      %2916 = vmatprep.subr.mxu0 0.0
      %2917 = vmatpush1.msra.mxu0 0.0
      %2918 = vmatprep.subr.mxu0 0.0
      %2919 = vmatpush1.msra.mxu0 0.0
      %2920 = vmatprep.subr.mxu0 0.0
      %2921 = vmatpush1.msra.mxu0 0.0
      %2922 = vmatprep.subr.mxu0 0.0
      %2923 = vmatpush1.msra.mxu0 0.0
      %2924 = vmatprep.subr.mxu0 0.0
      %2925 = vmatpush1.msra.mxu0 0.0
      %2926 = vmatprep.subr.mxu0 0.0
      %2927 = vmatpush1.msra.mxu0 0.0
      %2928 = vmatprep.subr.mxu0 0.0
      %2929 = vmatpush1.msra.mxu0 0.0
      %2930 = vmatprep.subr.mxu0 0.0
      %2931 = vmatpush1.msra.mxu0 0.0
      %2932 = vmatprep.subr.mxu0 0.0
      %2933 = vmatpush1.msra.mxu0 0.0
      %2934 = vmatprep.subr.mxu0 0.0
      %2935 = vmatpush1.msra.mxu0 0.0
      %2936 = vmatprep.subr.mxu0 0.0
      %2937 = vmatpush1.msra.mxu0 0.0
      %2938 = vmatprep.subr.mxu0 0.0
      %2939 = vmatpush1.msra.mxu0 0.0
      %2940 = vmatprep.subr.mxu0 0.0
      %2941 = vmatpush1.msra.mxu0 0.0
      %2942 = vmatprep.subr.mxu0 0.0
      %2943 = vmatpush1.msra.mxu0 0.0
      %2944 = vmatprep.subr.mxu0 0.0
      %2945 = vmatpush1.msra.mxu0 0.0
      %2946 = vmatprep.subr.mxu0 0.0
      %2947 = vmatpush1.msra.mxu0 0.0
      %2948 = vmatprep.subr.mxu0 0.0
      %2949 = vmatpush1.msra.mxu0 0.0
      %2950 = vmatprep.subr.mxu0 0.0
      %2951 = vmatpush1.msra.mxu0 0.0
      %2952 = vmatprep.subr.mxu0 0.0
      %2953 = vmatpush1.msra.mxu0 0.0
      %2954 = vmatprep.subr.mxu0 0.0
      %2955 = vmatpush1.msra.mxu0 0.0
      %2956 = vmatprep.mubr.f32.mxu0 0.0
      %2957 = vmatmul.mubr.f32.gmra.mrb[0].mxu0 %v2890
      %v2958 = vpop.f32.mrb[0].mxu0
      %v2959 = vadd.f32 0.0, %v2958
      %v2960 = vpop.f32.mrb[0].mxu0
      %2961 = vdwg.mxu0
      %v2962 = vsel %vm541, %v2740, 0.0
      %v2963 = vsel %vm541, %v2813, 0.0
      %v2964 = vadd.f32 %v2962, %v2963
      %v2965 = vsel %vm541, %v2886, 0.0
      %v2966 = vadd.f32 %v2964, %v2965
      %v2967 = vsel %vm541, %v2959, 0.0
      %v2968 = vadd.f32 %v2966, %v2967
      %v2969 = vadd.f32 %v1863, %v2968
      %v2970 = vlaneseq
      %v2971 = vshrl.u32 %v2970, 7
      %v2972 = vsub.s32 4, %v2971
      %v2973 = vrot.slane %v1865, %v2972
      %v2974 = vadd.f32 %v2969, %v2973
      %v2975 = vsel %vm541, %v2974, 0.0
      %2976 = vadd.xlane.f32.xlu0 %v2975
      %v2977 = vpop.xlane.xlu0 %2976
      %v2978 = vmul.f32 %v2977, %v545
      %v2979 = vsub.f32 %v2974, %v2978
      %v2980 = vmul.f32 %v2979, %v2979
      %v2981 = vsel %vm541, %v2980, 0.0
      %2982 = vadd.xlane.f32.xlu0 %v2981
      %v2983 = vpop.xlane.xlu0 %2982
      %v2984 = vmul.f32 %v2983, %v545
      %v2985 = vadd.f32 %v2984, 1e-05
      %v2986 = vrsqrt.pop %v2985
      %v2987 = vmul.f32 %v2979, %v2986
      %v2988 = vlaneseq
      %v2989 = vshrl.u32 %v2988, 7
      %v2990 = vsub.s32 2, %v2989
      %v2991 = vrot.slane %v1865, %v2990
      %v2992 = vmul.f32 %v2987, %v2991
      %v2993 = vlaneseq
      %v2994 = vshrl.u32 %v2993, 7
      %v2995 = vsub.s32 3, %v2994
      %v2996 = vrot.slane %v1865, %v2995
      %v2997 = vadd.f32 %v2992, %v2996
      %s2998 = scalar_lea.vmem %s7, 32
      %v2999 = vld [vmem:[%s2998] sm:$0xff]
      %v3000 = vld [vmem:[%s2998 + $0x8] sm:$0xff]
      %v3001 = vld [vmem:[%s2998 + $0x10] sm:$0xff]
      %v3002 = vld [vmem:[%s2998 + $0x18] sm:$0xff]
      %s3003 = scalar_lea.vmem %s10, 1
      %v3004 = vld [vmem:[%s3003] sm:$0x1]
      %v3006 = vlaneseq
      %v3007 = vshrl.u32 %v3006, 7
      %v3008 = vsub.s32 0, %v3007
      %v3009 = vrot.slane %v3004, %v3008
      %v3012 = vsel %vm541, %v2997, 0
      %3014 = vmatprep.subr.mxu0 0.0
      %3015 = vmatpush1.msra.mxu0 %v2999
      %3016 = vmatprep.subr.mxu0 0.0
      %3017 = vmatpush1.msra.mxu0 %v3000
      %3018 = vmatprep.subr.mxu0 0.0
      %3019 = vmatpush1.msra.mxu0 %v3001
      %3020 = vmatprep.subr.mxu0 0.0
      %3021 = vmatpush1.msra.mxu0 %v3002
      %3022 = vmatprep.subr.mxu0 0.0
      %3023 = vmatpush1.msra.mxu0 0.0
      %3024 = vmatprep.subr.mxu0 0.0
      %3025 = vmatpush1.msra.mxu0 0.0
      %3026 = vmatprep.subr.mxu0 0.0
      %3027 = vmatpush1.msra.mxu0 0.0
      %3028 = vmatprep.subr.mxu0 0.0
      %3029 = vmatpush1.msra.mxu0 0.0
      %3030 = vmatprep.subr.mxu0 0.0
      %3031 = vmatpush1.msra.mxu0 0.0
      %3032 = vmatprep.subr.mxu0 0.0
      %3033 = vmatpush1.msra.mxu0 0.0
      %3034 = vmatprep.subr.mxu0 0.0
      %3035 = vmatpush1.msra.mxu0 0.0
      %3036 = vmatprep.subr.mxu0 0.0
      %3037 = vmatpush1.msra.mxu0 0.0
      %3038 = vmatprep.subr.mxu0 0.0
      %3039 = vmatpush1.msra.mxu0 0.0
      %3040 = vmatprep.subr.mxu0 0.0
      %3041 = vmatpush1.msra.mxu0 0.0
      %3042 = vmatprep.subr.mxu0 0.0
      %3043 = vmatpush1.msra.mxu0 0.0
      %3044 = vmatprep.subr.mxu0 0.0
      %3045 = vmatpush1.msra.mxu0 0.0
      %3046 = vmatprep.subr.mxu0 0.0
      %3047 = vmatpush1.msra.mxu0 0.0
      %3048 = vmatprep.subr.mxu0 0.0
      %3049 = vmatpush1.msra.mxu0 0.0
      %3050 = vmatprep.subr.mxu0 0.0
      %3051 = vmatpush1.msra.mxu0 0.0
      %3052 = vmatprep.subr.mxu0 0.0
      %3053 = vmatpush1.msra.mxu0 0.0
      %3054 = vmatprep.subr.mxu0 0.0
      %3055 = vmatpush1.msra.mxu0 0.0
      %3056 = vmatprep.subr.mxu0 0.0
      %3057 = vmatpush1.msra.mxu0 0.0
      %3058 = vmatprep.subr.mxu0 0.0
      %3059 = vmatpush1.msra.mxu0 0.0
      %3060 = vmatprep.subr.mxu0 0.0
      %3061 = vmatpush1.msra.mxu0 0.0
      %3062 = vmatprep.subr.mxu0 0.0
      %3063 = vmatpush1.msra.mxu0 0.0
      %3064 = vmatprep.subr.mxu0 0.0
      %3065 = vmatpush1.msra.mxu0 0.0
      %3066 = vmatprep.subr.mxu0 0.0
      %3067 = vmatpush1.msra.mxu0 0.0
      %3068 = vmatprep.subr.mxu0 0.0
      %3069 = vmatpush1.msra.mxu0 0.0
      %3070 = vmatprep.subr.mxu0 0.0
      %3071 = vmatpush1.msra.mxu0 0.0
      %3072 = vmatprep.subr.mxu0 0.0
      %3073 = vmatpush1.msra.mxu0 0.0
      %3074 = vmatprep.subr.mxu0 0.0
      %3075 = vmatpush1.msra.mxu0 0.0
      %3076 = vmatprep.subr.mxu0 0.0
      %3077 = vmatpush1.msra.mxu0 0.0
      %3078 = vmatprep.mubr.f32.mxu0 0.0
      %3079 = vmatmul.mubr.f32.gmra.mrb[0].mxu0 %v3012
      %v3080 = vpop.f32.mrb[0].mxu0
      %v3081 = vadd.f32 %v3009, %v3080
      %v3082 = vpop.f32.mrb[0].mxu0
      %3083 = vdwg.mxu0
      %v3084 = vmul.f32 %v3081, %v3081
      %v3085 = vmul.f32 %v3081, %v3084
      %v3086 = vmul.f32 %v3085, 0.044715
      %v3087 = vadd.f32 %v3081, %v3086
      %v3088 = vmul.f32 %v3087, 0.7978846
      %v3089 = vtanh.pop %v3088
      %v3090 = vadd.f32 %v3089, 1.0
      %v3091 = vmul.f32 %v3090, 0.5
      %v3092 = vmul.f32 %v3081, %v3091
      %s3093 = scalar_lea.vmem %s8, 64
      %v3094 = vld [vmem:[%s3093] sm:$0xff]
      %v3095 = vld [vmem:[%s3093 + $0x8] sm:$0xff]
      %v3096 = vld [vmem:[%s3093 + $0x10] sm:$0xff]
      %v3097 = vld [vmem:[%s3093 + $0x18] sm:$0xff]
      %v3098 = vld [vmem:[%s3093 + $0x20] sm:$0xff]
      %v3099 = vld [vmem:[%s3093 + $0x28] sm:$0xff]
      %v3100 = vld [vmem:[%s3093 + $0x30] sm:$0xff]
      %v3101 = vld [vmem:[%s3093 + $0x38] sm:$0xff]
      %v3103 = vsel %vm1784, %v3092, 0
      %3105 = vmatprep.subr.mxu0 0.0
      %3106 = vmatpush1.msra.mxu0 %v3094
      %3107 = vmatprep.subr.mxu0 0.0
      %3108 = vmatpush1.msra.mxu0 %v3095
      %3109 = vmatprep.subr.mxu0 0.0
      %3110 = vmatpush1.msra.mxu0 %v3096
      %3111 = vmatprep.subr.mxu0 0.0
      %3112 = vmatpush1.msra.mxu0 %v3097
      %3113 = vmatprep.subr.mxu0 0.0
      %3114 = vmatpush1.msra.mxu0 %v3098
      %3115 = vmatprep.subr.mxu0 0.0
      %3116 = vmatpush1.msra.mxu0 %v3099
      %3117 = vmatprep.subr.mxu0 0.0
      %3118 = vmatpush1.msra.mxu0 %v3100
      %3119 = vmatprep.subr.mxu0 0.0
      %3120 = vmatpush1.msra.mxu0 %v3101
      %3121 = vmatprep.subr.mxu0 0.0
      %3122 = vmatpush1.msra.mxu0 0.0
      %3123 = vmatprep.subr.mxu0 0.0
      %3124 = vmatpush1.msra.mxu0 0.0
      %3125 = vmatprep.subr.mxu0 0.0
      %3126 = vmatpush1.msra.mxu0 0.0
      %3127 = vmatprep.subr.mxu0 0.0
      %3128 = vmatpush1.msra.mxu0 0.0
      %3129 = vmatprep.subr.mxu0 0.0
      %3130 = vmatpush1.msra.mxu0 0.0
      %3131 = vmatprep.subr.mxu0 0.0
      %3132 = vmatpush1.msra.mxu0 0.0
      %3133 = vmatprep.subr.mxu0 0.0
      %3134 = vmatpush1.msra.mxu0 0.0
      %3135 = vmatprep.subr.mxu0 0.0
      %3136 = vmatpush1.msra.mxu0 0.0
      %3137 = vmatprep.subr.mxu0 0.0
      %3138 = vmatpush1.msra.mxu0 0.0
      %3139 = vmatprep.subr.mxu0 0.0
      %3140 = vmatpush1.msra.mxu0 0.0
      %3141 = vmatprep.subr.mxu0 0.0
      %3142 = vmatpush1.msra.mxu0 0.0
      %3143 = vmatprep.subr.mxu0 0.0
      %3144 = vmatpush1.msra.mxu0 0.0
      %3145 = vmatprep.subr.mxu0 0.0
      %3146 = vmatpush1.msra.mxu0 0.0
      %3147 = vmatprep.subr.mxu0 0.0
      %3148 = vmatpush1.msra.mxu0 0.0
      %3149 = vmatprep.subr.mxu0 0.0
      %3150 = vmatpush1.msra.mxu0 0.0
      %3151 = vmatprep.subr.mxu0 0.0
      %3152 = vmatpush1.msra.mxu0 0.0
      %3153 = vmatprep.subr.mxu0 0.0
      %3154 = vmatpush1.msra.mxu0 0.0
      %3155 = vmatprep.subr.mxu0 0.0
      %3156 = vmatpush1.msra.mxu0 0.0
      %3157 = vmatprep.subr.mxu0 0.0
      %3158 = vmatpush1.msra.mxu0 0.0
      %3159 = vmatprep.subr.mxu0 0.0
      %3160 = vmatpush1.msra.mxu0 0.0
      %3161 = vmatprep.subr.mxu0 0.0
      %3162 = vmatpush1.msra.mxu0 0.0
      %3163 = vmatprep.subr.mxu0 0.0
      %3164 = vmatpush1.msra.mxu0 0.0
      %3165 = vmatprep.subr.mxu0 0.0
      %3166 = vmatpush1.msra.mxu0 0.0
      %3167 = vmatprep.subr.mxu0 0.0
      %3168 = vmatpush1.msra.mxu0 0.0
      %3169 = vmatprep.mubr.f32.mxu0 0.0
      %3170 = vmatmul.mubr.f32.gmra.mrb[0].mxu0 %v3103
      %v3171 = vpop.f32.mrb[0].mxu0
      %v3172 = vadd.f32 0.0, %v3171
      %v3173 = vpop.f32.mrb[0].mxu0
      %3174 = vdwg.mxu0
      %v3175 = vadd.f32 %v2974, %v3172
      %v3176 = vlaneseq
      %v3177 = vshrl.u32 %v3176, 7
      %v3178 = vsub.s32 5, %v3177
      %v3179 = vrot.slane %v1865, %v3178
      %v3180 = vadd.f32 %v3175, %v3179
      %v3181 = vld [vmem:[%s11] sm:$0xff]
      %v3182 = vld [vmem:[%s11 + $0x8] sm:$0xff]
      %v3183 = vld [vmem:[%s11 + $0x10] sm:$0xff]
      %v3184 = vld [vmem:[%s11 + $0x18] sm:$0xff]
      %v3185 = vld [vmem:[%s12] sm:$0x1]
      %v3187 = vlaneseq
      %v3188 = vshrl.u32 %v3187, 7
      %v3189 = vsub.s32 0, %v3188
      %v3190 = vrot.slane %v3185, %v3189
      %v3193 = vsel %vm541, %v3180, 0
      %3195 = vmatprep.subr.mxu0 0.0
      %3196 = vmatpush1.msra.mxu0 %v3181
      %3197 = vmatprep.subr.mxu0 0.0
      %3198 = vmatpush1.msra.mxu0 %v3182
      %3199 = vmatprep.subr.mxu0 0.0
      %3200 = vmatpush1.msra.mxu0 %v3183
      %3201 = vmatprep.subr.mxu0 0.0
      %3202 = vmatpush1.msra.mxu0 %v3184
      %3203 = vmatprep.subr.mxu0 0.0
      %3204 = vmatpush1.msra.mxu0 0.0
      %3205 = vmatprep.subr.mxu0 0.0
      %3206 = vmatpush1.msra.mxu0 0.0
      %3207 = vmatprep.subr.mxu0 0.0
      %3208 = vmatpush1.msra.mxu0 0.0
      %3209 = vmatprep.subr.mxu0 0.0
      %3210 = vmatpush1.msra.mxu0 0.0
      %3211 = vmatprep.subr.mxu0 0.0
      %3212 = vmatpush1.msra.mxu0 0.0
      %3213 = vmatprep.subr.mxu0 0.0
      %3214 = vmatpush1.msra.mxu0 0.0
      %3215 = vmatprep.subr.mxu0 0.0
      %3216 = vmatpush1.msra.mxu0 0.0
      %3217 = vmatprep.subr.mxu0 0.0
      %3218 = vmatpush1.msra.mxu0 0.0
      %3219 = vmatprep.subr.mxu0 0.0
      %3220 = vmatpush1.msra.mxu0 0.0
      %3221 = vmatprep.subr.mxu0 0.0
      %3222 = vmatpush1.msra.mxu0 0.0
      %3223 = vmatprep.subr.mxu0 0.0
      %3224 = vmatpush1.msra.mxu0 0.0
      %3225 = vmatprep.subr.mxu0 0.0
      %3226 = vmatpush1.msra.mxu0 0.0
      %3227 = vmatprep.subr.mxu0 0.0
      %3228 = vmatpush1.msra.mxu0 0.0
      %3229 = vmatprep.subr.mxu0 0.0
      %3230 = vmatpush1.msra.mxu0 0.0
      %3231 = vmatprep.subr.mxu0 0.0
      %3232 = vmatpush1.msra.mxu0 0.0
      %3233 = vmatprep.subr.mxu0 0.0
      %3234 = vmatpush1.msra.mxu0 0.0
      %3235 = vmatprep.subr.mxu0 0.0
      %3236 = vmatpush1.msra.mxu0 0.0
      %3237 = vmatprep.subr.mxu0 0.0
      %3238 = vmatpush1.msra.mxu0 0.0
      %3239 = vmatprep.subr.mxu0 0.0
      %3240 = vmatpush1.msra.mxu0 0.0
      %3241 = vmatprep.subr.mxu0 0.0
      %3242 = vmatpush1.msra.mxu0 0.0
      %3243 = vmatprep.subr.mxu0 0.0
      %3244 = vmatpush1.msra.mxu0 0.0
      %3245 = vmatprep.subr.mxu0 0.0
      %3246 = vmatpush1.msra.mxu0 0.0
      %3247 = vmatprep.subr.mxu0 0.0
      %3248 = vmatpush1.msra.mxu0 0.0
      %3249 = vmatprep.subr.mxu0 0.0
      %3250 = vmatpush1.msra.mxu0 0.0
      %3251 = vmatprep.subr.mxu0 0.0
      %3252 = vmatpush1.msra.mxu0 0.0
      %3253 = vmatprep.subr.mxu0 0.0
      %3254 = vmatpush1.msra.mxu0 0.0
      %3255 = vmatprep.subr.mxu0 0.0
      %3256 = vmatpush1.msra.mxu0 0.0
      %3257 = vmatprep.subr.mxu0 0.0
      %3258 = vmatpush1.msra.mxu0 0.0
      %3259 = vmatprep.mubr.f32.mxu0 0.0
      %3260 = vmatmul.mubr.f32.gmra.mrb[0].mxu0 %v3193
      %v3261 = vpop.f32.mrb[0].mxu0
      %v3262 = vadd.f32 %v3190, %v3261
      %v3263 = vpop.f32.mrb[0].mxu0
      %3264 = vdwg.mxu0
      %v3265 = vsub.f32 %v3262, %v453
      %v3266 = vand.u32 2147483647, %v3265
      %3268 = vset.pattern.permute.xlu0 0
      %3269 = vperm.xlu0 %3268, %v454
      %v3270 = vpop.permute.xlu0 %3269
      %v3272 = vmul.f32 %v3266, %v3270
      %v3273 = vsel %vm458, %v3272, 0.0
      %3274 = vadd.xlane.f32.xlu0 %v3273
      %v3275 = vpop.xlane.xlu0 %3274
      %v3276 = vrot.slane %v3275, 4
      %v3277 = vadd.f32 %v3275, %v3276
      %v3278 = vrot.slane %v3277, 2
      %v3279 = vadd.f32 %v3277, %v3278
      %v3280 = vrot.slane %v3279, 1
      %v3281 = vadd.f32 %v3279, %v3280
      %s3282 = vtos %v3281
      %v3283 = vstv %s3282
      %3284 = vst [vmem:[%s452] sm:$0xff] %v3283
      %p3285 = scmp.lt.s32.totalorder %s24, 1
      %s3286 = scalar_select %p3285, %s24, 1
      %s3287 = smul.addr %s3286, 8
      %s3288 = scalar_lea.vmem %s13, %s3287
      // Predicated region
      $region73: #{simmim_forward.1} parent=71 // pred_check
        %p3289 = pneg %p325
      $region74: #{simmim_forward.1} parent=71 // pred_check_branch
        %3291 = sbr.rel (%p3289) target = $region76
      $region75: #{simmim_forward.1} parent=71 // pred_region
        _
      $region76: #{simmim_forward.1} parent=71 // pred_fallthru
        _
    $region72: #{simmim_forward.1} parent=5 // pred_fallthru
      _
    %p3292 = scmp.le.s32.totalorder 2, %s19
    // Predicated region
    $region77: #{simmim_forward.1} parent=5 // pred_check
      %p3293 = pneg %p3292
    $region78: #{simmim_forward.1} parent=5 // pred_check_branch
      %3295 = sbr.rel (%p3293) target = $region80
    $region79: #{simmim_forward.1} parent=5 // pred_region
      %s3296 = ssub.s32 %s19, 2
      // Predicated region
      $region81: #{simmim_forward.1} parent=79 // pred_check
        %p3297 = pneg %p331
      $region82: #{simmim_forward.1} parent=79 // pred_check_branch
        %3299 = sbr.rel (%p3297) target = $region84
      $region83: #{simmim_forward.1} parent=79 // pred_region
        %p3300 = scmp.lt.s32.totalorder %s25, 1
        %s3301 = scalar_select %p3300, %s25, 1
        %s3302 = smul.addr %s3301, 8
        %s3303 = scalar_lea.vmem %s13, %s3302
      $region84: #{simmim_forward.1} parent=79 // pred_fallthru
        _
    $region80: #{simmim_forward.1} parent=5 // pred_fallthru
      _
  $region6: #{simmim_forward.1} parent=0 // loop_footer
    %s23 = sadd.s32 1, %s19
  $region7: #{simmim_forward.1} parent=0 // loop_footer_branch
    %18 = sbr.rel target = $region3
  $region8: #{simmim_forward.1} parent=0 // loop_exit
    _

</llo_original>
